<compile_context>
chip_gen: v5e
topology: v5e:2x2
jax: 0.10.0
libtpu: 0.0.40
codegen_flags: <defaults>
</compile_context>

<pallas_src>
import math

import numpy as np
import jax
import jax.numpy as jnp
from jax.experimental import pallas as pl
from jax.experimental.pallas import tpu as pltpu

# ---- model config consistent with the module signature ----
NUM_FEATURES = 64          # vocab size for pc / page / offset ids
HIDDEN = 32                # hidden_dim
NUM_HEADS = 4
HEAD_DIM = HIDDEN // NUM_HEADS
SEQ = 4                    # joint sequence length (4 inputs -> 4 tokens)
LN_EPS = 1e-5

F = SEQ * HIDDEN           # 128 flattened features per row
EMB_COLS = SEQ * NUM_FEATURES   # 256 (block-diag embedding operator width)
SLAB_COLS = F              # 128 (main slab is exactly lane-width)

# ---- main weight-slab row layout (all left-multipliers, feature-major) ----
R_QKV = 0                         # (3F, F)  fused block-diag Wq^T|Wk^T|Wv^T
R_WO = R_QKV + 3 * F              # (F, F)
R_FF1 = R_WO + F                  # (F, F)
R_FF2 = R_FF1 + F                 # (F, F)
R_AVG = R_FF2 + F                 # (F, F)   per-token-group mean operator
R_GT = R_AVG + F                  # (SEQ*NUM_HEADS, F) scaled head reducer
R_GE = R_GT + SEQ * NUM_HEADS     # (F, SEQ*NUM_HEADS) head expander
R_PH = R_GE + F                   # (HIDDEN, F) fused token-pool + head Linear1
R_H2 = R_PH + HIDDEN              # (8, HIDDEN) head Linear 2 (row 0 real)
R_TOTAL = R_H2 + 8                # 1080 rows, all block starts 8-aligned

# ---- bias-slab column layout (biases stored as sublane columns) ----
B_Q, B_K, B_V, B_O = 0, 1, 2, 3
B_LN1G, B_LN1B, B_FF1, B_FF2, B_LN2G, B_LN2B = 4, 5, 6, 7, 8, 9
B_H1, B_H2 = 10, 11
BIAS_COLS = 16


# ======================================================================
# Kernel
# ======================================================================
def _kernel(ids_ref, emb_ref, w_ref, b_ref, out_ref):
    f32 = jnp.float32
    nb = ids_ref.shape[-1]                     # TILE_B (batch on lanes)

    # -- fused embedding gather: one-hot(ids) @ block-diag tables --
    iota = jax.lax.broadcasted_iota(jnp.int32, (NUM_FEATURES, nb), 0)
    onehot = jnp.concatenate(
        [(iota == ids_ref[t:t + 1, :]).astype(f32) for t in range(SEQ)], axis=0)
    x = jnp.dot(emb_ref[...], onehot, preferred_element_type=f32)    # (F, nb)

    # -- fused QKV projection (block-diagonal per-token weights) --
    qkv = jnp.dot(w_ref[R_QKV:R_QKV + 3 * F, :], x,
                  preferred_element_type=f32)                        # (3F, nb)
    q = qkv[0:F] + b_ref[:, B_Q:B_Q + 1]
    k = qkv[F:2 * F] + b_ref[:, B_K:B_K + 1]
    v = qkv[2 * F:3 * F] + b_ref[:, B_V:B_V + 1]

    def rot_tokens(a, r):
        # token-chunk roll along the feature (sublane) axis; static, cheap.
        if r == 0:
            return a
        return jnp.concatenate([a[HIDDEN * r:F], a[0:HIDDEN * r]], axis=0)

    gt = w_ref[R_GT:R_GT + SEQ * NUM_HEADS, :]       # (16, F) scaled reducer
    ge = w_ref[R_GE:R_GE + F, 0:SEQ * NUM_HEADS]     # (F, 16) expander

    # scores s[r][tq*NH+h, b] = scale * <q_{tq,h}, k_{(tq+r)%S, h}>
    s = [jnp.dot(gt, q * rot_tokens(k, r), preferred_element_type=f32)
         for r in range(SEQ)]
    m = s[0]
    for r in range(1, SEQ):
        m = jnp.maximum(m, s[r])
    e = [jnp.exp(si - m) for si in s]
    denom = e[0]
    for r in range(1, SEQ):
        denom = denom + e[r]
    inv = pl.reciprocal(denom, approx=False)         # exact (keeps 1e-3 check)

    ctx = None
    for r in range(SEQ):
        term = jnp.dot(ge, e[r] * inv, preferred_element_type=f32) * rot_tokens(v, r)
        ctx = term if ctx is None else ctx + term    # (F, nb)

    attn = jnp.dot(w_ref[R_WO:R_WO + F, :], ctx,
                   preferred_element_type=f32) + b_ref[:, B_O:B_O + 1]

    avg = w_ref[R_AVG:R_AVG + F, :]                  # per-token mean operator

    def token_layer_norm(y, gcol, bcol):
        mu = jnp.dot(avg, y, preferred_element_type=f32)
        var = jnp.dot(avg, (y - mu) * (y - mu), preferred_element_type=f32)
        return (y - mu) * jax.lax.rsqrt(var + LN_EPS) * gcol + bcol

    x1 = token_layer_norm(x + attn,
                          b_ref[:, B_LN1G:B_LN1G + 1], b_ref[:, B_LN1B:B_LN1B + 1])

    ff = jnp.maximum(
        jnp.dot(w_ref[R_FF1:R_FF1 + F, :], x1, preferred_element_type=f32)
        + b_ref[:, B_FF1:B_FF1 + 1], 0.0)
    ff = jnp.dot(w_ref[R_FF2:R_FF2 + F, :], ff,
                 preferred_element_type=f32) + b_ref[:, B_FF2:B_FF2 + 1]
    x2 = token_layer_norm(x1 + ff,
                          b_ref[:, B_LN2G:B_LN2G + 1], b_ref[:, B_LN2B:B_LN2B + 1])

    # fused token-mean-pool + head Linear1 (single (HIDDEN, F) operator), ReLU.
    # Dropout is eval-mode identity.
    h1 = jnp.maximum(
        jnp.dot(w_ref[R_PH:R_PH + HIDDEN, :], x2,
                preferred_element_type=f32) + b_ref[0:HIDDEN, B_H1:B_H1 + 1], 0.0)
    out = jnp.dot(w_ref[R_H2:R_H2 + 8, 0:HIDDEN], h1,
                  preferred_element_type=f32)                        # (8, nb)
    out_ref[...] = out[0:1] + b_ref[0:1, B_H2:B_H2 + 1]              # (1, nb)


# ======================================================================
# Parameter packing (wrapper-side, plain JAX/numpy)
# ======================================================================
def _structural_constants():
    l = np.arange(F)
    tok = l // HIDDEN
    head = (l % HIDDEN) // HEAD_DIM
    slot = tok * NUM_HEADS + head
    scale = 1.0 / math.sqrt(HEAD_DIM)
    gt = (slot[None, :] == np.arange(SEQ * NUM_HEADS)[:, None]).astype(np.float32) * scale
    ge = (slot[:, None] == np.arange(SEQ * NUM_HEADS)[None, :]).astype(np.float32)
    avg = (tok[:, None] == tok[None, :]).astype(np.float32) / HIDDEN
    pool = ((l % HIDDEN)[None, :] == np.arange(HIDDEN)[:, None]).astype(np.float32) / SEQ
    return gt, ge, avg, pool


def _block_diag4(w):
    z = jnp.zeros_like(w)
    rows = [jnp.concatenate([w if c == t else z for c in range(SEQ)], axis=1)
            for t in range(SEQ)]
    return jnp.concatenate(rows, axis=0)          # (4H, 4H)


def _pack_params(p):
    gt, ge, avg, pool = _structural_constants()

    # block-diagonal embedding operator (separate 256-lane slab)
    emb = jnp.zeros((F, EMB_COLS), jnp.float32)
    tables = [p["emb_cache_pc"], p["emb_prefetch_pc"], p["emb_page"], p["emb_offset"]]
    for t, tbl in enumerate(tables):
        emb = emb.at[t * HIDDEN:(t + 1) * HIDDEN,
                     t * NUM_FEATURES:(t + 1) * NUM_FEATURES].set(tbl.T)

    # fuse (linear) token mean-pool with head Linear1: (H, F) = W1^T @ POOL
    ph = jnp.dot(p["w_head1"].T.astype(jnp.float32), jnp.asarray(pool))

    blocks = [
        _block_diag4(p["wq"].T), _block_diag4(p["wk"].T), _block_diag4(p["wv"].T),
        _block_diag4(p["wo"].T),
        _block_diag4(p["w_ff1"].T), _block_diag4(p["w_ff2"].T),
        jnp.asarray(avg), jnp.asarray(gt), jnp.asarray(ge),
        ph,
        jnp.pad(p["w_head2"].T, ((0, 7), (0, 0))),
    ]
    w_slab = jnp.concatenate(
        [jnp.pad(b.astype(jnp.float32), ((0, 0), (0, SLAB_COLS - b.shape[1])))
         for b in blocks], axis=0)
    assert w_slab.shape == (R_TOTAL, SLAB_COLS), w_slab.shape

    def tile_tok(b):
        return jnp.tile(jnp.reshape(b, (-1,)), SEQ)

    def col_pad(b):
        b = jnp.reshape(b, (-1,))
        return jnp.pad(b, (0, F - b.shape[0]))

    cols = [
        tile_tok(p["bq"]), tile_tok(p["bk"]), tile_tok(p["bv"]), tile_tok(p["bo"]),
        tile_tok(p["ln1_g"]), tile_tok(p["ln1_b"]),
        tile_tok(p["b_ff1"]), tile_tok(p["b_ff2"]),
        tile_tok(p["ln2_g"]), tile_tok(p["ln2_b"]),
        col_pad(p["b_head1"]), col_pad(p["b_head2"]),
    ]
    b_slab = jnp.stack(cols, axis=1).astype(jnp.float32)           # (F, 12)
    b_slab = jnp.pad(b_slab, ((0, 0), (0, BIAS_COLS - b_slab.shape[1])))
    return emb, w_slab, b_slab


def _round_up(x, m):
    return ((x + m - 1) // m) * m


# ======================================================================
# Public forward
# ======================================================================
def cache_replacement_forward(params, cache_pc, prefetch_pc, prefetch_page,
                              prefetch_offset):
    emb_slab, w_slab, b_slab = _pack_params(params)

    ids = jnp.stack([cache_pc, prefetch_pc, prefetch_page, prefetch_offset],
                    axis=0).astype(jnp.int32)                        # (4, B)
    batch = ids.shape[1]
    tile_b = min(512, _round_up(max(batch, 1), 128))
    b_pad = _round_up(batch, tile_b)
    ids = jnp.pad(ids, ((0, 0), (0, b_pad - batch)))
    num_tiles = b_pad // tile_b

    out = pl.pallas_call(
        _kernel,
        out_shape=jax.ShapeDtypeStruct((1, b_pad), jnp.float32),
        grid=(num_tiles,),
        in_specs=[
            pl.BlockSpec((SEQ, tile_b), lambda i: (0, i)),           # ids (lane-major)
            pl.BlockSpec((F, EMB_COLS), lambda i: (0, 0)),           # embedding slab
            pl.BlockSpec((R_TOTAL, SLAB_COLS), lambda i: (0, 0)),    # main weight slab
            pl.BlockSpec((F, BIAS_COLS), lambda i: (0, 0)),          # packed biases
        ],
        out_specs=pl.BlockSpec((1, tile_b), lambda i: (0, i)),       # lane-dense out
        compiler_params=pltpu.CompilerParams(dimension_semantics=("parallel",)),
    )(ids, emb_slab, w_slab, b_slab)

    return out[0, :batch][:, None]                                   # (B, 1)


# ======================================================================
# Pure-JAX reference (same reconstructed math, readable row layout)
# ======================================================================
def _reference_forward(p, cache_pc, prefetch_pc, prefetch_page, prefetch_offset):
    P = jax.lax.Precision.HIGHEST
    x = jnp.stack([p["emb_cache_pc"][cache_pc], p["emb_prefetch_pc"][prefetch_pc],
                   p["emb_page"][prefetch_page], p["emb_offset"][prefetch_offset]],
                  axis=1).astype(jnp.float32)                        # (B, S, H)
    scale = 1.0 / math.sqrt(HEAD_DIM)

    def lin(a, w, b):
        return jnp.einsum("bsh,hd->bsd", a, w, precision=P) + b

    q, k, v = (lin(x, p["wq"], p["bq"]), lin(x, p["wk"], p["bk"]),
               lin(x, p["wv"], p["bv"]))
    B, S, _ = x.shape
    qh = q.reshape(B, S, NUM_HEADS, HEAD_DIM).transpose(0, 2, 1, 3)
    kh = k.reshape(B, S, NUM_HEADS, HEAD_DIM).transpose(0, 2, 1, 3)
    vh = v.reshape(B, S, NUM_HEADS, HEAD_DIM).transpose(0, 2, 1, 3)
    s = jnp.einsum("bhqd,bhkd->bhqk", qh, kh, precision=P) * scale
    probs = jax.nn.softmax(s, axis=-1)
    ctx = jnp.einsum("bhqk,bhkd->bhqd", probs, vh, precision=P)
    ctx = ctx.transpose(0, 2, 1, 3).reshape(B, S, HIDDEN)

    def ln(a, g, b):
        mu = jnp.mean(a, -1, keepdims=True)
        var = jnp.mean((a - mu) ** 2, -1, keepdims=True)
        return (a - mu) * jax.lax.rsqrt(var + LN_EPS) * g + b

    x1 = ln(x + lin(ctx, p["wo"], p["bo"]), p["ln1_g"], p["ln1_b"])
    ff = jnp.maximum(lin(x1, p["w_ff1"], p["b_ff1"]), 0.0)
    x2 = ln(x1 + lin(ff, p["w_ff2"], p["b_ff2"]), p["ln2_g"], p["ln2_b"])
    pooled = jnp.mean(x2, axis=1)
    h1 = jnp.maximum(jnp.dot(pooled, p["w_head1"], precision=P) + p["b_head1"], 0.0)
    return jnp.dot(h1, p["w_head2"], precision=P) + p["b_head2"]     # (B, 1)


# ======================================================================
# Init + demo
# ======================================================================
def init_params(key):
    ks = jax.random.split(key, 20)

    def xavier(k, shape):
        a = math.sqrt(6.0 / (shape[0] + shape[1]))
        return jax.random.uniform(k, shape, jnp.float32, -a, a)

    def bias(k, n):
        return jax.random.uniform(k, (n,), jnp.float32, -0.1, 0.1)

    return {
        "emb_cache_pc": jax.random.normal(ks[0], (NUM_FEATURES, HIDDEN), jnp.float32),
        "emb_prefetch_pc": jax.random.normal(ks[1], (NUM_FEATURES, HIDDEN), jnp.float32),
        "emb_page": jax.random.normal(ks[2], (NUM_FEATURES, HIDDEN), jnp.float32),
        "emb_offset": jax.random.normal(ks[3], (NUM_FEATURES, HIDDEN), jnp.float32),
        "wq": xavier(ks[4], (HIDDEN, HIDDEN)), "bq": bias(ks[5], HIDDEN),
        "wk": xavier(ks[6], (HIDDEN, HIDDEN)), "bk": bias(ks[7], HIDDEN),
        "wv": xavier(ks[8], (HIDDEN, HIDDEN)), "bv": bias(ks[9], HIDDEN),
        "wo": xavier(ks[10], (HIDDEN, HIDDEN)), "bo": bias(ks[11], HIDDEN),
        "ln1_g": jnp.ones((HIDDEN,), jnp.float32),
        "ln1_b": jnp.zeros((HIDDEN,), jnp.float32),
        "w_ff1": xavier(ks[12], (HIDDEN, HIDDEN)), "b_ff1": bias(ks[13], HIDDEN),
        "w_ff2": xavier(ks[14], (HIDDEN, HIDDEN)), "b_ff2": bias(ks[15], HIDDEN),
        "ln2_g": jnp.ones((HIDDEN,), jnp.float32),
        "ln2_b": jnp.zeros((HIDDEN,), jnp.float32),
        "w_head1": xavier(ks[16], (HIDDEN, HIDDEN)), "b_head1": bias(ks[17], HIDDEN),
        "w_head2": xavier(ks[18], (HIDDEN, 1)), "b_head2": bias(ks[19], 1),
    }


if __name__ == "__main__":
    key = jax.random.PRNGKey(0)
    pkey, dkey = jax.random.split(key)
    params = init_params(pkey)

    B = 2
    k1, k2, k3, k4 = jax.random.split(dkey, 4)
    cache_pc = jax.random.randint(k1, (B,), 0, NUM_FEATURES, jnp.int32)
    prefetch_pc = jax.random.randint(k2, (B,), 0, NUM_FEATURES, jnp.int32)
    prefetch_page = jax.random.randint(k3, (B,), 0, NUM_FEATURES, jnp.int32)
    prefetch_offset = jax.random.randint(k4, (B,), 0, NUM_FEATURES, jnp.int32)

    out = cache_replacement_forward(params, cache_pc, prefetch_pc,
                                    prefetch_page, prefetch_offset)
    out = jax.block_until_ready(out)

    ref = _reference_forward(params, cache_pc, prefetch_pc,
                             prefetch_page, prefetch_offset)
    ref = jax.block_until_ready(ref)

    assert out.shape == (B, 1), out.shape
    assert jnp.allclose(out, ref, atol=1e-3, rtol=1e-3), (out, ref)
    print("KERNEL_OK")
</pallas_src>

<mosaic_0001>
module attributes {stable_mosaic.version = 11 : i64} {
  func.func @_kernel(%arg0: i32, %arg1: memref<4x128xi32, #tpu.memory_space<vmem>>, %arg2: memref<128x256xf32, #tpu.memory_space<vmem>>, %arg3: memref<1080x128xf32, #tpu.memory_space<vmem>>, %arg4: memref<128x16xf32, #tpu.memory_space<vmem>>, %arg5: memref<1x128xf32, #tpu.memory_space<vmem>>) attributes {dimension_semantics = [#tpu.dimension_semantics<parallel>], iteration_bounds = array<i64: 1>, scalar_prefetch = 0 : i64, scratch_operands = 0 : i64, tpu.core_type = #tpu.core_type<tc>, window_params = [{transform_indices = @transform_0, window_bounds = array<i64: 4, 128>}, {pipeline_mode = #tpu.pipeline_mode<synchronous>, transform_indices = @transform_1, window_bounds = array<i64: 128, 256>}, {pipeline_mode = #tpu.pipeline_mode<synchronous>, transform_indices = @transform_2, window_bounds = array<i64: 1080, 128>}, {pipeline_mode = #tpu.pipeline_mode<synchronous>, transform_indices = @transform_3, window_bounds = array<i64: 128, 16>}, {transform_indices = @transform_4, window_bounds = array<i64: 1, 128>}]} {
    %0 = tpu.iota {dimensions = array<i32: 0>} : vector<64x128xi32>
    %c0 = arith.constant 0 : index
    %c0_0 = arith.constant 0 : index
    %1 = vector.load %arg1[%c0, %c0_0] : memref<4x128xi32, #tpu.memory_space<vmem>>, vector<1x128xi32>
    %2 = vector.broadcast %1 : vector<1x128xi32> to vector<64x128xi32>
    %3 = arith.cmpi eq, %0, %2 : vector<64x128xi32>
    %4 = arith.extui %3 : vector<64x128xi1> to vector<64x128xi32>
    %5 = arith.sitofp %4 : vector<64x128xi32> to vector<64x128xf32>
    %c1 = arith.constant 1 : index
    %c0_1 = arith.constant 0 : index
    %6 = vector.load %arg1[%c1, %c0_1] : memref<4x128xi32, #tpu.memory_space<vmem>>, vector<1x128xi32>
    %7 = vector.broadcast %6 : vector<1x128xi32> to vector<64x128xi32>
    %8 = arith.cmpi eq, %0, %7 : vector<64x128xi32>
    %9 = arith.extui %8 : vector<64x128xi1> to vector<64x128xi32>
    %10 = arith.sitofp %9 : vector<64x128xi32> to vector<64x128xf32>
    %c2 = arith.constant 2 : index
    %c0_2 = arith.constant 0 : index
    %11 = vector.load %arg1[%c2, %c0_2] : memref<4x128xi32, #tpu.memory_space<vmem>>, vector<1x128xi32>
    %12 = vector.broadcast %11 : vector<1x128xi32> to vector<64x128xi32>
    %13 = arith.cmpi eq, %0, %12 : vector<64x128xi32>
    %14 = arith.extui %13 : vector<64x128xi1> to vector<64x128xi32>
    %15 = arith.sitofp %14 : vector<64x128xi32> to vector<64x128xf32>
    %c3 = arith.constant 3 : index
    %c0_3 = arith.constant 0 : index
    %16 = vector.load %arg1[%c3, %c0_3] : memref<4x128xi32, #tpu.memory_space<vmem>>, vector<1x128xi32>
    %17 = vector.broadcast %16 : vector<1x128xi32> to vector<64x128xi32>
    %18 = arith.cmpi eq, %0, %17 : vector<64x128xi32>
    %19 = arith.extui %18 : vector<64x128xi1> to vector<64x128xi32>
    %20 = arith.sitofp %19 : vector<64x128xi32> to vector<64x128xf32>
    %21 = tpu.concatenate %5, %10, %15, %20 in 0 : vector<64x128xf32>, vector<64x128xf32>, vector<64x128xf32>, vector<64x128xf32> -> vector<256x128xf32>
    %c0_4 = arith.constant 0 : index
    %c0_5 = arith.constant 0 : index
    %22 = vector.load %arg2[%c0_4, %c0_5] : memref<128x256xf32, #tpu.memory_space<vmem>>, vector<128x256xf32>
    %cst = arith.constant dense<0.000000e+00> : vector<128x128xf32>
    %23 = tpu.matmul %22, %21, %cst {dimension_numbers = #tpu.dot_dimension_numbers<[1], [0], [0], [1], [0, 0, 1, 1], [], []>} : vector<128x256xf32>, vector<256x128xf32>, vector<128x128xf32> -> vector<128x128xf32>
    %c0_6 = arith.constant 0 : index
    %c0_7 = arith.constant 0 : index
    %24 = vector.load %arg3[%c0_6, %c0_7] : memref<1080x128xf32, #tpu.memory_space<vmem>>, vector<384x128xf32>
    %cst_8 = arith.constant dense<0.000000e+00> : vector<384x128xf32>
    %25 = tpu.matmul %24, %23, %cst_8 {dimension_numbers = #tpu.dot_dimension_numbers<[1], [0], [0], [1], [0, 0, 1, 1], [], []>} : vector<384x128xf32>, vector<128x128xf32>, vector<384x128xf32> -> vector<384x128xf32>
    %26 = vector.extract_strided_slice %25 {offsets = [0, 0], sizes = [128, 128], strides = [1, 1]} : vector<384x128xf32> to vector<128x128xf32>
    %c0_9 = arith.constant 0 : index
    %c0_10 = arith.constant 0 : index
    %27 = vector.load %arg4[%c0_9, %c0_10] : memref<128x16xf32, #tpu.memory_space<vmem>>, vector<128x1xf32>
    %28 = vector.broadcast %27 : vector<128x1xf32> to vector<128x128xf32>
    %29 = arith.addf %26, %28 : vector<128x128xf32>
    %30 = vector.extract_strided_slice %25 {offsets = [128, 0], sizes = [128, 128], strides = [1, 1]} : vector<384x128xf32> to vector<128x128xf32>
    %c0_11 = arith.constant 0 : index
    %c1_12 = arith.constant 1 : index
    %31 = vector.load %arg4[%c0_11, %c1_12] : memref<128x16xf32, #tpu.memory_space<vmem>>, vector<128x1xf32>
    %32 = vector.broadcast %31 : vector<128x1xf32> to vector<128x128xf32>
    %33 = arith.addf %30, %32 : vector<128x128xf32>
    %34 = vector.extract_strided_slice %25 {offsets = [256, 0], sizes = [128, 128], strides = [1, 1]} : vector<384x128xf32> to vector<128x128xf32>
    %c0_13 = arith.constant 0 : index
    %c2_14 = arith.constant 2 : index
    %35 = vector.load %arg4[%c0_13, %c2_14] : memref<128x16xf32, #tpu.memory_space<vmem>>, vector<128x1xf32>
    %36 = vector.broadcast %35 : vector<128x1xf32> to vector<128x128xf32>
    %37 = arith.addf %34, %36 : vector<128x128xf32>
    %c896 = arith.constant 896 : index
    %c0_15 = arith.constant 0 : index
    %38 = vector.load %arg3[%c896, %c0_15] : memref<1080x128xf32, #tpu.memory_space<vmem>>, vector<16x128xf32>
    %c912 = arith.constant 912 : index
    %c0_16 = arith.constant 0 : index
    %39 = vector.load %arg3[%c912, %c0_16] : memref<1080x128xf32, #tpu.memory_space<vmem>>, vector<128x16xf32>
    %40 = arith.mulf %29, %33 : vector<128x128xf32>
    %cst_17 = arith.constant dense<0.000000e+00> : vector<16x128xf32>
    %41 = tpu.matmul %38, %40, %cst_17 {dimension_numbers = #tpu.dot_dimension_numbers<[1], [0], [0], [1], [0, 0, 1, 1], [], []>} : vector<16x128xf32>, vector<128x128xf32>, vector<16x128xf32> -> vector<16x128xf32>
    %42 = vector.extract_strided_slice %33 {offsets = [32, 0], sizes = [96, 128], strides = [1, 1]} : vector<128x128xf32> to vector<96x128xf32>
    %43 = vector.extract_strided_slice %33 {offsets = [0, 0], sizes = [32, 128], strides = [1, 1]} : vector<128x128xf32> to vector<32x128xf32>
    %44 = tpu.concatenate %42, %43 in 0 : vector<96x128xf32>, vector<32x128xf32> -> vector<128x128xf32>
    %45 = arith.mulf %29, %44 : vector<128x128xf32>
    %cst_18 = arith.constant dense<0.000000e+00> : vector<16x128xf32>
    %46 = tpu.matmul %38, %45, %cst_18 {dimension_numbers = #tpu.dot_dimension_numbers<[1], [0], [0], [1], [0, 0, 1, 1], [], []>} : vector<16x128xf32>, vector<128x128xf32>, vector<16x128xf32> -> vector<16x128xf32>
    %47 = vector.extract_strided_slice %33 {offsets = [64, 0], sizes = [64, 128], strides = [1, 1]} : vector<128x128xf32> to vector<64x128xf32>
    %48 = vector.extract_strided_slice %33 {offsets = [0, 0], sizes = [64, 128], strides = [1, 1]} : vector<128x128xf32> to vector<64x128xf32>
    %49 = tpu.concatenate %47, %48 in 0 : vector<64x128xf32>, vector<64x128xf32> -> vector<128x128xf32>
    %50 = arith.mulf %29, %49 : vector<128x128xf32>
    %cst_19 = arith.constant dense<0.000000e+00> : vector<16x128xf32>
    %51 = tpu.matmul %38, %50, %cst_19 {dimension_numbers = #tpu.dot_dimension_numbers<[1], [0], [0], [1], [0, 0, 1, 1], [], []>} : vector<16x128xf32>, vector<128x128xf32>, vector<16x128xf32> -> vector<16x128xf32>
    %52 = vector.extract_strided_slice %33 {offsets = [96, 0], sizes = [32, 128], strides = [1, 1]} : vector<128x128xf32> to vector<32x128xf32>
    %53 = vector.extract_strided_slice %33 {offsets = [0, 0], sizes = [96, 128], strides = [1, 1]} : vector<128x128xf32> to vector<96x128xf32>
    %54 = tpu.concatenate %52, %53 in 0 : vector<32x128xf32>, vector<96x128xf32> -> vector<128x128xf32>
    %55 = arith.mulf %29, %54 : vector<128x128xf32>
    %cst_20 = arith.constant dense<0.000000e+00> : vector<16x128xf32>
    %56 = tpu.matmul %38, %55, %cst_20 {dimension_numbers = #tpu.dot_dimension_numbers<[1], [0], [0], [1], [0, 0, 1, 1], [], []>} : vector<16x128xf32>, vector<128x128xf32>, vector<16x128xf32> -> vector<16x128xf32>
    %57 = arith.maximumf %41, %46 : vector<16x128xf32>
    %58 = arith.maximumf %57, %51 : vector<16x128xf32>
    %59 = arith.maximumf %58, %56 : vector<16x128xf32>
    %60 = arith.subf %41, %59 : vector<16x128xf32>
    %61 = math.exp %60 : vector<16x128xf32>
    %62 = arith.subf %46, %59 : vector<16x128xf32>
    %63 = math.exp %62 : vector<16x128xf32>
    %64 = arith.subf %51, %59 : vector<16x128xf32>
    %65 = math.exp %64 : vector<16x128xf32>
    %66 = arith.subf %56, %59 : vector<16x128xf32>
    %67 = math.exp %66 : vector<16x128xf32>
    %68 = arith.addf %61, %63 : vector<16x128xf32>
    %69 = arith.addf %68, %65 : vector<16x128xf32>
    %70 = arith.addf %69, %67 : vector<16x128xf32>
    %71 = tpu.reciprocal %70 : vector<16x128xf32> -> vector<16x128xf32>
    %72 = arith.mulf %61, %71 : vector<16x128xf32>
    %cst_21 = arith.constant dense<0.000000e+00> : vector<128x128xf32>
    %73 = tpu.matmul %39, %72, %cst_21 {dimension_numbers = #tpu.dot_dimension_numbers<[1], [0], [0], [1], [0, 0, 1, 1], [], []>} : vector<128x16xf32>, vector<16x128xf32>, vector<128x128xf32> -> vector<128x128xf32>
    %74 = arith.mulf %73, %37 : vector<128x128xf32>
    %75 = arith.mulf %63, %71 : vector<16x128xf32>
    %cst_22 = arith.constant dense<0.000000e+00> : vector<128x128xf32>
    %76 = tpu.matmul %39, %75, %cst_22 {dimension_numbers = #tpu.dot_dimension_numbers<[1], [0], [0], [1], [0, 0, 1, 1], [], []>} : vector<128x16xf32>, vector<16x128xf32>, vector<128x128xf32> -> vector<128x128xf32>
    %77 = vector.extract_strided_slice %37 {offsets = [32, 0], sizes = [96, 128], strides = [1, 1]} : vector<128x128xf32> to vector<96x128xf32>
    %78 = vector.extract_strided_slice %37 {offsets = [0, 0], sizes = [32, 128], strides = [1, 1]} : vector<128x128xf32> to vector<32x128xf32>
    %79 = tpu.concatenate %77, %78 in 0 : vector<96x128xf32>, vector<32x128xf32> -> vector<128x128xf32>
    %80 = arith.mulf %76, %79 : vector<128x128xf32>
    %81 = arith.addf %74, %80 : vector<128x128xf32>
    %82 = arith.mulf %65, %71 : vector<16x128xf32>
    %cst_23 = arith.constant dense<0.000000e+00> : vector<128x128xf32>
    %83 = tpu.matmul %39, %82, %cst_23 {dimension_numbers = #tpu.dot_dimension_numbers<[1], [0], [0], [1], [0, 0, 1, 1], [], []>} : vector<128x16xf32>, vector<16x128xf32>, vector<128x128xf32> -> vector<128x128xf32>
    %84 = vector.extract_strided_slice %37 {offsets = [64, 0], sizes = [64, 128], strides = [1, 1]} : vector<128x128xf32> to vector<64x128xf32>
    %85 = vector.extract_strided_slice %37 {offsets = [0, 0], sizes = [64, 128], strides = [1, 1]} : vector<128x128xf32> to vector<64x128xf32>
    %86 = tpu.concatenate %84, %85 in 0 : vector<64x128xf32>, vector<64x128xf32> -> vector<128x128xf32>
    %87 = arith.mulf %83, %86 : vector<128x128xf32>
    %88 = arith.addf %81, %87 : vector<128x128xf32>
    %89 = arith.mulf %67, %71 : vector<16x128xf32>
    %cst_24 = arith.constant dense<0.000000e+00> : vector<128x128xf32>
    %90 = tpu.matmul %39, %89, %cst_24 {dimension_numbers = #tpu.dot_dimension_numbers<[1], [0], [0], [1], [0, 0, 1, 1], [], []>} : vector<128x16xf32>, vector<16x128xf32>, vector<128x128xf32> -> vector<128x128xf32>
    %91 = vector.extract_strided_slice %37 {offsets = [96, 0], sizes = [32, 128], strides = [1, 1]} : vector<128x128xf32> to vector<32x128xf32>
    %92 = vector.extract_strided_slice %37 {offsets = [0, 0], sizes = [96, 128], strides = [1, 1]} : vector<128x128xf32> to vector<96x128xf32>
    %93 = tpu.concatenate %91, %92 in 0 : vector<32x128xf32>, vector<96x128xf32> -> vector<128x128xf32>
    %94 = arith.mulf %90, %93 : vector<128x128xf32>
    %95 = arith.addf %88, %94 : vector<128x128xf32>
    %c384 = arith.constant 384 : index
    %c0_25 = arith.constant 0 : index
    %96 = vector.load %arg3[%c384, %c0_25] : memref<1080x128xf32, #tpu.memory_space<vmem>>, vector<128x128xf32>
    %cst_26 = arith.constant dense<0.000000e+00> : vector<128x128xf32>
    %97 = tpu.matmul %96, %95, %cst_26 {dimension_numbers = #tpu.dot_dimension_numbers<[1], [0], [0], [1], [0, 0, 1, 1], [], []>} : vector<128x128xf32>, vector<128x128xf32>, vector<128x128xf32> -> vector<128x128xf32>
    %c0_27 = arith.constant 0 : index
    %c3_28 = arith.constant 3 : index
    %98 = vector.load %arg4[%c0_27, %c3_28] : memref<128x16xf32, #tpu.memory_space<vmem>>, vector<128x1xf32>
    %99 = vector.broadcast %98 : vector<128x1xf32> to vector<128x128xf32>
    %100 = arith.addf %97, %99 : vector<128x128xf32>
    %c768 = arith.constant 768 : index
    %c0_29 = arith.constant 0 : index
    %101 = vector.load %arg3[%c768, %c0_29] : memref<1080x128xf32, #tpu.memory_space<vmem>>, vector<128x128xf32>
    %102 = arith.addf %23, %100 : vector<128x128xf32>
    %c0_30 = arith.constant 0 : index
    %c4 = arith.constant 4 : index
    %103 = vector.load %arg4[%c0_30, %c4] : memref<128x16xf32, #tpu.memory_space<vmem>>, vector<128x1xf32>
    %c0_31 = arith.constant 0 : index
    %c5 = arith.constant 5 : index
    %104 = vector.load %arg4[%c0_31, %c5] : memref<128x16xf32, #tpu.memory_space<vmem>>, vector<128x1xf32>
    %cst_32 = arith.constant dense<0.000000e+00> : vector<128x128xf32>
    %105 = tpu.matmul %101, %102, %cst_32 {dimension_numbers = #tpu.dot_dimension_numbers<[1], [0], [0], [1], [0, 0, 1, 1], [], []>} : vector<128x128xf32>, vector<128x128xf32>, vector<128x128xf32> -> vector<128x128xf32>
    %106 = arith.subf %102, %105 : vector<128x128xf32>
    %107 = arith.subf %102, %105 : vector<128x128xf32>
    %108 = arith.mulf %106, %107 : vector<128x128xf32>
    %cst_33 = arith.constant dense<0.000000e+00> : vector<128x128xf32>
    %109 = tpu.matmul %101, %108, %cst_33 {dimension_numbers = #tpu.dot_dimension_numbers<[1], [0], [0], [1], [0, 0, 1, 1], [], []>} : vector<128x128xf32>, vector<128x128xf32>, vector<128x128xf32> -> vector<128x128xf32>
    %110 = arith.subf %102, %105 : vector<128x128xf32>
    %cst_34 = arith.constant 9.99999974E-6 : f32
    %111 = vector.broadcast %cst_34 : f32 to vector<128x128xf32>
    %112 = arith.addf %109, %111 : vector<128x128xf32>
    %113 = math.rsqrt %112 : vector<128x128xf32>
    %114 = arith.mulf %110, %113 : vector<128x128xf32>
    %115 = vector.broadcast %103 : vector<128x1xf32> to vector<128x128xf32>
    %116 = arith.mulf %114, %115 : vector<128x128xf32>
    %117 = vector.broadcast %104 : vector<128x1xf32> to vector<128x128xf32>
    %118 = arith.addf %116, %117 : vector<128x128xf32>
    %c512 = arith.constant 512 : index
    %c0_35 = arith.constant 0 : index
    %119 = vector.load %arg3[%c512, %c0_35] : memref<1080x128xf32, #tpu.memory_space<vmem>>, vector<128x128xf32>
    %cst_36 = arith.constant dense<0.000000e+00> : vector<128x128xf32>
    %120 = tpu.matmul %119, %118, %cst_36 {dimension_numbers = #tpu.dot_dimension_numbers<[1], [0], [0], [1], [0, 0, 1, 1], [], []>} : vector<128x128xf32>, vector<128x128xf32>, vector<128x128xf32> -> vector<128x128xf32>
    %c0_37 = arith.constant 0 : index
    %c6 = arith.constant 6 : index
    %121 = vector.load %arg4[%c0_37, %c6] : memref<128x16xf32, #tpu.memory_space<vmem>>, vector<128x1xf32>
    %122 = vector.broadcast %121 : vector<128x1xf32> to vector<128x128xf32>
    %123 = arith.addf %120, %122 : vector<128x128xf32>
    %cst_38 = arith.constant 0.000000e+00 : f32
    %124 = vector.broadcast %cst_38 : f32 to vector<128x128xf32>
    %125 = arith.maximumf %123, %124 : vector<128x128xf32>
    %c640 = arith.constant 640 : index
    %c0_39 = arith.constant 0 : index
    %126 = vector.load %arg3[%c640, %c0_39] : memref<1080x128xf32, #tpu.memory_space<vmem>>, vector<128x128xf32>
    %cst_40 = arith.constant dense<0.000000e+00> : vector<128x128xf32>
    %127 = tpu.matmul %126, %125, %cst_40 {dimension_numbers = #tpu.dot_dimension_numbers<[1], [0], [0], [1], [0, 0, 1, 1], [], []>} : vector<128x128xf32>, vector<128x128xf32>, vector<128x128xf32> -> vector<128x128xf32>
    %c0_41 = arith.constant 0 : index
    %c7 = arith.constant 7 : index
    %128 = vector.load %arg4[%c0_41, %c7] : memref<128x16xf32, #tpu.memory_space<vmem>>, vector<128x1xf32>
    %129 = vector.broadcast %128 : vector<128x1xf32> to vector<128x128xf32>
    %130 = arith.addf %127, %129 : vector<128x128xf32>
    %131 = arith.addf %118, %130 : vector<128x128xf32>
    %c0_42 = arith.constant 0 : index
    %c8 = arith.constant 8 : index
    %132 = vector.load %arg4[%c0_42, %c8] : memref<128x16xf32, #tpu.memory_space<vmem>>, vector<128x1xf32>
    %c0_43 = arith.constant 0 : index
    %c9 = arith.constant 9 : index
    %133 = vector.load %arg4[%c0_43, %c9] : memref<128x16xf32, #tpu.memory_space<vmem>>, vector<128x1xf32>
    %cst_44 = arith.constant dense<0.000000e+00> : vector<128x128xf32>
    %134 = tpu.matmul %101, %131, %cst_44 {dimension_numbers = #tpu.dot_dimension_numbers<[1], [0], [0], [1], [0, 0, 1, 1], [], []>} : vector<128x128xf32>, vector<128x128xf32>, vector<128x128xf32> -> vector<128x128xf32>
    %135 = arith.subf %131, %134 : vector<128x128xf32>
    %136 = arith.subf %131, %134 : vector<128x128xf32>
    %137 = arith.mulf %135, %136 : vector<128x128xf32>
    %cst_45 = arith.constant dense<0.000000e+00> : vector<128x128xf32>
    %138 = tpu.matmul %101, %137, %cst_45 {dimension_numbers = #tpu.dot_dimension_numbers<[1], [0], [0], [1], [0, 0, 1, 1], [], []>} : vector<128x128xf32>, vector<128x128xf32>, vector<128x128xf32> -> vector<128x128xf32>
    %139 = arith.subf %131, %134 : vector<128x128xf32>
    %cst_46 = arith.constant 9.99999974E-6 : f32
    %140 = vector.broadcast %cst_46 : f32 to vector<128x128xf32>
    %141 = arith.addf %138, %140 : vector<128x128xf32>
    %142 = math.rsqrt %141 : vector<128x128xf32>
    %143 = arith.mulf %139, %142 : vector<128x128xf32>
    %144 = vector.broadcast %132 : vector<128x1xf32> to vector<128x128xf32>
    %145 = arith.mulf %143, %144 : vector<128x128xf32>
    %146 = vector.broadcast %133 : vector<128x1xf32> to vector<128x128xf32>
    %147 = arith.addf %145, %146 : vector<128x128xf32>
    %c1040 = arith.constant 1040 : index
    %c0_47 = arith.constant 0 : index
    %148 = vector.load %arg3[%c1040, %c0_47] : memref<1080x128xf32, #tpu.memory_space<vmem>>, vector<32x128xf32>
    %cst_48 = arith.constant dense<0.000000e+00> : vector<32x128xf32>
    %149 = tpu.matmul %148, %147, %cst_48 {dimension_numbers = #tpu.dot_dimension_numbers<[1], [0], [0], [1], [0, 0, 1, 1], [], []>} : vector<32x128xf32>, vector<128x128xf32>, vector<32x128xf32> -> vector<32x128xf32>
    %c0_49 = arith.constant 0 : index
    %c10 = arith.constant 10 : index
    %150 = vector.load %arg4[%c0_49, %c10] : memref<128x16xf32, #tpu.memory_space<vmem>>, vector<32x1xf32>
    %151 = vector.broadcast %150 : vector<32x1xf32> to vector<32x128xf32>
    %152 = arith.addf %149, %151 : vector<32x128xf32>
    %cst_50 = arith.constant 0.000000e+00 : f32
    %153 = vector.broadcast %cst_50 : f32 to vector<32x128xf32>
    %154 = arith.maximumf %152, %153 : vector<32x128xf32>
    %c1072 = arith.constant 1072 : index
    %c0_51 = arith.constant 0 : index
    %155 = vector.load %arg3[%c1072, %c0_51] : memref<1080x128xf32, #tpu.memory_space<vmem>>, vector<8x32xf32>
    %cst_52 = arith.constant dense<0.000000e+00> : vector<8x128xf32>
    %156 = tpu.matmul %155, %154, %cst_52 {dimension_numbers = #tpu.dot_dimension_numbers<[1], [0], [0], [1], [0, 0, 1, 1], [], []>} : vector<8x32xf32>, vector<32x128xf32>, vector<8x128xf32> -> vector<8x128xf32>
    %157 = vector.extract_strided_slice %156 {offsets = [0, 0], sizes = [1, 128], strides = [1, 1]} : vector<8x128xf32> to vector<1x128xf32>
    %c0_53 = arith.constant 0 : index
    %c11 = arith.constant 11 : index
    %158 = vector.load %arg4[%c0_53, %c11] : memref<128x16xf32, #tpu.memory_space<vmem>>, vector<1x1xf32>
    %159 = vector.broadcast %158 : vector<1x1xf32> to vector<1x128xf32>
    %160 = arith.addf %157, %159 : vector<1x128xf32>
    %c0_54 = arith.constant 0 : index
    %c0_55 = arith.constant 0 : index
    %161 = vector.load %arg5[%c0_54, %c0_55] : memref<1x128xf32, #tpu.memory_space<vmem>>, vector<1x128xf32>
    tpu.vector_store %arg5[%c0_54, %c0_55], %160 {strides = array<i32>} : memref<1x128xf32, #tpu.memory_space<vmem>>, vector<1x128xf32>,
    return
  }
  func.func @transform_0(%arg0: i32) -> (i32, i32) {
    %c0_i32 = arith.constant 0 : i32
    %c0_i32_0 = arith.constant 0 : i32
    return %c0_i32, %arg0 : i32, i32
  }
  func.func @transform_1(%arg0: i32) -> (i32, i32) {
    %c0_i32 = arith.constant 0 : i32
    %c0_i32_0 = arith.constant 0 : i32
    %c0_i32_1 = arith.constant 0 : i32
    return %c0_i32, %c0_i32_0 : i32, i32
  }
  func.func @transform_2(%arg0: i32) -> (i32, i32) {
    %c0_i32 = arith.constant 0 : i32
    %c0_i32_0 = arith.constant 0 : i32
    %c0_i32_1 = arith.constant 0 : i32
    return %c0_i32, %c0_i32_0 : i32, i32
  }
  func.func @transform_3(%arg0: i32) -> (i32, i32) {
    %c0_i32 = arith.constant 0 : i32
    %c0_i32_0 = arith.constant 0 : i32
    %c0_i32_1 = arith.constant 0 : i32
    return %c0_i32, %c0_i32_0 : i32, i32
  }
  func.func @transform_4(%arg0: i32) -> (i32, i32) {
    %c0_i32 = arith.constant 0 : i32
    %c0_i32_0 = arith.constant 0 : i32
    return %c0_i32, %arg0 : i32, i32
  }
}

</mosaic_0001>

<llo_original>
// kernel: tpu_custom_call.1
$region0: #{tpu_custom_call.1}
  #allocation0 [shape = 'u32[]', space=smem, size = 0x4, offset = 0x4, fixed_abs, tag = 'smem constant byte address 0x4 - core index']
  #allocation1 [shape = 'u32[72,128]{1,0:T(1,128)}', space=vmem, size = 0x9000, scoped, tag = 'internal scratch']
  %s0 = inlined_call_operand.vmem [shape: s32[4,128], index: 0, kind: input, shape index: {}]
  %s1 = inlined_call_operand.hbm [shape: f32[128,256], index: 1, kind: input, shape index: {}]
  %s2 = inlined_call_operand.hbm [shape: f32[1080,128], index: 2, kind: input, shape index: {}]
  %s3 = inlined_call_operand.vmem [shape: f32[128,16], index: 3, kind: input, shape index: {}]
  %s4 = inlined_call_operand.hbm [shape: f32[1,128], index: 4, kind: output, shape index: {}]
  %s5 = sld [smem:[#allocation0]]
  $region34: #{tpu_custom_call.1} parent=0
    _
  %s7 = ssub.s32 1, %s5
  %s8 = scalar_select 0, %s7, %s5
  $region1: #{tpu_custom_call.1} parent=0
    #allocation2 [shape = 'u8[131072]{0}', space=vmem, size = 0x20000, scoped, tag = 'input window, operand 1, single buffered']
    #allocation3 [shape = 's32[1]{0}', space=sflag, size = 0x4, scoped, tag = 'scoped memory for tpu_custom_call.1']
    #allocation4 [shape = 's32[1]{0}', space=sflag, size = 0x4, scoped, tag = 'scoped memory for tpu_custom_call.1']
    #allocation5 [shape = 'u8[552960]{0}', space=vmem, size = 0x87000, scoped, tag = 'input window, operand 2, single buffered']
    #allocation6 [shape = 's32[1]{0}', space=sflag, size = 0x4, scoped, tag = 'scoped memory for tpu_custom_call.1']
    #allocation7 [shape = 'u8[512]{0}', space=vmem, size = 0x400, scoped, tag = 'output window, operand 0, single buffered']
    %9 = vsyncpa [#allocation3], 0
    %10 = vsyncpa [#allocation6], 0
    %11 = vsyncpa [#allocation4], 0
    // Predicated region
    $region2: #{tpu_custom_call.1} parent=1 // pred_check
      _
    $region3: #{tpu_custom_call.1} parent=1 // pred_check_branch
      %13 = sbr.rel (0) target = $region5
    $region4: #{tpu_custom_call.1} parent=1 // pred_region
      _
    $region5: #{tpu_custom_call.1} parent=1 // pred_fallthru
      _
    // Predicated region
    $region6: #{tpu_custom_call.1} parent=1 // pred_check
      _
    $region7: #{tpu_custom_call.1} parent=1 // pred_check_branch
      %15 = sbr.rel (0) target = $region9
    $region8: #{tpu_custom_call.1} parent=1 // pred_region
      %17 = vsyncadd [#allocation3], 0
      %s18 = sshll.u32 %s1, 4
      %s19 = int_to_ptr.hbm [resolvable:$true] %s18
      %s20 = sshll.u32 [#allocation2], 4
      %s21 = int_to_ptr.vmem [resolvable:$true] %s20
      %26 = dma.hbm_to_vmem [thread:$0]  %s19, 4096, %s21, [#allocation3], 256, 256, 16
    $region9: #{tpu_custom_call.1} parent=1 // pred_fallthru
      _
    // Predicated region
    $region10: #{tpu_custom_call.1} parent=1 // pred_check
      _
    $region11: #{tpu_custom_call.1} parent=1 // pred_check_branch
      %28 = sbr.rel (0) target = $region13
    $region12: #{tpu_custom_call.1} parent=1 // pred_region
      %30 = vsyncadd [#allocation6], 0
      %s31 = sshll.u32 %s2, 4
      %s32 = int_to_ptr.hbm [resolvable:$true] %s31
      %s33 = sshll.u32 [#allocation5], 4
      %s34 = int_to_ptr.vmem [resolvable:$true] %s33
      %39 = dma.hbm_to_vmem [thread:$0]  %s32, 17280, %s34, [#allocation6], 128, 128, 8
    $region13: #{tpu_custom_call.1} parent=1 // pred_fallthru
      _
    // Predicated region
    $region14: #{tpu_custom_call.1} parent=1 // pred_check
      _
    $region15: #{tpu_custom_call.1} parent=1 // pred_check_branch
      %41 = sbr.rel (0) target = $region17
    $region16: #{tpu_custom_call.1} parent=1 // pred_region
      _
    $region17: #{tpu_custom_call.1} parent=1 // pred_fallthru
      _
    // Predicated region
    $region18: #{tpu_custom_call.1} parent=1 // pred_check
      _
    $region19: #{tpu_custom_call.1} parent=1 // pred_check_branch
      %43 = sbr.rel (0) target = $region21
    $region20: #{tpu_custom_call.1} parent=1 // pred_region
      %45 = dma.done [#allocation3], 4096
    $region21: #{tpu_custom_call.1} parent=1 // pred_fallthru
      _
    // Predicated region
    $region22: #{tpu_custom_call.1} parent=1 // pred_check
      _
    $region23: #{tpu_custom_call.1} parent=1 // pred_check_branch
      %47 = sbr.rel (0) target = $region25
    $region24: #{tpu_custom_call.1} parent=1 // pred_region
      %49 = dma.done [#allocation6], 17280
    $region25: #{tpu_custom_call.1} parent=1 // pred_fallthru
      _
    %v50 = vlaneseq
    %v51 = vshrl.u32 %v50, 7
    %v52 = vadd.s32 %v51, 8
    %v53 = vadd.s32 %v51, 16
    %v54 = vadd.s32 %v51, 24
    %v55 = vadd.s32 %v51, 32
    %v56 = vadd.s32 %v51, 40
    %v57 = vadd.s32 %v51, 48
    %v58 = vadd.s32 %v51, 56
    %v59 = vld [vmem:[%s0] sm:$0x1]
    %v60 = vperm.slane %v59, 0
    %vm61 = vcmp.eq.s32.totalorder %v51, %v60
    %vm62 = vcmp.eq.s32.totalorder %v52, %v60
    %vm63 = vcmp.eq.s32.totalorder %v53, %v60
    %vm64 = vcmp.eq.s32.totalorder %v54, %v60
    %vm65 = vcmp.eq.s32.totalorder %v55, %v60
    %vm66 = vcmp.eq.s32.totalorder %v56, %v60
    %vm67 = vcmp.eq.s32.totalorder %v57, %v60
    %vm68 = vcmp.eq.s32.totalorder %v58, %v60
    %v69 = vsel %vm61, 1, 0
    %v70 = vsel %vm62, 1, 0
    %v71 = vsel %vm63, 1, 0
    %v72 = vsel %vm64, 1, 0
    %v73 = vsel %vm65, 1, 0
    %v74 = vsel %vm66, 1, 0
    %v75 = vsel %vm67, 1, 0
    %v76 = vsel %vm68, 1, 0
    %v77 = vcvt.s32.f32 %v69
    %v78 = vcvt.s32.f32 %v70
    %v79 = vcvt.s32.f32 %v71
    %v80 = vcvt.s32.f32 %v72
    %v81 = vcvt.s32.f32 %v73
    %v82 = vcvt.s32.f32 %v74
    %v83 = vcvt.s32.f32 %v75
    %v84 = vcvt.s32.f32 %v76
    %v85 = vld [vmem:[%s0 + $0x1] sm:$0x1]
    %v86 = vperm.slane %v85, 0
    %vm87 = vcmp.eq.s32.totalorder %v51, %v86
    %vm88 = vcmp.eq.s32.totalorder %v52, %v86
    %vm89 = vcmp.eq.s32.totalorder %v53, %v86
    %vm90 = vcmp.eq.s32.totalorder %v54, %v86
    %vm91 = vcmp.eq.s32.totalorder %v55, %v86
    %vm92 = vcmp.eq.s32.totalorder %v56, %v86
    %vm93 = vcmp.eq.s32.totalorder %v57, %v86
    %vm94 = vcmp.eq.s32.totalorder %v58, %v86
    %v95 = vsel %vm87, 1, 0
    %v96 = vsel %vm88, 1, 0
    %v97 = vsel %vm89, 1, 0
    %v98 = vsel %vm90, 1, 0
    %v99 = vsel %vm91, 1, 0
    %v100 = vsel %vm92, 1, 0
    %v101 = vsel %vm93, 1, 0
    %v102 = vsel %vm94, 1, 0
    %v103 = vcvt.s32.f32 %v95
    %v104 = vcvt.s32.f32 %v96
    %v105 = vcvt.s32.f32 %v97
    %v106 = vcvt.s32.f32 %v98
    %v107 = vcvt.s32.f32 %v99
    %v108 = vcvt.s32.f32 %v100
    %v109 = vcvt.s32.f32 %v101
    %v110 = vcvt.s32.f32 %v102
    %v111 = vld [vmem:[%s0 + $0x2] sm:$0x1]
    %v112 = vperm.slane %v111, 0
    %vm113 = vcmp.eq.s32.totalorder %v51, %v112
    %vm114 = vcmp.eq.s32.totalorder %v52, %v112
    %vm115 = vcmp.eq.s32.totalorder %v53, %v112
    %vm116 = vcmp.eq.s32.totalorder %v54, %v112
    %vm117 = vcmp.eq.s32.totalorder %v55, %v112
    %vm118 = vcmp.eq.s32.totalorder %v56, %v112
    %vm119 = vcmp.eq.s32.totalorder %v57, %v112
    %vm120 = vcmp.eq.s32.totalorder %v58, %v112
    %v121 = vsel %vm113, 1, 0
    %v122 = vsel %vm114, 1, 0
    %v123 = vsel %vm115, 1, 0
    %v124 = vsel %vm116, 1, 0
    %v125 = vsel %vm117, 1, 0
    %v126 = vsel %vm118, 1, 0
    %v127 = vsel %vm119, 1, 0
    %v128 = vsel %vm120, 1, 0
    %v129 = vcvt.s32.f32 %v121
    %v130 = vcvt.s32.f32 %v122
    %v131 = vcvt.s32.f32 %v123
    %v132 = vcvt.s32.f32 %v124
    %v133 = vcvt.s32.f32 %v125
    %v134 = vcvt.s32.f32 %v126
    %v135 = vcvt.s32.f32 %v127
    %v136 = vcvt.s32.f32 %v128
    %v137 = vld [vmem:[%s0 + $0x3] sm:$0x1]
    %v138 = vperm.slane %v137, 0
    %vm139 = vcmp.eq.s32.totalorder %v51, %v138
    %vm140 = vcmp.eq.s32.totalorder %v52, %v138
    %vm141 = vcmp.eq.s32.totalorder %v53, %v138
    %vm142 = vcmp.eq.s32.totalorder %v54, %v138
    %vm143 = vcmp.eq.s32.totalorder %v55, %v138
    %vm144 = vcmp.eq.s32.totalorder %v56, %v138
    %vm145 = vcmp.eq.s32.totalorder %v57, %v138
    %vm146 = vcmp.eq.s32.totalorder %v58, %v138
    %v147 = vsel %vm139, 1, 0
    %v148 = vsel %vm140, 1, 0
    %v149 = vsel %vm141, 1, 0
    %v150 = vsel %vm142, 1, 0
    %v151 = vsel %vm143, 1, 0
    %v152 = vsel %vm144, 1, 0
    %v153 = vsel %vm145, 1, 0
    %v154 = vsel %vm146, 1, 0
    %v155 = vcvt.s32.f32 %v147
    %v156 = vcvt.s32.f32 %v148
    %v157 = vcvt.s32.f32 %v149
    %v158 = vcvt.s32.f32 %v150
    %v159 = vcvt.s32.f32 %v151
    %v160 = vcvt.s32.f32 %v152
    %v161 = vcvt.s32.f32 %v153
    %v162 = vcvt.s32.f32 %v154
    %v163 = vld [vmem:[#allocation2] sm:$0xff]
    %v164 = vld [vmem:[#allocation2 + $0x8] sm:$0xff]
    %v165 = vld [vmem:[#allocation2 + $0x10] sm:$0xff]
    %v166 = vld [vmem:[#allocation2 + $0x18] sm:$0xff]
    %v167 = vld [vmem:[#allocation2 + $0x20] sm:$0xff]
    %v168 = vld [vmem:[#allocation2 + $0x28] sm:$0xff]
    %v169 = vld [vmem:[#allocation2 + $0x30] sm:$0xff]
    %v170 = vld [vmem:[#allocation2 + $0x38] sm:$0xff]
    %v171 = vld [vmem:[#allocation2 + $0x40] sm:$0xff]
    %v172 = vld [vmem:[#allocation2 + $0x48] sm:$0xff]
    %v173 = vld [vmem:[#allocation2 + $0x50] sm:$0xff]
    %v174 = vld [vmem:[#allocation2 + $0x58] sm:$0xff]
    %v175 = vld [vmem:[#allocation2 + $0x60] sm:$0xff]
    %v176 = vld [vmem:[#allocation2 + $0x68] sm:$0xff]
    %v177 = vld [vmem:[#allocation2 + $0x70] sm:$0xff]
    %v178 = vld [vmem:[#allocation2 + $0x78] sm:$0xff]
    %v179 = vld [vmem:[#allocation2 + $0x80] sm:$0xff]
    %v180 = vld [vmem:[#allocation2 + $0x88] sm:$0xff]
    %v181 = vld [vmem:[#allocation2 + $0x90] sm:$0xff]
    %v182 = vld [vmem:[#allocation2 + $0x98] sm:$0xff]
    %v183 = vld [vmem:[#allocation2 + $0xa0] sm:$0xff]
    %v184 = vld [vmem:[#allocation2 + $0xa8] sm:$0xff]
    %v185 = vld [vmem:[#allocation2 + $0xb0] sm:$0xff]
    %v186 = vld [vmem:[#allocation2 + $0xb8] sm:$0xff]
    %v187 = vld [vmem:[#allocation2 + $0xc0] sm:$0xff]
    %v188 = vld [vmem:[#allocation2 + $0xc8] sm:$0xff]
    %v189 = vld [vmem:[#allocation2 + $0xd0] sm:$0xff]
    %v190 = vld [vmem:[#allocation2 + $0xd8] sm:$0xff]
    %v191 = vld [vmem:[#allocation2 + $0xe0] sm:$0xff]
    %v192 = vld [vmem:[#allocation2 + $0xe8] sm:$0xff]
    %v193 = vld [vmem:[#allocation2 + $0xf0] sm:$0xff]
    %v194 = vld [vmem:[#allocation2 + $0xf8] sm:$0xff]
    %195 = vmatpush.msra.mxu0 %v110
    %196 = vmatpush.msra.mxu0 %v109
    %197 = vmatpush.msra.mxu0 %v108
    %198 = vmatpush.msra.mxu0 %v107
    %199 = vmatpush.msra.mxu0 %v106
    %200 = vmatpush.msra.mxu0 %v105
    %201 = vmatpush.msra.mxu0 %v104
    %202 = vmatpush.msra.mxu0 %v103
    %203 = vmatpush.msra.mxu0 %v84
    %204 = vmatpush.msra.mxu0 %v83
    %205 = vmatpush.msra.mxu0 %v82
    %206 = vmatpush.msra.mxu0 %v81
    %207 = vmatpush.msra.mxu0 %v80
    %208 = vmatpush.msra.mxu0 %v79
    %209 = vmatpush.msra.mxu0 %v78
    %210 = vmatpush.msra.mxu0 %v77
    %211 = vmatmul.f32.gmra.mxu0 %v163
    %v212 = vpop.f32.mrf.mxu0
    %v213 = vadd.f32 0.0, %v212
    %214 = vmatmul.f32.gmra.mxu0 %v165
    %v215 = vpop.f32.mrf.mxu0
    %v216 = vadd.f32 0.0, %v215
    %217 = vmatmul.f32.gmra.mxu0 %v167
    %v218 = vpop.f32.mrf.mxu0
    %v219 = vadd.f32 0.0, %v218
    %220 = vmatmul.f32.gmra.mxu0 %v169
    %v221 = vpop.f32.mrf.mxu0
    %v222 = vadd.f32 0.0, %v221
    %223 = vmatmul.f32.gmra.mxu0 %v171
    %v224 = vpop.f32.mrf.mxu0
    %v225 = vadd.f32 0.0, %v224
    %226 = vmatmul.f32.gmra.mxu0 %v173
    %v227 = vpop.f32.mrf.mxu0
    %v228 = vadd.f32 0.0, %v227
    %229 = vmatmul.f32.gmra.mxu0 %v175
    %v230 = vpop.f32.mrf.mxu0
    %v231 = vadd.f32 0.0, %v230
    %232 = vmatmul.f32.gmra.mxu0 %v177
    %v233 = vpop.f32.mrf.mxu0
    %v234 = vadd.f32 0.0, %v233
    %235 = vmatmul.f32.gmra.mxu0 %v179
    %v236 = vpop.f32.mrf.mxu0
    %v237 = vadd.f32 0.0, %v236
    %238 = vmatmul.f32.gmra.mxu0 %v181
    %v239 = vpop.f32.mrf.mxu0
    %v240 = vadd.f32 0.0, %v239
    %241 = vmatmul.f32.gmra.mxu0 %v183
    %v242 = vpop.f32.mrf.mxu0
    %v243 = vadd.f32 0.0, %v242
    %244 = vmatmul.f32.gmra.mxu0 %v185
    %v245 = vpop.f32.mrf.mxu0
    %v246 = vadd.f32 0.0, %v245
    %247 = vmatmul.f32.gmra.mxu0 %v187
    %v248 = vpop.f32.mrf.mxu0
    %v249 = vadd.f32 0.0, %v248
    %250 = vmatmul.f32.gmra.mxu0 %v189
    %v251 = vpop.f32.mrf.mxu0
    %v252 = vadd.f32 0.0, %v251
    %253 = vmatmul.f32.gmra.mxu0 %v191
    %v254 = vpop.f32.mrf.mxu0
    %v255 = vadd.f32 0.0, %v254
    %256 = vmatmul.f32.gmra.mxu0 %v193
    %v257 = vpop.f32.mrf.mxu0
    %v258 = vadd.f32 0.0, %v257
    %259 = vdwg.mxu0
    %260 = vmatpush.msra.mxu0 %v162
    %261 = vmatpush.msra.mxu0 %v161
    %262 = vmatpush.msra.mxu0 %v160
    %263 = vmatpush.msra.mxu0 %v159
    %264 = vmatpush.msra.mxu0 %v158
    %265 = vmatpush.msra.mxu0 %v157
    %266 = vmatpush.msra.mxu0 %v156
    %267 = vmatpush.msra.mxu0 %v155
    %268 = vmatpush.msra.mxu0 %v136
    %269 = vmatpush.msra.mxu0 %v135
    %270 = vmatpush.msra.mxu0 %v134
    %271 = vmatpush.msra.mxu0 %v133
    %272 = vmatpush.msra.mxu0 %v132
    %273 = vmatpush.msra.mxu0 %v131
    %274 = vmatpush.msra.mxu0 %v130
    %275 = vmatpush.msra.mxu0 %v129
    %276 = vmatmul.f32.gmra.mxu0 %v164
    %v277 = vpop.f32.mrf.mxu0
    %v278 = vadd.f32 %v213, %v277
    %279 = vmatmul.f32.gmra.mxu0 %v166
    %v280 = vpop.f32.mrf.mxu0
    %v281 = vadd.f32 %v216, %v280
    %282 = vmatmul.f32.gmra.mxu0 %v168
    %v283 = vpop.f32.mrf.mxu0
    %v284 = vadd.f32 %v219, %v283
    %285 = vmatmul.f32.gmra.mxu0 %v170
    %v286 = vpop.f32.mrf.mxu0
    %v287 = vadd.f32 %v222, %v286
    %288 = vmatmul.f32.gmra.mxu0 %v172
    %v289 = vpop.f32.mrf.mxu0
    %v290 = vadd.f32 %v225, %v289
    %291 = vmatmul.f32.gmra.mxu0 %v174
    %v292 = vpop.f32.mrf.mxu0
    %v293 = vadd.f32 %v228, %v292
    %294 = vmatmul.f32.gmra.mxu0 %v176
    %v295 = vpop.f32.mrf.mxu0
    %v296 = vadd.f32 %v231, %v295
    %297 = vmatmul.f32.gmra.mxu0 %v178
    %v298 = vpop.f32.mrf.mxu0
    %v299 = vadd.f32 %v234, %v298
    %300 = vmatmul.f32.gmra.mxu0 %v180
    %v301 = vpop.f32.mrf.mxu0
    %v302 = vadd.f32 %v237, %v301
    %303 = vmatmul.f32.gmra.mxu0 %v182
    %v304 = vpop.f32.mrf.mxu0
    %v305 = vadd.f32 %v240, %v304
    %306 = vmatmul.f32.gmra.mxu0 %v184
    %v307 = vpop.f32.mrf.mxu0
    %v308 = vadd.f32 %v243, %v307
    %309 = vmatmul.f32.gmra.mxu0 %v186
    %v310 = vpop.f32.mrf.mxu0
    %v311 = vadd.f32 %v246, %v310
    %312 = vmatmul.f32.gmra.mxu0 %v188
    %v313 = vpop.f32.mrf.mxu0
    %v314 = vadd.f32 %v249, %v313
    %315 = vmatmul.f32.gmra.mxu0 %v190
    %v316 = vpop.f32.mrf.mxu0
    %v317 = vadd.f32 %v252, %v316
    %318 = vmatmul.f32.gmra.mxu0 %v192
    %v319 = vpop.f32.mrf.mxu0
    %v320 = vadd.f32 %v255, %v319
    %321 = vmatmul.f32.gmra.mxu0 %v194
    %v322 = vpop.f32.mrf.mxu0
    %v323 = vadd.f32 %v258, %v322
    %324 = vdwg.mxu0
    %v325 = vld [vmem:[#allocation5] sm:$0xff]
    %v326 = vld [vmem:[#allocation5 + $0x8] sm:$0xff]
    %v327 = vld [vmem:[#allocation5 + $0x10] sm:$0xff]
    %v328 = vld [vmem:[#allocation5 + $0x18] sm:$0xff]
    %v329 = vld [vmem:[#allocation5 + $0x20] sm:$0xff]
    %v330 = vld [vmem:[#allocation5 + $0x28] sm:$0xff]
    %v331 = vld [vmem:[#allocation5 + $0x30] sm:$0xff]
    %v332 = vld [vmem:[#allocation5 + $0x38] sm:$0xff]
    %v333 = vld [vmem:[#allocation5 + $0x40] sm:$0xff]
    %v334 = vld [vmem:[#allocation5 + $0x48] sm:$0xff]
    %v335 = vld [vmem:[#allocation5 + $0x50] sm:$0xff]
    %v336 = vld [vmem:[#allocation5 + $0x58] sm:$0xff]
    %v337 = vld [vmem:[#allocation5 + $0x60] sm:$0xff]
    %v338 = vld [vmem:[#allocation5 + $0x68] sm:$0xff]
    %v339 = vld [vmem:[#allocation5 + $0x70] sm:$0xff]
    %v340 = vld [vmem:[#allocation5 + $0x78] sm:$0xff]
    %v341 = vld [vmem:[#allocation5 + $0x80] sm:$0xff]
    %v342 = vld [vmem:[#allocation5 + $0x88] sm:$0xff]
    %v343 = vld [vmem:[#allocation5 + $0x90] sm:$0xff]
    %v344 = vld [vmem:[#allocation5 + $0x98] sm:$0xff]
    %v345 = vld [vmem:[#allocation5 + $0xa0] sm:$0xff]
    %v346 = vld [vmem:[#allocation5 + $0xa8] sm:$0xff]
    %v347 = vld [vmem:[#allocation5 + $0xb0] sm:$0xff]
    %v348 = vld [vmem:[#allocation5 + $0xb8] sm:$0xff]
    %v349 = vld [vmem:[#allocation5 + $0xc0] sm:$0xff]
    %v350 = vld [vmem:[#allocation5 + $0xc8] sm:$0xff]
    %v351 = vld [vmem:[#allocation5 + $0xd0] sm:$0xff]
    %v352 = vld [vmem:[#allocation5 + $0xd8] sm:$0xff]
    %v353 = vld [vmem:[#allocation5 + $0xe0] sm:$0xff]
    %v354 = vld [vmem:[#allocation5 + $0xe8] sm:$0xff]
    %v355 = vld [vmem:[#allocation5 + $0xf0] sm:$0xff]
    %v356 = vld [vmem:[#allocation5 + $0xf8] sm:$0xff]
    %v357 = vld [vmem:[#allocation5 + $0x100] sm:$0xff]
    %v358 = vld [vmem:[#allocation5 + $0x108] sm:$0xff]
    %v359 = vld [vmem:[#allocation5 + $0x110] sm:$0xff]
    %v360 = vld [vmem:[#allocation5 + $0x118] sm:$0xff]
    %v361 = vld [vmem:[#allocation5 + $0x120] sm:$0xff]
    %v362 = vld [vmem:[#allocation5 + $0x128] sm:$0xff]
    %v363 = vld [vmem:[#allocation5 + $0x130] sm:$0xff]
    %v364 = vld [vmem:[#allocation5 + $0x138] sm:$0xff]
    %v365 = vld [vmem:[#allocation5 + $0x140] sm:$0xff]
    %v366 = vld [vmem:[#allocation5 + $0x148] sm:$0xff]
    %v367 = vld [vmem:[#allocation5 + $0x150] sm:$0xff]
    %v368 = vld [vmem:[#allocation5 + $0x158] sm:$0xff]
    %v369 = vld [vmem:[#allocation5 + $0x160] sm:$0xff]
    %v370 = vld [vmem:[#allocation5 + $0x168] sm:$0xff]
    %v371 = vld [vmem:[#allocation5 + $0x170] sm:$0xff]
    %v372 = vld [vmem:[#allocation5 + $0x178] sm:$0xff]
    %373 = vmatpush.msra.mxu0 %v323
    %374 = vmatpush.msra.mxu0 %v320
    %375 = vmatpush.msra.mxu0 %v317
    %376 = vmatpush.msra.mxu0 %v314
    %377 = vmatpush.msra.mxu0 %v311
    %378 = vmatpush.msra.mxu0 %v308
    %379 = vmatpush.msra.mxu0 %v305
    %380 = vmatpush.msra.mxu0 %v302
    %381 = vmatpush.msra.mxu0 %v299
    %382 = vmatpush.msra.mxu0 %v296
    %383 = vmatpush.msra.mxu0 %v293
    %384 = vmatpush.msra.mxu0 %v290
    %385 = vmatpush.msra.mxu0 %v287
    %386 = vmatpush.msra.mxu0 %v284
    %387 = vmatpush.msra.mxu0 %v281
    %388 = vmatpush.msra.mxu0 %v278
    %389 = vmatmul.f32.gmra.mxu0 %v325
    %v390 = vpop.f32.mrf.mxu0
    %v391 = vadd.f32 0.0, %v390
    %392 = vmatmul.f32.gmra.mxu0 %v326
    %v393 = vpop.f32.mrf.mxu0
    %v394 = vadd.f32 0.0, %v393
    %395 = vmatmul.f32.gmra.mxu0 %v327
    %v396 = vpop.f32.mrf.mxu0
    %v397 = vadd.f32 0.0, %v396
    %398 = vmatmul.f32.gmra.mxu0 %v328
    %v399 = vpop.f32.mrf.mxu0
    %v400 = vadd.f32 0.0, %v399
    %401 = vmatmul.f32.gmra.mxu0 %v329
    %v402 = vpop.f32.mrf.mxu0
    %v403 = vadd.f32 0.0, %v402
    %404 = vmatmul.f32.gmra.mxu0 %v330
    %v405 = vpop.f32.mrf.mxu0
    %v406 = vadd.f32 0.0, %v405
    %407 = vmatmul.f32.gmra.mxu0 %v331
    %v408 = vpop.f32.mrf.mxu0
    %v409 = vadd.f32 0.0, %v408
    %410 = vmatmul.f32.gmra.mxu0 %v332
    %v411 = vpop.f32.mrf.mxu0
    %v412 = vadd.f32 0.0, %v411
    %413 = vmatmul.f32.gmra.mxu0 %v333
    %v414 = vpop.f32.mrf.mxu0
    %v415 = vadd.f32 0.0, %v414
    %416 = vmatmul.f32.gmra.mxu0 %v334
    %v417 = vpop.f32.mrf.mxu0
    %v418 = vadd.f32 0.0, %v417
    %419 = vmatmul.f32.gmra.mxu0 %v335
    %v420 = vpop.f32.mrf.mxu0
    %v421 = vadd.f32 0.0, %v420
    %422 = vmatmul.f32.gmra.mxu0 %v336
    %v423 = vpop.f32.mrf.mxu0
    %v424 = vadd.f32 0.0, %v423
    %425 = vmatmul.f32.gmra.mxu0 %v337
    %v426 = vpop.f32.mrf.mxu0
    %v427 = vadd.f32 0.0, %v426
    %428 = vmatmul.f32.gmra.mxu0 %v338
    %v429 = vpop.f32.mrf.mxu0
    %v430 = vadd.f32 0.0, %v429
    %431 = vmatmul.f32.gmra.mxu0 %v339
    %v432 = vpop.f32.mrf.mxu0
    %v433 = vadd.f32 0.0, %v432
    %434 = vmatmul.f32.gmra.mxu0 %v340
    %v435 = vpop.f32.mrf.mxu0
    %v436 = vadd.f32 0.0, %v435
    %437 = vmatmul.f32.gmra.mxu0 %v341
    %v438 = vpop.f32.mrf.mxu0
    %v439 = vadd.f32 0.0, %v438
    %440 = vmatmul.f32.gmra.mxu0 %v342
    %v441 = vpop.f32.mrf.mxu0
    %v442 = vadd.f32 0.0, %v441
    %443 = vmatmul.f32.gmra.mxu0 %v343
    %v444 = vpop.f32.mrf.mxu0
    %v445 = vadd.f32 0.0, %v444
    %446 = vmatmul.f32.gmra.mxu0 %v344
    %v447 = vpop.f32.mrf.mxu0
    %v448 = vadd.f32 0.0, %v447
    %449 = vmatmul.f32.gmra.mxu0 %v345
    %v450 = vpop.f32.mrf.mxu0
    %v451 = vadd.f32 0.0, %v450
    %452 = vmatmul.f32.gmra.mxu0 %v346
    %v453 = vpop.f32.mrf.mxu0
    %v454 = vadd.f32 0.0, %v453
    %455 = vmatmul.f32.gmra.mxu0 %v347
    %v456 = vpop.f32.mrf.mxu0
    %v457 = vadd.f32 0.0, %v456
    %458 = vmatmul.f32.gmra.mxu0 %v348
    %v459 = vpop.f32.mrf.mxu0
    %v460 = vadd.f32 0.0, %v459
    %461 = vmatmul.f32.gmra.mxu0 %v349
    %v462 = vpop.f32.mrf.mxu0
    %v463 = vadd.f32 0.0, %v462
    %464 = vmatmul.f32.gmra.mxu0 %v350
    %v465 = vpop.f32.mrf.mxu0
    %v466 = vadd.f32 0.0, %v465
    %467 = vmatmul.f32.gmra.mxu0 %v351
    %v468 = vpop.f32.mrf.mxu0
    %v469 = vadd.f32 0.0, %v468
    %470 = vmatmul.f32.gmra.mxu0 %v352
    %v471 = vpop.f32.mrf.mxu0
    %v472 = vadd.f32 0.0, %v471
    %473 = vmatmul.f32.gmra.mxu0 %v353
    %v474 = vpop.f32.mrf.mxu0
    %v475 = vadd.f32 0.0, %v474
    %476 = vmatmul.f32.gmra.mxu0 %v354
    %v477 = vpop.f32.mrf.mxu0
    %v478 = vadd.f32 0.0, %v477
    %479 = vmatmul.f32.gmra.mxu0 %v355
    %v480 = vpop.f32.mrf.mxu0
    %v481 = vadd.f32 0.0, %v480
    %482 = vmatmul.f32.gmra.mxu0 %v356
    %v483 = vpop.f32.mrf.mxu0
    %v484 = vadd.f32 0.0, %v483
    %485 = vmatmul.f32.gmra.mxu0 %v357
    %v486 = vpop.f32.mrf.mxu0
    %v487 = vadd.f32 0.0, %v486
    %488 = vmatmul.f32.gmra.mxu0 %v358
    %v489 = vpop.f32.mrf.mxu0
    %v490 = vadd.f32 0.0, %v489
    %491 = vmatmul.f32.gmra.mxu0 %v359
    %v492 = vpop.f32.mrf.mxu0
    %v493 = vadd.f32 0.0, %v492
    %494 = vmatmul.f32.gmra.mxu0 %v360
    %v495 = vpop.f32.mrf.mxu0
    %v496 = vadd.f32 0.0, %v495
    %497 = vmatmul.f32.gmra.mxu0 %v361
    %v498 = vpop.f32.mrf.mxu0
    %v499 = vadd.f32 0.0, %v498
    %500 = vmatmul.f32.gmra.mxu0 %v362
    %v501 = vpop.f32.mrf.mxu0
    %v502 = vadd.f32 0.0, %v501
    %503 = vmatmul.f32.gmra.mxu0 %v363
    %v504 = vpop.f32.mrf.mxu0
    %v505 = vadd.f32 0.0, %v504
    %506 = vmatmul.f32.gmra.mxu0 %v364
    %v507 = vpop.f32.mrf.mxu0
    %v508 = vadd.f32 0.0, %v507
    %509 = vmatmul.f32.gmra.mxu0 %v365
    %v510 = vpop.f32.mrf.mxu0
    %v511 = vadd.f32 0.0, %v510
    %512 = vmatmul.f32.gmra.mxu0 %v366
    %v513 = vpop.f32.mrf.mxu0
    %v514 = vadd.f32 0.0, %v513
    %515 = vmatmul.f32.gmra.mxu0 %v367
    %v516 = vpop.f32.mrf.mxu0
    %v517 = vadd.f32 0.0, %v516
    %518 = vmatmul.f32.gmra.mxu0 %v368
    %v519 = vpop.f32.mrf.mxu0
    %v520 = vadd.f32 0.0, %v519
    %521 = vmatmul.f32.gmra.mxu0 %v369
    %v522 = vpop.f32.mrf.mxu0
    %v523 = vadd.f32 0.0, %v522
    %524 = vmatmul.f32.gmra.mxu0 %v370
    %v525 = vpop.f32.mrf.mxu0
    %v526 = vadd.f32 0.0, %v525
    %527 = vmatmul.f32.gmra.mxu0 %v371
    %v528 = vpop.f32.mrf.mxu0
    %v529 = vadd.f32 0.0, %v528
    %530 = vmatmul.f32.gmra.mxu0 %v372
    %v531 = vpop.f32.mrf.mxu0
    %v532 = vadd.f32 0.0, %v531
    %533 = vdwg.mxu0
    %v534 = vld [vmem:[%s3] sm:$0xff]
    %v535 = vld [vmem:[%s3 + $0x8] sm:$0xff]
    %v536 = vld [vmem:[%s3 + $0x10] sm:$0xff]
    %v537 = vld [vmem:[%s3 + $0x18] sm:$0xff]
    %v538 = vld [vmem:[%s3 + $0x20] sm:$0xff]
    %v539 = vld [vmem:[%s3 + $0x28] sm:$0xff]
    %v540 = vld [vmem:[%s3 + $0x30] sm:$0xff]
    %v541 = vld [vmem:[%s3 + $0x38] sm:$0xff]
    %v542 = vld [vmem:[%s3 + $0x40] sm:$0xff]
    %v543 = vld [vmem:[%s3 + $0x48] sm:$0xff]
    %v544 = vld [vmem:[%s3 + $0x50] sm:$0xff]
    %v545 = vld [vmem:[%s3 + $0x58] sm:$0xff]
    %v546 = vld [vmem:[%s3 + $0x60] sm:$0xff]
    %v547 = vld [vmem:[%s3 + $0x68] sm:$0xff]
    %v548 = vld [vmem:[%s3 + $0x70] sm:$0xff]
    %v549 = vld [vmem:[%s3 + $0x78] sm:$0xff]
    %551 = vset.pattern.permute.xlu0 0
    %552 = vperm.xlu0 %551, %v534
    %v553 = vpop.permute.xlu0 %552
    %556 = vset.pattern.permute.xlu0 0
    %557 = vperm.xlu0 %556, %v535
    %v558 = vpop.permute.xlu0 %557
    %561 = vset.pattern.permute.xlu0 0
    %562 = vperm.xlu0 %561, %v536
    %v563 = vpop.permute.xlu0 %562
    %566 = vset.pattern.permute.xlu0 0
    %567 = vperm.xlu0 %566, %v537
    %v568 = vpop.permute.xlu0 %567
    %571 = vset.pattern.permute.xlu0 0
    %572 = vperm.xlu0 %571, %v538
    %v573 = vpop.permute.xlu0 %572
    %576 = vset.pattern.permute.xlu0 0
    %577 = vperm.xlu0 %576, %v539
    %v578 = vpop.permute.xlu0 %577
    %581 = vset.pattern.permute.xlu0 0
    %582 = vperm.xlu0 %581, %v540
    %v583 = vpop.permute.xlu0 %582
    %586 = vset.pattern.permute.xlu0 0
    %587 = vperm.xlu0 %586, %v541
    %v588 = vpop.permute.xlu0 %587
    %591 = vset.pattern.permute.xlu0 0
    %592 = vperm.xlu0 %591, %v542
    %v593 = vpop.permute.xlu0 %592
    %596 = vset.pattern.permute.xlu0 0
    %597 = vperm.xlu0 %596, %v543
    %v598 = vpop.permute.xlu0 %597
    %601 = vset.pattern.permute.xlu0 0
    %602 = vperm.xlu0 %601, %v544
    %v603 = vpop.permute.xlu0 %602
    %606 = vset.pattern.permute.xlu0 0
    %607 = vperm.xlu0 %606, %v545
    %v608 = vpop.permute.xlu0 %607
    %611 = vset.pattern.permute.xlu0 0
    %612 = vperm.xlu0 %611, %v546
    %v613 = vpop.permute.xlu0 %612
    %616 = vset.pattern.permute.xlu0 0
    %617 = vperm.xlu0 %616, %v547
    %v618 = vpop.permute.xlu0 %617
    %621 = vset.pattern.permute.xlu0 0
    %622 = vperm.xlu0 %621, %v548
    %v623 = vpop.permute.xlu0 %622
    %626 = vset.pattern.permute.xlu0 0
    %627 = vperm.xlu0 %626, %v549
    %v628 = vpop.permute.xlu0 %627
    %v630 = vadd.f32 %v391, %v553
    %v631 = vadd.f32 %v394, %v558
    %v632 = vadd.f32 %v397, %v563
    %v633 = vadd.f32 %v400, %v568
    %v634 = vadd.f32 %v403, %v573
    %v635 = vadd.f32 %v406, %v578
    %v636 = vadd.f32 %v409, %v583
    %v637 = vadd.f32 %v412, %v588
    %v638 = vadd.f32 %v415, %v593
    %v639 = vadd.f32 %v418, %v598
    %v640 = vadd.f32 %v421, %v603
    %v641 = vadd.f32 %v424, %v608
    %v642 = vadd.f32 %v427, %v613
    %v643 = vadd.f32 %v430, %v618
    %v644 = vadd.f32 %v433, %v623
    %v645 = vadd.f32 %v436, %v628
    %646 = vset.pattern.permute.xlu0 1
    %647 = vperm.xlu0 %646, %v534
    %v648 = vpop.permute.xlu0 %647
    %650 = vset.pattern.permute.xlu0 1
    %651 = vperm.xlu0 %650, %v535
    %v652 = vpop.permute.xlu0 %651
    %654 = vset.pattern.permute.xlu0 1
    %655 = vperm.xlu0 %654, %v536
    %v656 = vpop.permute.xlu0 %655
    %658 = vset.pattern.permute.xlu0 1
    %659 = vperm.xlu0 %658, %v537
    %v660 = vpop.permute.xlu0 %659
    %662 = vset.pattern.permute.xlu0 1
    %663 = vperm.xlu0 %662, %v538
    %v664 = vpop.permute.xlu0 %663
    %666 = vset.pattern.permute.xlu0 1
    %667 = vperm.xlu0 %666, %v539
    %v668 = vpop.permute.xlu0 %667
    %670 = vset.pattern.permute.xlu0 1
    %671 = vperm.xlu0 %670, %v540
    %v672 = vpop.permute.xlu0 %671
    %674 = vset.pattern.permute.xlu0 1
    %675 = vperm.xlu0 %674, %v541
    %v676 = vpop.permute.xlu0 %675
    %678 = vset.pattern.permute.xlu0 1
    %679 = vperm.xlu0 %678, %v542
    %v680 = vpop.permute.xlu0 %679
    %682 = vset.pattern.permute.xlu0 1
    %683 = vperm.xlu0 %682, %v543
    %v684 = vpop.permute.xlu0 %683
    %686 = vset.pattern.permute.xlu0 1
    %687 = vperm.xlu0 %686, %v544
    %v688 = vpop.permute.xlu0 %687
    %690 = vset.pattern.permute.xlu0 1
    %691 = vperm.xlu0 %690, %v545
    %v692 = vpop.permute.xlu0 %691
    %694 = vset.pattern.permute.xlu0 1
    %695 = vperm.xlu0 %694, %v546
    %v696 = vpop.permute.xlu0 %695
    %698 = vset.pattern.permute.xlu0 1
    %699 = vperm.xlu0 %698, %v547
    %v700 = vpop.permute.xlu0 %699
    %702 = vset.pattern.permute.xlu0 1
    %703 = vperm.xlu0 %702, %v548
    %v704 = vpop.permute.xlu0 %703
    %706 = vset.pattern.permute.xlu0 1
    %707 = vperm.xlu0 %706, %v549
    %v708 = vpop.permute.xlu0 %707
    %v710 = vadd.f32 %v439, %v648
    %v711 = vadd.f32 %v442, %v652
    %v712 = vadd.f32 %v445, %v656
    %v713 = vadd.f32 %v448, %v660
    %v714 = vadd.f32 %v451, %v664
    %v715 = vadd.f32 %v454, %v668
    %v716 = vadd.f32 %v457, %v672
    %v717 = vadd.f32 %v460, %v676
    %v718 = vadd.f32 %v463, %v680
    %v719 = vadd.f32 %v466, %v684
    %v720 = vadd.f32 %v469, %v688
    %v721 = vadd.f32 %v472, %v692
    %v722 = vadd.f32 %v475, %v696
    %v723 = vadd.f32 %v478, %v700
    %v724 = vadd.f32 %v481, %v704
    %v725 = vadd.f32 %v484, %v708
    %726 = vset.pattern.permute.xlu0 2
    %727 = vperm.xlu0 %726, %v534
    %v728 = vpop.permute.xlu0 %727
    %730 = vset.pattern.permute.xlu0 2
    %731 = vperm.xlu0 %730, %v535
    %v732 = vpop.permute.xlu0 %731
    %734 = vset.pattern.permute.xlu0 2
    %735 = vperm.xlu0 %734, %v536
    %v736 = vpop.permute.xlu0 %735
    %738 = vset.pattern.permute.xlu0 2
    %739 = vperm.xlu0 %738, %v537
    %v740 = vpop.permute.xlu0 %739
    %742 = vset.pattern.permute.xlu0 2
    %743 = vperm.xlu0 %742, %v538
    %v744 = vpop.permute.xlu0 %743
    %746 = vset.pattern.permute.xlu0 2
    %747 = vperm.xlu0 %746, %v539
    %v748 = vpop.permute.xlu0 %747
    %750 = vset.pattern.permute.xlu0 2
    %751 = vperm.xlu0 %750, %v540
    %v752 = vpop.permute.xlu0 %751
    %754 = vset.pattern.permute.xlu0 2
    %755 = vperm.xlu0 %754, %v541
    %v756 = vpop.permute.xlu0 %755
    %758 = vset.pattern.permute.xlu0 2
    %759 = vperm.xlu0 %758, %v542
    %v760 = vpop.permute.xlu0 %759
    %762 = vset.pattern.permute.xlu0 2
    %763 = vperm.xlu0 %762, %v543
    %v764 = vpop.permute.xlu0 %763
    %766 = vset.pattern.permute.xlu0 2
    %767 = vperm.xlu0 %766, %v544
    %v768 = vpop.permute.xlu0 %767
    %770 = vset.pattern.permute.xlu0 2
    %771 = vperm.xlu0 %770, %v545
    %v772 = vpop.permute.xlu0 %771
    %774 = vset.pattern.permute.xlu0 2
    %775 = vperm.xlu0 %774, %v546
    %v776 = vpop.permute.xlu0 %775
    %778 = vset.pattern.permute.xlu0 2
    %779 = vperm.xlu0 %778, %v547
    %v780 = vpop.permute.xlu0 %779
    %782 = vset.pattern.permute.xlu0 2
    %783 = vperm.xlu0 %782, %v548
    %v784 = vpop.permute.xlu0 %783
    %786 = vset.pattern.permute.xlu0 2
    %787 = vperm.xlu0 %786, %v549
    %v788 = vpop.permute.xlu0 %787
    %v790 = vadd.f32 %v487, %v728
    %v791 = vadd.f32 %v490, %v732
    %v792 = vadd.f32 %v493, %v736
    %v793 = vadd.f32 %v496, %v740
    %v794 = vadd.f32 %v499, %v744
    %v795 = vadd.f32 %v502, %v748
    %v796 = vadd.f32 %v505, %v752
    %v797 = vadd.f32 %v508, %v756
    %v798 = vadd.f32 %v511, %v760
    %v799 = vadd.f32 %v514, %v764
    %v800 = vadd.f32 %v517, %v768
    %v801 = vadd.f32 %v520, %v772
    %v802 = vadd.f32 %v523, %v776
    %v803 = vadd.f32 %v526, %v780
    %v804 = vadd.f32 %v529, %v784
    %v805 = vadd.f32 %v532, %v788
    %v806 = vld [vmem:[#allocation5 + $0x380] sm:$0xff]
    %v807 = vld [vmem:[#allocation5 + $0x388] sm:$0xff]
    %v808 = vld [vmem:[#allocation5 + $0x390] sm:$0xff]
    %v809 = vld [vmem:[#allocation5 + $0x398] sm:$0xff]
    %v810 = vld [vmem:[#allocation5 + $0x3a0] sm:$0xff]
    %v811 = vld [vmem:[#allocation5 + $0x3a8] sm:$0xff]
    %v812 = vld [vmem:[#allocation5 + $0x3b0] sm:$0xff]
    %v813 = vld [vmem:[#allocation5 + $0x3b8] sm:$0xff]
    %v814 = vld [vmem:[#allocation5 + $0x3c0] sm:$0xff]
    %v815 = vld [vmem:[#allocation5 + $0x3c8] sm:$0xff]
    %v816 = vld [vmem:[#allocation5 + $0x3d0] sm:$0xff]
    %v817 = vld [vmem:[#allocation5 + $0x3d8] sm:$0xff]
    %v818 = vld [vmem:[#allocation5 + $0x3e0] sm:$0xff]
    %v819 = vld [vmem:[#allocation5 + $0x3e8] sm:$0xff]
    %v820 = vld [vmem:[#allocation5 + $0x3f0] sm:$0xff]
    %v821 = vld [vmem:[#allocation5 + $0x3f8] sm:$0xff]
    %v822 = vld [vmem:[#allocation5 + $0x400] sm:$0xff]
    %v823 = vld [vmem:[#allocation5 + $0x408] sm:$0xff]
    %v824 = vmul.f32 %v630, %v710
    %v825 = vmul.f32 %v631, %v711
    %v826 = vmul.f32 %v632, %v712
    %v827 = vmul.f32 %v633, %v713
    %v828 = vmul.f32 %v634, %v714
    %v829 = vmul.f32 %v635, %v715
    %v830 = vmul.f32 %v636, %v716
    %v831 = vmul.f32 %v637, %v717
    %v832 = vmul.f32 %v638, %v718
    %v833 = vmul.f32 %v639, %v719
    %v834 = vmul.f32 %v640, %v720
    %v835 = vmul.f32 %v641, %v721
    %v836 = vmul.f32 %v642, %v722
    %v837 = vmul.f32 %v643, %v723
    %v838 = vmul.f32 %v644, %v724
    %v839 = vmul.f32 %v645, %v725
    %840 = vmatpush.msra.mxu0 %v839
    %841 = vmatpush.msra.mxu0 %v838
    %842 = vmatpush.msra.mxu0 %v837
    %843 = vmatpush.msra.mxu0 %v836
    %844 = vmatpush.msra.mxu0 %v835
    %845 = vmatpush.msra.mxu0 %v834
    %846 = vmatpush.msra.mxu0 %v833
    %847 = vmatpush.msra.mxu0 %v832
    %848 = vmatpush.msra.mxu0 %v831
    %849 = vmatpush.msra.mxu0 %v830
    %850 = vmatpush.msra.mxu0 %v829
    %851 = vmatpush.msra.mxu0 %v828
    %852 = vmatpush.msra.mxu0 %v827
    %853 = vmatpush.msra.mxu0 %v826
    %854 = vmatpush.msra.mxu0 %v825
    %855 = vmatpush.msra.mxu0 %v824
    %856 = vmatmul.f32.gmra.mxu0 %v806
    %v857 = vpop.f32.mrf.mxu0
    %v858 = vadd.f32 0.0, %v857
    %859 = vmatmul.f32.gmra.mxu0 %v807
    %v860 = vpop.f32.mrf.mxu0
    %v861 = vadd.f32 0.0, %v860
    %862 = vdwg.mxu0
    %v863 = vmul.f32 %v630, %v714
    %v864 = vmul.f32 %v631, %v715
    %v865 = vmul.f32 %v632, %v716
    %v866 = vmul.f32 %v633, %v717
    %v867 = vmul.f32 %v634, %v718
    %v868 = vmul.f32 %v635, %v719
    %v869 = vmul.f32 %v636, %v720
    %v870 = vmul.f32 %v637, %v721
    %v871 = vmul.f32 %v638, %v722
    %v872 = vmul.f32 %v639, %v723
    %v873 = vmul.f32 %v640, %v724
    %v874 = vmul.f32 %v641, %v725
    %v875 = vmul.f32 %v642, %v710
    %v876 = vmul.f32 %v643, %v711
    %v877 = vmul.f32 %v644, %v712
    %v878 = vmul.f32 %v645, %v713
    %879 = vmatpush.msra.mxu0 %v878
    %880 = vmatpush.msra.mxu0 %v877
    %881 = vmatpush.msra.mxu0 %v876
    %882 = vmatpush.msra.mxu0 %v875
    %883 = vmatpush.msra.mxu0 %v874
    %884 = vmatpush.msra.mxu0 %v873
    %885 = vmatpush.msra.mxu0 %v872
    %886 = vmatpush.msra.mxu0 %v871
    %887 = vmatpush.msra.mxu0 %v870
    %888 = vmatpush.msra.mxu0 %v869
    %889 = vmatpush.msra.mxu0 %v868
    %890 = vmatpush.msra.mxu0 %v867
    %891 = vmatpush.msra.mxu0 %v866
    %892 = vmatpush.msra.mxu0 %v865
    %893 = vmatpush.msra.mxu0 %v864
    %894 = vmatpush.msra.mxu0 %v863
    %895 = vmatmul.f32.gmra.mxu0 %v806
    %v896 = vpop.f32.mrf.mxu0
    %v897 = vadd.f32 0.0, %v896
    %898 = vmatmul.f32.gmra.mxu0 %v807
    %v899 = vpop.f32.mrf.mxu0
    %v900 = vadd.f32 0.0, %v899
    %901 = vdwg.mxu0
    %v902 = vmul.f32 %v630, %v718
    %v903 = vmul.f32 %v631, %v719
    %v904 = vmul.f32 %v632, %v720
    %v905 = vmul.f32 %v633, %v721
    %v906 = vmul.f32 %v634, %v722
    %v907 = vmul.f32 %v635, %v723
    %v908 = vmul.f32 %v636, %v724
    %v909 = vmul.f32 %v637, %v725
    %v910 = vmul.f32 %v638, %v710
    %v911 = vmul.f32 %v639, %v711
    %v912 = vmul.f32 %v640, %v712
    %v913 = vmul.f32 %v641, %v713
    %v914 = vmul.f32 %v642, %v714
    %v915 = vmul.f32 %v643, %v715
    %v916 = vmul.f32 %v644, %v716
    %v917 = vmul.f32 %v645, %v717
    %918 = vmatpush.msra.mxu0 %v917
    %919 = vmatpush.msra.mxu0 %v916
    %920 = vmatpush.msra.mxu0 %v915
    %921 = vmatpush.msra.mxu0 %v914
    %922 = vmatpush.msra.mxu0 %v913
    %923 = vmatpush.msra.mxu0 %v912
    %924 = vmatpush.msra.mxu0 %v911
    %925 = vmatpush.msra.mxu0 %v910
    %926 = vmatpush.msra.mxu0 %v909
    %927 = vmatpush.msra.mxu0 %v908
    %928 = vmatpush.msra.mxu0 %v907
    %929 = vmatpush.msra.mxu0 %v906
    %930 = vmatpush.msra.mxu0 %v905
    %931 = vmatpush.msra.mxu0 %v904
    %932 = vmatpush.msra.mxu0 %v903
    %933 = vmatpush.msra.mxu0 %v902
    %934 = vmatmul.f32.gmra.mxu0 %v806
    %v935 = vpop.f32.mrf.mxu0
    %v936 = vadd.f32 0.0, %v935
    %937 = vmatmul.f32.gmra.mxu0 %v807
    %v938 = vpop.f32.mrf.mxu0
    %v939 = vadd.f32 0.0, %v938
    %940 = vdwg.mxu0
    %v941 = vmul.f32 %v630, %v722
    %v942 = vmul.f32 %v631, %v723
    %v943 = vmul.f32 %v632, %v724
    %v944 = vmul.f32 %v633, %v725
    %v945 = vmul.f32 %v634, %v710
    %v946 = vmul.f32 %v635, %v711
    %v947 = vmul.f32 %v636, %v712
    %v948 = vmul.f32 %v637, %v713
    %v949 = vmul.f32 %v638, %v714
    %v950 = vmul.f32 %v639, %v715
    %v951 = vmul.f32 %v640, %v716
    %v952 = vmul.f32 %v641, %v717
    %v953 = vmul.f32 %v642, %v718
    %v954 = vmul.f32 %v643, %v719
    %v955 = vmul.f32 %v644, %v720
    %v956 = vmul.f32 %v645, %v721
    %957 = vmatpush.msra.mxu0 %v956
    %958 = vmatpush.msra.mxu0 %v955
    %959 = vmatpush.msra.mxu0 %v954
    %960 = vmatpush.msra.mxu0 %v953
    %961 = vmatpush.msra.mxu0 %v952
    %962 = vmatpush.msra.mxu0 %v951
    %963 = vmatpush.msra.mxu0 %v950
    %964 = vmatpush.msra.mxu0 %v949
    %965 = vmatpush.msra.mxu0 %v948
    %966 = vmatpush.msra.mxu0 %v947
    %967 = vmatpush.msra.mxu0 %v946
    %968 = vmatpush.msra.mxu0 %v945
    %969 = vmatpush.msra.mxu0 %v944
    %970 = vmatpush.msra.mxu0 %v943
    %971 = vmatpush.msra.mxu0 %v942
    %972 = vmatpush.msra.mxu0 %v941
    %973 = vmatmul.f32.gmra.mxu0 %v806
    %v974 = vpop.f32.mrf.mxu0
    %v975 = vadd.f32 0.0, %v974
    %976 = vmatmul.f32.gmra.mxu0 %v807
    %v977 = vpop.f32.mrf.mxu0
    %v978 = vadd.f32 0.0, %v977
    %979 = vdwg.mxu0
    %v980 = vmax.f32 %v858, %v897
    %v981 = vmax.f32 %v861, %v900
    %v982 = vmax.f32 %v980, %v936
    %v983 = vmax.f32 %v981, %v939
    %v984 = vmax.f32 %v982, %v975
    %v985 = vmax.f32 %v983, %v978
    %v986 = vsub.f32 %v858, %v984
    %v987 = vsub.f32 %v861, %v985
    %v988 = vmul.f32 %v986, 1.442695
    %v989 = vpow.pop %v988
    %v990 = vmul.f32 %v987, 1.442695
    %v991 = vpow.pop %v990
    %v992 = vsub.f32 %v897, %v984
    %v993 = vsub.f32 %v900, %v985
    %v994 = vmul.f32 %v992, 1.442695
    %v995 = vpow.pop %v994
    %v996 = vmul.f32 %v993, 1.442695
    %v997 = vpow.pop %v996
    %v998 = vsub.f32 %v936, %v984
    %v999 = vsub.f32 %v939, %v985
    %v1000 = vmul.f32 %v998, 1.442695
    %v1001 = vpow.pop %v1000
    %v1002 = vmul.f32 %v999, 1.442695
    %v1003 = vpow.pop %v1002
    %v1004 = vsub.f32 %v975, %v984
    %v1005 = vsub.f32 %v978, %v985
    %v1006 = vmul.f32 %v1004, 1.442695
    %v1007 = vpow.pop %v1006
    %v1008 = vmul.f32 %v1005, 1.442695
    %v1009 = vpow.pop %v1008
    %v1010 = vadd.f32 %v989, %v995
    %v1011 = vadd.f32 %v991, %v997
    %v1012 = vadd.f32 %v1010, %v1001
    %v1013 = vadd.f32 %v1011, %v1003
    %v1014 = vadd.f32 %v1012, %v1007
    %v1015 = vadd.f32 %v1013, %v1009
    %v1016 = vrcp.pop %v1014
    %v1017 = vmul.f32 %v1014, %v1016
    %v1018 = vsub.f32 1.0, %v1017
    %v1019 = vmul.f32 %v1016, %v1018
    %v1020 = vadd.f32 %v1016, %v1019
    %vm1021 = vweird.f32 %v1014
    %vm1022 = vweird.f32 %v1016
    %vm1023 = vmor %vm1021, %vm1022
    %v1024 = vsel %vm1023, %v1016, %v1020
    %v1025 = vand.u32 2147483647, %v1014
    %vm1026 = vcmp.eq.f32.partialorder %v1025, 8.507059e+37
    %v1027 = vand.u32 %v1014, 2147483648
    %v1028 = vor.u32 1.1754944e-38, %v1027
    %v1029 = vsel %vm1026, %v1028, %v1024
    %v1030 = vrcp.pop %v1015
    %v1031 = vmul.f32 %v1015, %v1030
    %v1032 = vsub.f32 1.0, %v1031
    %v1033 = vmul.f32 %v1030, %v1032
    %v1034 = vadd.f32 %v1030, %v1033
    %vm1035 = vweird.f32 %v1015
    %vm1036 = vweird.f32 %v1030
    %vm1037 = vmor %vm1035, %vm1036
    %v1038 = vsel %vm1037, %v1030, %v1034
    %v1039 = vand.u32 2147483647, %v1015
    %vm1040 = vcmp.eq.f32.partialorder %v1039, 8.507059e+37
    %v1041 = vand.u32 %v1015, 2147483648
    %v1042 = vor.u32 1.1754944e-38, %v1041
    %v1043 = vsel %vm1040, %v1042, %v1038
    %v1044 = vmul.f32 %v989, %v1029
    %v1045 = vmul.f32 %v991, %v1043
    %vm1046 = vcmask 130048
    %v1048 = vsel %vm1046, %v808, 0
    %v1051 = vsel %vm1046, %v809, 0
    %v1054 = vsel %vm1046, %v810, 0
    %v1057 = vsel %vm1046, %v811, 0
    %v1060 = vsel %vm1046, %v812, 0
    %v1063 = vsel %vm1046, %v813, 0
    %v1066 = vsel %vm1046, %v814, 0
    %v1069 = vsel %vm1046, %v815, 0
    %v1072 = vsel %vm1046, %v816, 0
    %v1075 = vsel %vm1046, %v817, 0
    %v1078 = vsel %vm1046, %v818, 0
    %v1081 = vsel %vm1046, %v819, 0
    %v1084 = vsel %vm1046, %v820, 0
    %v1087 = vsel %vm1046, %v821, 0
    %v1090 = vsel %vm1046, %v822, 0
    %v1093 = vsel %vm1046, %v823, 0
    %1095 = vmatpush.msra.mxu0 0.0
    %1096 = vmatpush.msra.mxu0 0.0
    %1097 = vmatpush.msra.mxu0 0.0
    %1098 = vmatpush.msra.mxu0 0.0
    %1099 = vmatpush.msra.mxu0 0.0
    %1100 = vmatpush.msra.mxu0 0.0
    %1101 = vmatpush.msra.mxu0 0.0
    %1102 = vmatpush.msra.mxu0 0.0
    %1103 = vmatpush.msra.mxu0 0.0
    %1104 = vmatpush.msra.mxu0 0.0
    %1105 = vmatpush.msra.mxu0 0.0
    %1106 = vmatpush.msra.mxu0 0.0
    %1107 = vmatpush.msra.mxu0 0.0
    %1108 = vmatpush.msra.mxu0 0.0
    %1109 = vmatpush.msra.mxu0 %v1045
    %1110 = vmatpush.msra.mxu0 %v1044
    %1111 = vmatmul.f32.gmra.mxu0 %v1048
    %v1112 = vpop.f32.mrf.mxu0
    %v1113 = vadd.f32 0.0, %v1112
    %1114 = vmatmul.f32.gmra.mxu0 %v1051
    %v1115 = vpop.f32.mrf.mxu0
    %v1116 = vadd.f32 0.0, %v1115
    %1117 = vmatmul.f32.gmra.mxu0 %v1054
    %v1118 = vpop.f32.mrf.mxu0
    %v1119 = vadd.f32 0.0, %v1118
    %1120 = vmatmul.f32.gmra.mxu0 %v1057
    %v1121 = vpop.f32.mrf.mxu0
    %v1122 = vadd.f32 0.0, %v1121
    %1123 = vmatmul.f32.gmra.mxu0 %v1060
    %v1124 = vpop.f32.mrf.mxu0
    %v1125 = vadd.f32 0.0, %v1124
    %1126 = vmatmul.f32.gmra.mxu0 %v1063
    %v1127 = vpop.f32.mrf.mxu0
    %v1128 = vadd.f32 0.0, %v1127
    %1129 = vmatmul.f32.gmra.mxu0 %v1066
    %v1130 = vpop.f32.mrf.mxu0
    %v1131 = vadd.f32 0.0, %v1130
    %1132 = vmatmul.f32.gmra.mxu0 %v1069
    %v1133 = vpop.f32.mrf.mxu0
    %v1134 = vadd.f32 0.0, %v1133
    %1135 = vmatmul.f32.gmra.mxu0 %v1072
    %v1136 = vpop.f32.mrf.mxu0
    %v1137 = vadd.f32 0.0, %v1136
    %1138 = vmatmul.f32.gmra.mxu0 %v1075
    %v1139 = vpop.f32.mrf.mxu0
    %v1140 = vadd.f32 0.0, %v1139
    %1141 = vmatmul.f32.gmra.mxu0 %v1078
    %v1142 = vpop.f32.mrf.mxu0
    %v1143 = vadd.f32 0.0, %v1142
    %1144 = vmatmul.f32.gmra.mxu0 %v1081
    %v1145 = vpop.f32.mrf.mxu0
    %v1146 = vadd.f32 0.0, %v1145
    %1147 = vmatmul.f32.gmra.mxu0 %v1084
    %v1148 = vpop.f32.mrf.mxu0
    %v1149 = vadd.f32 0.0, %v1148
    %1150 = vmatmul.f32.gmra.mxu0 %v1087
    %v1151 = vpop.f32.mrf.mxu0
    %v1152 = vadd.f32 0.0, %v1151
    %1153 = vmatmul.f32.gmra.mxu0 %v1090
    %v1154 = vpop.f32.mrf.mxu0
    %v1155 = vadd.f32 0.0, %v1154
    %1156 = vmatmul.f32.gmra.mxu0 %v1093
    %v1157 = vpop.f32.mrf.mxu0
    %v1158 = vadd.f32 0.0, %v1157
    %1159 = vdwg.mxu0
    %v1160 = vmul.f32 %v1113, %v790
    %v1161 = vmul.f32 %v1116, %v791
    %v1162 = vmul.f32 %v1119, %v792
    %v1163 = vmul.f32 %v1122, %v793
    %v1164 = vmul.f32 %v1125, %v794
    %v1165 = vmul.f32 %v1128, %v795
    %v1166 = vmul.f32 %v1131, %v796
    %v1167 = vmul.f32 %v1134, %v797
    %v1168 = vmul.f32 %v1137, %v798
    %v1169 = vmul.f32 %v1140, %v799
    %v1170 = vmul.f32 %v1143, %v800
    %v1171 = vmul.f32 %v1146, %v801
    %v1172 = vmul.f32 %v1149, %v802
    %v1173 = vmul.f32 %v1152, %v803
    %v1174 = vmul.f32 %v1155, %v804
    %v1175 = vmul.f32 %v1158, %v805
    %v1176 = vmul.f32 %v995, %v1029
    %v1177 = vmul.f32 %v997, %v1043
    %1178 = vmatpush.msra.mxu0 0.0
    %1179 = vmatpush.msra.mxu0 0.0
    %1180 = vmatpush.msra.mxu0 0.0
    %1181 = vmatpush.msra.mxu0 0.0
    %1182 = vmatpush.msra.mxu0 0.0
    %1183 = vmatpush.msra.mxu0 0.0
    %1184 = vmatpush.msra.mxu0 0.0
    %1185 = vmatpush.msra.mxu0 0.0
    %1186 = vmatpush.msra.mxu0 0.0
    %1187 = vmatpush.msra.mxu0 0.0
    %1188 = vmatpush.msra.mxu0 0.0
    %1189 = vmatpush.msra.mxu0 0.0
    %1190 = vmatpush.msra.mxu0 0.0
    %1191 = vmatpush.msra.mxu0 0.0
    %1192 = vmatpush.msra.mxu0 %v1177
    %1193 = vmatpush.msra.mxu0 %v1176
    %1194 = vmatmul.f32.gmra.mxu0 %v1048
    %v1195 = vpop.f32.mrf.mxu0
    %v1196 = vadd.f32 0.0, %v1195
    %1197 = vmatmul.f32.gmra.mxu0 %v1051
    %v1198 = vpop.f32.mrf.mxu0
    %v1199 = vadd.f32 0.0, %v1198
    %1200 = vmatmul.f32.gmra.mxu0 %v1054
    %v1201 = vpop.f32.mrf.mxu0
    %v1202 = vadd.f32 0.0, %v1201
    %1203 = vmatmul.f32.gmra.mxu0 %v1057
    %v1204 = vpop.f32.mrf.mxu0
    %v1205 = vadd.f32 0.0, %v1204
    %1206 = vmatmul.f32.gmra.mxu0 %v1060
    %v1207 = vpop.f32.mrf.mxu0
    %v1208 = vadd.f32 0.0, %v1207
    %1209 = vmatmul.f32.gmra.mxu0 %v1063
    %v1210 = vpop.f32.mrf.mxu0
    %v1211 = vadd.f32 0.0, %v1210
    %1212 = vmatmul.f32.gmra.mxu0 %v1066
    %v1213 = vpop.f32.mrf.mxu0
    %v1214 = vadd.f32 0.0, %v1213
    %1215 = vmatmul.f32.gmra.mxu0 %v1069
    %v1216 = vpop.f32.mrf.mxu0
    %v1217 = vadd.f32 0.0, %v1216
    %1218 = vmatmul.f32.gmra.mxu0 %v1072
    %v1219 = vpop.f32.mrf.mxu0
    %v1220 = vadd.f32 0.0, %v1219
    %1221 = vmatmul.f32.gmra.mxu0 %v1075
    %v1222 = vpop.f32.mrf.mxu0
    %v1223 = vadd.f32 0.0, %v1222
    %1224 = vmatmul.f32.gmra.mxu0 %v1078
    %v1225 = vpop.f32.mrf.mxu0
    %v1226 = vadd.f32 0.0, %v1225
    %1227 = vmatmul.f32.gmra.mxu0 %v1081
    %v1228 = vpop.f32.mrf.mxu0
    %v1229 = vadd.f32 0.0, %v1228
    %1230 = vmatmul.f32.gmra.mxu0 %v1084
    %v1231 = vpop.f32.mrf.mxu0
    %v1232 = vadd.f32 0.0, %v1231
    %1233 = vmatmul.f32.gmra.mxu0 %v1087
    %v1234 = vpop.f32.mrf.mxu0
    %v1235 = vadd.f32 0.0, %v1234
    %1236 = vmatmul.f32.gmra.mxu0 %v1090
    %v1237 = vpop.f32.mrf.mxu0
    %v1238 = vadd.f32 0.0, %v1237
    %1239 = vmatmul.f32.gmra.mxu0 %v1093
    %v1240 = vpop.f32.mrf.mxu0
    %v1241 = vadd.f32 0.0, %v1240
    %1242 = vdwg.mxu0
    %v1243 = vmul.f32 %v1196, %v794
    %v1244 = vmul.f32 %v1199, %v795
    %v1245 = vmul.f32 %v1202, %v796
    %v1246 = vmul.f32 %v1205, %v797
    %v1247 = vmul.f32 %v1208, %v798
    %v1248 = vmul.f32 %v1211, %v799
    %v1249 = vmul.f32 %v1214, %v800
    %v1250 = vmul.f32 %v1217, %v801
    %v1251 = vmul.f32 %v1220, %v802
    %v1252 = vmul.f32 %v1223, %v803
    %v1253 = vmul.f32 %v1226, %v804
    %v1254 = vmul.f32 %v1229, %v805
    %v1255 = vmul.f32 %v1232, %v790
    %v1256 = vmul.f32 %v1235, %v791
    %v1257 = vmul.f32 %v1238, %v792
    %v1258 = vmul.f32 %v1241, %v793
    %v1259 = vadd.f32 %v1160, %v1243
    %v1260 = vadd.f32 %v1161, %v1244
    %v1261 = vadd.f32 %v1162, %v1245
    %v1262 = vadd.f32 %v1163, %v1246
    %v1263 = vadd.f32 %v1164, %v1247
    %v1264 = vadd.f32 %v1165, %v1248
    %v1265 = vadd.f32 %v1166, %v1249
    %v1266 = vadd.f32 %v1167, %v1250
    %v1267 = vadd.f32 %v1168, %v1251
    %v1268 = vadd.f32 %v1169, %v1252
    %v1269 = vadd.f32 %v1170, %v1253
    %v1270 = vadd.f32 %v1171, %v1254
    %v1271 = vadd.f32 %v1172, %v1255
    %v1272 = vadd.f32 %v1173, %v1256
    %v1273 = vadd.f32 %v1174, %v1257
    %v1274 = vadd.f32 %v1175, %v1258
    %v1275 = vmul.f32 %v1001, %v1029
    %v1276 = vmul.f32 %v1003, %v1043
    %1277 = vmatpush.msra.mxu0 0.0
    %1278 = vmatpush.msra.mxu0 0.0
    %1279 = vmatpush.msra.mxu0 0.0
    %1280 = vmatpush.msra.mxu0 0.0
    %1281 = vmatpush.msra.mxu0 0.0
    %1282 = vmatpush.msra.mxu0 0.0
    %1283 = vmatpush.msra.mxu0 0.0
    %1284 = vmatpush.msra.mxu0 0.0
    %1285 = vmatpush.msra.mxu0 0.0
    %1286 = vmatpush.msra.mxu0 0.0
    %1287 = vmatpush.msra.mxu0 0.0
    %1288 = vmatpush.msra.mxu0 0.0
    %1289 = vmatpush.msra.mxu0 0.0
    %1290 = vmatpush.msra.mxu0 0.0
    %1291 = vmatpush.msra.mxu0 %v1276
    %1292 = vmatpush.msra.mxu0 %v1275
    %1293 = vmatmul.f32.gmra.mxu0 %v1048
    %v1294 = vpop.f32.mrf.mxu0
    %v1295 = vadd.f32 0.0, %v1294
    %1296 = vmatmul.f32.gmra.mxu0 %v1051
    %v1297 = vpop.f32.mrf.mxu0
    %v1298 = vadd.f32 0.0, %v1297
    %1299 = vmatmul.f32.gmra.mxu0 %v1054
    %v1300 = vpop.f32.mrf.mxu0
    %v1301 = vadd.f32 0.0, %v1300
    %1302 = vmatmul.f32.gmra.mxu0 %v1057
    %v1303 = vpop.f32.mrf.mxu0
    %v1304 = vadd.f32 0.0, %v1303
    %1305 = vmatmul.f32.gmra.mxu0 %v1060
    %v1306 = vpop.f32.mrf.mxu0
    %v1307 = vadd.f32 0.0, %v1306
    %1308 = vmatmul.f32.gmra.mxu0 %v1063
    %v1309 = vpop.f32.mrf.mxu0
    %v1310 = vadd.f32 0.0, %v1309
    %1311 = vmatmul.f32.gmra.mxu0 %v1066
    %v1312 = vpop.f32.mrf.mxu0
    %v1313 = vadd.f32 0.0, %v1312
    %1314 = vmatmul.f32.gmra.mxu0 %v1069
    %v1315 = vpop.f32.mrf.mxu0
    %v1316 = vadd.f32 0.0, %v1315
    %1317 = vmatmul.f32.gmra.mxu0 %v1072
    %v1318 = vpop.f32.mrf.mxu0
    %v1319 = vadd.f32 0.0, %v1318
    %1320 = vmatmul.f32.gmra.mxu0 %v1075
    %v1321 = vpop.f32.mrf.mxu0
    %v1322 = vadd.f32 0.0, %v1321
    %1323 = vmatmul.f32.gmra.mxu0 %v1078
    %v1324 = vpop.f32.mrf.mxu0
    %v1325 = vadd.f32 0.0, %v1324
    %1326 = vmatmul.f32.gmra.mxu0 %v1081
    %v1327 = vpop.f32.mrf.mxu0
    %v1328 = vadd.f32 0.0, %v1327
    %1329 = vmatmul.f32.gmra.mxu0 %v1084
    %v1330 = vpop.f32.mrf.mxu0
    %v1331 = vadd.f32 0.0, %v1330
    %1332 = vmatmul.f32.gmra.mxu0 %v1087
    %v1333 = vpop.f32.mrf.mxu0
    %v1334 = vadd.f32 0.0, %v1333
    %1335 = vmatmul.f32.gmra.mxu0 %v1090
    %v1336 = vpop.f32.mrf.mxu0
    %v1337 = vadd.f32 0.0, %v1336
    %1338 = vmatmul.f32.gmra.mxu0 %v1093
    %v1339 = vpop.f32.mrf.mxu0
    %v1340 = vadd.f32 0.0, %v1339
    %1341 = vdwg.mxu0
    %v1342 = vmul.f32 %v1295, %v798
    %v1343 = vmul.f32 %v1298, %v799
    %v1344 = vmul.f32 %v1301, %v800
    %v1345 = vmul.f32 %v1304, %v801
    %v1346 = vmul.f32 %v1307, %v802
    %v1347 = vmul.f32 %v1310, %v803
    %v1348 = vmul.f32 %v1313, %v804
    %v1349 = vmul.f32 %v1316, %v805
    %v1350 = vmul.f32 %v1319, %v790
    %v1351 = vmul.f32 %v1322, %v791
    %v1352 = vmul.f32 %v1325, %v792
    %v1353 = vmul.f32 %v1328, %v793
    %v1354 = vmul.f32 %v1331, %v794
    %v1355 = vmul.f32 %v1334, %v795
    %v1356 = vmul.f32 %v1337, %v796
    %v1357 = vmul.f32 %v1340, %v797
    %v1358 = vadd.f32 %v1259, %v1342
    %v1359 = vadd.f32 %v1260, %v1343
    %v1360 = vadd.f32 %v1261, %v1344
    %v1361 = vadd.f32 %v1262, %v1345
    %v1362 = vadd.f32 %v1263, %v1346
    %v1363 = vadd.f32 %v1264, %v1347
    %v1364 = vadd.f32 %v1265, %v1348
    %v1365 = vadd.f32 %v1266, %v1349
    %v1366 = vadd.f32 %v1267, %v1350
    %v1367 = vadd.f32 %v1268, %v1351
    %v1368 = vadd.f32 %v1269, %v1352
    %v1369 = vadd.f32 %v1270, %v1353
    %v1370 = vadd.f32 %v1271, %v1354
    %v1371 = vadd.f32 %v1272, %v1355
    %v1372 = vadd.f32 %v1273, %v1356
    %v1373 = vadd.f32 %v1274, %v1357
    %v1374 = vmul.f32 %v1007, %v1029
    %v1375 = vmul.f32 %v1009, %v1043
    %1376 = vmatpush.msra.mxu0 0.0
    %1377 = vmatpush.msra.mxu0 0.0
    %1378 = vmatpush.msra.mxu0 0.0
    %1379 = vmatpush.msra.mxu0 0.0
    %1380 = vmatpush.msra.mxu0 0.0
    %1381 = vmatpush.msra.mxu0 0.0
    %1382 = vmatpush.msra.mxu0 0.0
    %1383 = vmatpush.msra.mxu0 0.0
    %1384 = vmatpush.msra.mxu0 0.0
    %1385 = vmatpush.msra.mxu0 0.0
    %1386 = vmatpush.msra.mxu0 0.0
    %1387 = vmatpush.msra.mxu0 0.0
    %1388 = vmatpush.msra.mxu0 0.0
    %1389 = vmatpush.msra.mxu0 0.0
    %1390 = vmatpush.msra.mxu0 %v1375
    %1391 = vmatpush.msra.mxu0 %v1374
    %1392 = vmatmul.f32.gmra.mxu0 %v1048
    %v1393 = vpop.f32.mrf.mxu0
    %v1394 = vadd.f32 0.0, %v1393
    %1395 = vmatmul.f32.gmra.mxu0 %v1051
    %v1396 = vpop.f32.mrf.mxu0
    %v1397 = vadd.f32 0.0, %v1396
    %1398 = vmatmul.f32.gmra.mxu0 %v1054
    %v1399 = vpop.f32.mrf.mxu0
    %v1400 = vadd.f32 0.0, %v1399
    %1401 = vmatmul.f32.gmra.mxu0 %v1057
    %v1402 = vpop.f32.mrf.mxu0
    %v1403 = vadd.f32 0.0, %v1402
    %1404 = vmatmul.f32.gmra.mxu0 %v1060
    %v1405 = vpop.f32.mrf.mxu0
    %v1406 = vadd.f32 0.0, %v1405
    %1407 = vmatmul.f32.gmra.mxu0 %v1063
    %v1408 = vpop.f32.mrf.mxu0
    %v1409 = vadd.f32 0.0, %v1408
    %1410 = vmatmul.f32.gmra.mxu0 %v1066
    %v1411 = vpop.f32.mrf.mxu0
    %v1412 = vadd.f32 0.0, %v1411
    %1413 = vmatmul.f32.gmra.mxu0 %v1069
    %v1414 = vpop.f32.mrf.mxu0
    %v1415 = vadd.f32 0.0, %v1414
    %1416 = vmatmul.f32.gmra.mxu0 %v1072
    %v1417 = vpop.f32.mrf.mxu0
    %v1418 = vadd.f32 0.0, %v1417
    %1419 = vmatmul.f32.gmra.mxu0 %v1075
    %v1420 = vpop.f32.mrf.mxu0
    %v1421 = vadd.f32 0.0, %v1420
    %1422 = vmatmul.f32.gmra.mxu0 %v1078
    %v1423 = vpop.f32.mrf.mxu0
    %v1424 = vadd.f32 0.0, %v1423
    %1425 = vmatmul.f32.gmra.mxu0 %v1081
    %v1426 = vpop.f32.mrf.mxu0
    %v1427 = vadd.f32 0.0, %v1426
    %1428 = vmatmul.f32.gmra.mxu0 %v1084
    %v1429 = vpop.f32.mrf.mxu0
    %v1430 = vadd.f32 0.0, %v1429
    %1431 = vmatmul.f32.gmra.mxu0 %v1087
    %v1432 = vpop.f32.mrf.mxu0
    %v1433 = vadd.f32 0.0, %v1432
    %1434 = vmatmul.f32.gmra.mxu0 %v1090
    %v1435 = vpop.f32.mrf.mxu0
    %v1436 = vadd.f32 0.0, %v1435
    %1437 = vmatmul.f32.gmra.mxu0 %v1093
    %v1438 = vpop.f32.mrf.mxu0
    %v1439 = vadd.f32 0.0, %v1438
    %1440 = vdwg.mxu0
    %v1441 = vmul.f32 %v1394, %v802
    %v1442 = vmul.f32 %v1397, %v803
    %v1443 = vmul.f32 %v1400, %v804
    %v1444 = vmul.f32 %v1403, %v805
    %v1445 = vmul.f32 %v1406, %v790
    %v1446 = vmul.f32 %v1409, %v791
    %v1447 = vmul.f32 %v1412, %v792
    %v1448 = vmul.f32 %v1415, %v793
    %v1449 = vmul.f32 %v1418, %v794
    %v1450 = vmul.f32 %v1421, %v795
    %v1451 = vmul.f32 %v1424, %v796
    %v1452 = vmul.f32 %v1427, %v797
    %v1453 = vmul.f32 %v1430, %v798
    %v1454 = vmul.f32 %v1433, %v799
    %v1455 = vmul.f32 %v1436, %v800
    %v1456 = vmul.f32 %v1439, %v801
    %v1457 = vadd.f32 %v1358, %v1441
    %v1458 = vadd.f32 %v1359, %v1442
    %v1459 = vadd.f32 %v1360, %v1443
    %v1460 = vadd.f32 %v1361, %v1444
    %v1461 = vadd.f32 %v1362, %v1445
    %v1462 = vadd.f32 %v1363, %v1446
    %v1463 = vadd.f32 %v1364, %v1447
    %v1464 = vadd.f32 %v1365, %v1448
    %v1465 = vadd.f32 %v1366, %v1449
    %v1466 = vadd.f32 %v1367, %v1450
    %v1467 = vadd.f32 %v1368, %v1451
    %v1468 = vadd.f32 %v1369, %v1452
    %v1469 = vadd.f32 %v1370, %v1453
    %v1470 = vadd.f32 %v1371, %v1454
    %v1471 = vadd.f32 %v1372, %v1455
    %v1472 = vadd.f32 %v1373, %v1456
    %v1473 = vld [vmem:[#allocation5 + $0x180] sm:$0xff]
    %v1474 = vld [vmem:[#allocation5 + $0x188] sm:$0xff]
    %v1475 = vld [vmem:[#allocation5 + $0x190] sm:$0xff]
    %v1476 = vld [vmem:[#allocation5 + $0x198] sm:$0xff]
    %v1477 = vld [vmem:[#allocation5 + $0x1a0] sm:$0xff]
    %v1478 = vld [vmem:[#allocation5 + $0x1a8] sm:$0xff]
    %v1479 = vld [vmem:[#allocation5 + $0x1b0] sm:$0xff]
    %v1480 = vld [vmem:[#allocation5 + $0x1b8] sm:$0xff]
    %v1481 = vld [vmem:[#allocation5 + $0x1c0] sm:$0xff]
    %v1482 = vld [vmem:[#allocation5 + $0x1c8] sm:$0xff]
    %v1483 = vld [vmem:[#allocation5 + $0x1d0] sm:$0xff]
    %v1484 = vld [vmem:[#allocation5 + $0x1d8] sm:$0xff]
    %v1485 = vld [vmem:[#allocation5 + $0x1e0] sm:$0xff]
    %v1486 = vld [vmem:[#allocation5 + $0x1e8] sm:$0xff]
    %v1487 = vld [vmem:[#allocation5 + $0x1f0] sm:$0xff]
    %v1488 = vld [vmem:[#allocation5 + $0x1f8] sm:$0xff]
    %1489 = vset.pattern.permute.xlu0 3
    %1490 = vperm.xlu0 %1489, %v534
    %v1491 = vpop.permute.xlu0 %1490
    %1493 = vset.pattern.permute.xlu0 3
    %1494 = vperm.xlu0 %1493, %v535
    %v1495 = vpop.permute.xlu0 %1494
    %1497 = vset.pattern.permute.xlu0 3
    %1498 = vperm.xlu0 %1497, %v536
    %v1499 = vpop.permute.xlu0 %1498
    %1501 = vset.pattern.permute.xlu0 3
    %1502 = vperm.xlu0 %1501, %v537
    %v1503 = vpop.permute.xlu0 %1502
    %1505 = vset.pattern.permute.xlu0 3
    %1506 = vperm.xlu0 %1505, %v538
    %v1507 = vpop.permute.xlu0 %1506
    %1509 = vset.pattern.permute.xlu0 3
    %1510 = vperm.xlu0 %1509, %v539
    %v1511 = vpop.permute.xlu0 %1510
    %1513 = vset.pattern.permute.xlu0 3
    %1514 = vperm.xlu0 %1513, %v540
    %v1515 = vpop.permute.xlu0 %1514
    %1517 = vset.pattern.permute.xlu0 3
    %1518 = vperm.xlu0 %1517, %v541
    %v1519 = vpop.permute.xlu0 %1518
    %1521 = vset.pattern.permute.xlu0 3
    %1522 = vperm.xlu0 %1521, %v542
    %v1523 = vpop.permute.xlu0 %1522
    %1525 = vset.pattern.permute.xlu0 3
    %1526 = vperm.xlu0 %1525, %v543
    %v1527 = vpop.permute.xlu0 %1526
    %1529 = vset.pattern.permute.xlu0 3
    %1530 = vperm.xlu0 %1529, %v544
    %v1531 = vpop.permute.xlu0 %1530
    %1533 = vset.pattern.permute.xlu0 3
    %1534 = vperm.xlu0 %1533, %v545
    %v1535 = vpop.permute.xlu0 %1534
    %1537 = vset.pattern.permute.xlu0 3
    %1538 = vperm.xlu0 %1537, %v546
    %v1539 = vpop.permute.xlu0 %1538
    %1541 = vset.pattern.permute.xlu0 3
    %1542 = vperm.xlu0 %1541, %v547
    %v1543 = vpop.permute.xlu0 %1542
    %1545 = vset.pattern.permute.xlu0 3
    %1546 = vperm.xlu0 %1545, %v548
    %v1547 = vpop.permute.xlu0 %1546
    %1549 = vset.pattern.permute.xlu0 3
    %1550 = vperm.xlu0 %1549, %v549
    %v1551 = vpop.permute.xlu0 %1550
    %1553 = vmatpush.msra.mxu0 %v1472
    %1554 = vmatpush.msra.mxu0 %v1471
    %1555 = vmatpush.msra.mxu0 %v1470
    %1556 = vmatpush.msra.mxu0 %v1469
    %1557 = vmatpush.msra.mxu0 %v1468
    %1558 = vmatpush.msra.mxu0 %v1467
    %1559 = vmatpush.msra.mxu0 %v1466
    %1560 = vmatpush.msra.mxu0 %v1465
    %1561 = vmatpush.msra.mxu0 %v1464
    %1562 = vmatpush.msra.mxu0 %v1463
    %1563 = vmatpush.msra.mxu0 %v1462
    %1564 = vmatpush.msra.mxu0 %v1461
    %1565 = vmatpush.msra.mxu0 %v1460
    %1566 = vmatpush.msra.mxu0 %v1459
    %1567 = vmatpush.msra.mxu0 %v1458
    %1568 = vmatpush.msra.mxu0 %v1457
    %1569 = vmatmul.f32.gmra.mxu0 %v1473
    %v1570 = vpop.f32.mrf.mxu0
    %v1571 = vadd.f32 %v1491, %v1570
    %1572 = vmatmul.f32.gmra.mxu0 %v1474
    %v1573 = vpop.f32.mrf.mxu0
    %v1574 = vadd.f32 %v1495, %v1573
    %1575 = vmatmul.f32.gmra.mxu0 %v1475
    %v1576 = vpop.f32.mrf.mxu0
    %v1577 = vadd.f32 %v1499, %v1576
    %1578 = vmatmul.f32.gmra.mxu0 %v1476
    %v1579 = vpop.f32.mrf.mxu0
    %v1580 = vadd.f32 %v1503, %v1579
    %1581 = vmatmul.f32.gmra.mxu0 %v1477
    %v1582 = vpop.f32.mrf.mxu0
    %v1583 = vadd.f32 %v1507, %v1582
    %1584 = vmatmul.f32.gmra.mxu0 %v1478
    %v1585 = vpop.f32.mrf.mxu0
    %v1586 = vadd.f32 %v1511, %v1585
    %1587 = vmatmul.f32.gmra.mxu0 %v1479
    %v1588 = vpop.f32.mrf.mxu0
    %v1589 = vadd.f32 %v1515, %v1588
    %1590 = vmatmul.f32.gmra.mxu0 %v1480
    %v1591 = vpop.f32.mrf.mxu0
    %v1592 = vadd.f32 %v1519, %v1591
    %1593 = vmatmul.f32.gmra.mxu0 %v1481
    %v1594 = vpop.f32.mrf.mxu0
    %v1595 = vadd.f32 %v1523, %v1594
    %1596 = vmatmul.f32.gmra.mxu0 %v1482
    %v1597 = vpop.f32.mrf.mxu0
    %v1598 = vadd.f32 %v1527, %v1597
    %1599 = vmatmul.f32.gmra.mxu0 %v1483
    %v1600 = vpop.f32.mrf.mxu0
    %v1601 = vadd.f32 %v1531, %v1600
    %1602 = vmatmul.f32.gmra.mxu0 %v1484
    %v1603 = vpop.f32.mrf.mxu0
    %v1604 = vadd.f32 %v1535, %v1603
    %1605 = vmatmul.f32.gmra.mxu0 %v1485
    %v1606 = vpop.f32.mrf.mxu0
    %v1607 = vadd.f32 %v1539, %v1606
    %1608 = vmatmul.f32.gmra.mxu0 %v1486
    %v1609 = vpop.f32.mrf.mxu0
    %v1610 = vadd.f32 %v1543, %v1609
    %1611 = vmatmul.f32.gmra.mxu0 %v1487
    %v1612 = vpop.f32.mrf.mxu0
    %v1613 = vadd.f32 %v1547, %v1612
    %1614 = vmatmul.f32.gmra.mxu0 %v1488
    %v1615 = vpop.f32.mrf.mxu0
    %v1616 = vadd.f32 %v1551, %v1615
    %1617 = vdwg.mxu0
    %v1618 = vld [vmem:[#allocation5 + $0x300] sm:$0xff]
    %v1619 = vld [vmem:[#allocation5 + $0x308] sm:$0xff]
    %v1620 = vld [vmem:[#allocation5 + $0x310] sm:$0xff]
    %v1621 = vld [vmem:[#allocation5 + $0x318] sm:$0xff]
    %v1622 = vld [vmem:[#allocation5 + $0x320] sm:$0xff]
    %v1623 = vld [vmem:[#allocation5 + $0x328] sm:$0xff]
    %v1624 = vld [vmem:[#allocation5 + $0x330] sm:$0xff]
    %v1625 = vld [vmem:[#allocation5 + $0x338] sm:$0xff]
    %v1626 = vld [vmem:[#allocation5 + $0x340] sm:$0xff]
    %v1627 = vld [vmem:[#allocation5 + $0x348] sm:$0xff]
    %v1628 = vld [vmem:[#allocation5 + $0x350] sm:$0xff]
    %v1629 = vld [vmem:[#allocation5 + $0x358] sm:$0xff]
    %v1630 = vld [vmem:[#allocation5 + $0x360] sm:$0xff]
    %v1631 = vld [vmem:[#allocation5 + $0x368] sm:$0xff]
    %v1632 = vld [vmem:[#allocation5 + $0x370] sm:$0xff]
    %v1633 = vld [vmem:[#allocation5 + $0x378] sm:$0xff]
    %v1634 = vadd.f32 %v278, %v1571
    %v1635 = vadd.f32 %v281, %v1574
    %v1636 = vadd.f32 %v284, %v1577
    %v1637 = vadd.f32 %v287, %v1580
    %v1638 = vadd.f32 %v290, %v1583
    %v1639 = vadd.f32 %v293, %v1586
    %v1640 = vadd.f32 %v296, %v1589
    %v1641 = vadd.f32 %v299, %v1592
    %v1642 = vadd.f32 %v302, %v1595
    %v1643 = vadd.f32 %v305, %v1598
    %v1644 = vadd.f32 %v308, %v1601
    %v1645 = vadd.f32 %v311, %v1604
    %v1646 = vadd.f32 %v314, %v1607
    %v1647 = vadd.f32 %v317, %v1610
    %v1648 = vadd.f32 %v320, %v1613
    %v1649 = vadd.f32 %v323, %v1616
    %1650 = vmatpush.msra.mxu0 %v1649
    %1651 = vmatpush.msra.mxu0 %v1648
    %1652 = vmatpush.msra.mxu0 %v1647
    %1653 = vmatpush.msra.mxu0 %v1646
    %1654 = vmatpush.msra.mxu0 %v1645
    %1655 = vmatpush.msra.mxu0 %v1644
    %1656 = vmatpush.msra.mxu0 %v1643
    %1657 = vmatpush.msra.mxu0 %v1642
    %1658 = vmatpush.msra.mxu0 %v1641
    %1659 = vmatpush.msra.mxu0 %v1640
    %1660 = vmatpush.msra.mxu0 %v1639
    %1661 = vmatpush.msra.mxu0 %v1638
    %1662 = vmatpush.msra.mxu0 %v1637
    %1663 = vmatpush.msra.mxu0 %v1636
    %1664 = vmatpush.msra.mxu0 %v1635
    %1665 = vmatpush.msra.mxu0 %v1634
    %1666 = vmatmul.f32.gmra.mxu0 %v1618
    %v1667 = vpop.f32.mrf.mxu0
    %v1668 = vadd.f32 0.0, %v1667
    %1669 = vmatmul.f32.gmra.mxu0 %v1619
    %v1670 = vpop.f32.mrf.mxu0
    %v1671 = vadd.f32 0.0, %v1670
    %1672 = vmatmul.f32.gmra.mxu0 %v1620
    %v1673 = vpop.f32.mrf.mxu0
    %v1674 = vadd.f32 0.0, %v1673
    %1675 = vmatmul.f32.gmra.mxu0 %v1621
    %v1676 = vpop.f32.mrf.mxu0
    %v1677 = vadd.f32 0.0, %v1676
    %1678 = vmatmul.f32.gmra.mxu0 %v1622
    %v1679 = vpop.f32.mrf.mxu0
    %v1680 = vadd.f32 0.0, %v1679
    %1681 = vmatmul.f32.gmra.mxu0 %v1623
    %v1682 = vpop.f32.mrf.mxu0
    %v1683 = vadd.f32 0.0, %v1682
    %1684 = vmatmul.f32.gmra.mxu0 %v1624
    %v1685 = vpop.f32.mrf.mxu0
    %v1686 = vadd.f32 0.0, %v1685
    %1687 = vmatmul.f32.gmra.mxu0 %v1625
    %v1688 = vpop.f32.mrf.mxu0
    %v1689 = vadd.f32 0.0, %v1688
    %1690 = vmatmul.f32.gmra.mxu0 %v1626
    %v1691 = vpop.f32.mrf.mxu0
    %v1692 = vadd.f32 0.0, %v1691
    %1693 = vmatmul.f32.gmra.mxu0 %v1627
    %v1694 = vpop.f32.mrf.mxu0
    %v1695 = vadd.f32 0.0, %v1694
    %1696 = vmatmul.f32.gmra.mxu0 %v1628
    %v1697 = vpop.f32.mrf.mxu0
    %v1698 = vadd.f32 0.0, %v1697
    %1699 = vmatmul.f32.gmra.mxu0 %v1629
    %v1700 = vpop.f32.mrf.mxu0
    %v1701 = vadd.f32 0.0, %v1700
    %1702 = vmatmul.f32.gmra.mxu0 %v1630
    %v1703 = vpop.f32.mrf.mxu0
    %v1704 = vadd.f32 0.0, %v1703
    %1705 = vmatmul.f32.gmra.mxu0 %v1631
    %v1706 = vpop.f32.mrf.mxu0
    %v1707 = vadd.f32 0.0, %v1706
    %1708 = vmatmul.f32.gmra.mxu0 %v1632
    %v1709 = vpop.f32.mrf.mxu0
    %v1710 = vadd.f32 0.0, %v1709
    %1711 = vmatmul.f32.gmra.mxu0 %v1633
    %v1712 = vpop.f32.mrf.mxu0
    %v1713 = vadd.f32 0.0, %v1712
    %1714 = vdwg.mxu0
    %v1715 = vsub.f32 %v1634, %v1668
    %v1716 = vsub.f32 %v1635, %v1671
    %v1717 = vsub.f32 %v1636, %v1674
    %v1718 = vsub.f32 %v1637, %v1677
    %v1719 = vsub.f32 %v1638, %v1680
    %v1720 = vsub.f32 %v1639, %v1683
    %v1721 = vsub.f32 %v1640, %v1686
    %v1722 = vsub.f32 %v1641, %v1689
    %v1723 = vsub.f32 %v1642, %v1692
    %v1724 = vsub.f32 %v1643, %v1695
    %v1725 = vsub.f32 %v1644, %v1698
    %v1726 = vsub.f32 %v1645, %v1701
    %v1727 = vsub.f32 %v1646, %v1704
    %v1728 = vsub.f32 %v1647, %v1707
    %v1729 = vsub.f32 %v1648, %v1710
    %v1730 = vsub.f32 %v1649, %v1713
    %v1731 = vmul.f32 %v1715, %v1715
    %v1732 = vmul.f32 %v1716, %v1716
    %v1733 = vmul.f32 %v1717, %v1717
    %v1734 = vmul.f32 %v1718, %v1718
    %v1735 = vmul.f32 %v1719, %v1719
    %v1736 = vmul.f32 %v1720, %v1720
    %v1737 = vmul.f32 %v1721, %v1721
    %v1738 = vmul.f32 %v1722, %v1722
    %v1739 = vmul.f32 %v1723, %v1723
    %v1740 = vmul.f32 %v1724, %v1724
    %v1741 = vmul.f32 %v1725, %v1725
    %v1742 = vmul.f32 %v1726, %v1726
    %v1743 = vmul.f32 %v1727, %v1727
    %v1744 = vmul.f32 %v1728, %v1728
    %v1745 = vmul.f32 %v1729, %v1729
    %v1746 = vmul.f32 %v1730, %v1730
    %1747 = vmatpush.msra.mxu0 %v1746
    %1748 = vmatpush.msra.mxu0 %v1745
    %1749 = vmatpush.msra.mxu0 %v1744
    %1750 = vmatpush.msra.mxu0 %v1743
    %1751 = vmatpush.msra.mxu0 %v1742
    %1752 = vmatpush.msra.mxu0 %v1741
    %1753 = vmatpush.msra.mxu0 %v1740
    %1754 = vmatpush.msra.mxu0 %v1739
    %1755 = vmatpush.msra.mxu0 %v1738
    %1756 = vmatpush.msra.mxu0 %v1737
    %1757 = vmatpush.msra.mxu0 %v1736
    %1758 = vmatpush.msra.mxu0 %v1735
    %1759 = vmatpush.msra.mxu0 %v1734
    %1760 = vmatpush.msra.mxu0 %v1733
    %1761 = vmatpush.msra.mxu0 %v1732
    %1762 = vmatpush.msra.mxu0 %v1731
    %1763 = vmatmul.f32.gmra.mxu0 %v1618
    %v1764 = vpop.f32.mrf.mxu0
    %v1765 = vadd.f32 1e-05, %v1764
    %1766 = vmatmul.f32.gmra.mxu0 %v1619
    %v1767 = vpop.f32.mrf.mxu0
    %v1768 = vadd.f32 1e-05, %v1767
    %1769 = vmatmul.f32.gmra.mxu0 %v1620
    %v1770 = vpop.f32.mrf.mxu0
    %v1771 = vadd.f32 1e-05, %v1770
    %1772 = vmatmul.f32.gmra.mxu0 %v1621
    %v1773 = vpop.f32.mrf.mxu0
    %v1774 = vadd.f32 1e-05, %v1773
    %1775 = vmatmul.f32.gmra.mxu0 %v1622
    %v1776 = vpop.f32.mrf.mxu0
    %v1777 = vadd.f32 1e-05, %v1776
    %1778 = vmatmul.f32.gmra.mxu0 %v1623
    %v1779 = vpop.f32.mrf.mxu0
    %v1780 = vadd.f32 1e-05, %v1779
    %1781 = vmatmul.f32.gmra.mxu0 %v1624
    %v1782 = vpop.f32.mrf.mxu0
    %v1783 = vadd.f32 1e-05, %v1782
    %1784 = vmatmul.f32.gmra.mxu0 %v1625
    %v1785 = vpop.f32.mrf.mxu0
    %v1786 = vadd.f32 1e-05, %v1785
    %1787 = vmatmul.f32.gmra.mxu0 %v1626
    %v1788 = vpop.f32.mrf.mxu0
    %v1789 = vadd.f32 1e-05, %v1788
    %1790 = vmatmul.f32.gmra.mxu0 %v1627
    %v1791 = vpop.f32.mrf.mxu0
    %v1792 = vadd.f32 1e-05, %v1791
    %1793 = vmatmul.f32.gmra.mxu0 %v1628
    %v1794 = vpop.f32.mrf.mxu0
    %v1795 = vadd.f32 1e-05, %v1794
    %1796 = vmatmul.f32.gmra.mxu0 %v1629
    %v1797 = vpop.f32.mrf.mxu0
    %v1798 = vadd.f32 1e-05, %v1797
    %1799 = vmatmul.f32.gmra.mxu0 %v1630
    %v1800 = vpop.f32.mrf.mxu0
    %v1801 = vadd.f32 1e-05, %v1800
    %1802 = vmatmul.f32.gmra.mxu0 %v1631
    %v1803 = vpop.f32.mrf.mxu0
    %v1804 = vadd.f32 1e-05, %v1803
    %1805 = vmatmul.f32.gmra.mxu0 %v1632
    %v1806 = vpop.f32.mrf.mxu0
    %v1807 = vadd.f32 1e-05, %v1806
    %1808 = vmatmul.f32.gmra.mxu0 %v1633
    %v1809 = vpop.f32.mrf.mxu0
    %v1810 = vadd.f32 1e-05, %v1809
    %1811 = vdwg.mxu0
    %v1812 = vrsqrt.pop %v1765
    %v1813 = vmul.f32 %v1812, %v1765
    %v1814 = vmul.f32 %v1813, %v1812
    %v1815 = vmul.f32 0.5, %v1814
    %v1816 = vsub.f32 1.5, %v1815
    %v1817 = vmul.f32 %v1812, %v1816
    %vm1818 = vweird.f32 %v1765
    %vm1819 = vweird.f32 %v1812
    %vm1820 = vmor %vm1818, %vm1819
    %v1821 = vsel %vm1820, %v1812, %v1817
    %v1822 = vrsqrt.pop %v1768
    %v1823 = vmul.f32 %v1822, %v1768
    %v1824 = vmul.f32 %v1823, %v1822
    %v1825 = vmul.f32 0.5, %v1824
    %v1826 = vsub.f32 1.5, %v1825
    %v1827 = vmul.f32 %v1822, %v1826
    %vm1828 = vweird.f32 %v1768
    %vm1829 = vweird.f32 %v1822
    %vm1830 = vmor %vm1828, %vm1829
    %v1831 = vsel %vm1830, %v1822, %v1827
    %v1832 = vrsqrt.pop %v1771
    %v1833 = vmul.f32 %v1832, %v1771
    %v1834 = vmul.f32 %v1833, %v1832
    %v1835 = vmul.f32 0.5, %v1834
    %v1836 = vsub.f32 1.5, %v1835
    %v1837 = vmul.f32 %v1832, %v1836
    %vm1838 = vweird.f32 %v1771
    %vm1839 = vweird.f32 %v1832
    %vm1840 = vmor %vm1838, %vm1839
    %v1841 = vsel %vm1840, %v1832, %v1837
    %v1842 = vrsqrt.pop %v1774
    %v1843 = vmul.f32 %v1842, %v1774
    %v1844 = vmul.f32 %v1843, %v1842
    %v1845 = vmul.f32 0.5, %v1844
    %v1846 = vsub.f32 1.5, %v1845
    %v1847 = vmul.f32 %v1842, %v1846
    %vm1848 = vweird.f32 %v1774
    %vm1849 = vweird.f32 %v1842
    %vm1850 = vmor %vm1848, %vm1849
    %v1851 = vsel %vm1850, %v1842, %v1847
    %v1852 = vrsqrt.pop %v1777
    %v1853 = vmul.f32 %v1852, %v1777
    %v1854 = vmul.f32 %v1853, %v1852
    %v1855 = vmul.f32 0.5, %v1854
    %v1856 = vsub.f32 1.5, %v1855
    %v1857 = vmul.f32 %v1852, %v1856
    %vm1858 = vweird.f32 %v1777
    %vm1859 = vweird.f32 %v1852
    %vm1860 = vmor %vm1858, %vm1859
    %v1861 = vsel %vm1860, %v1852, %v1857
    %v1862 = vrsqrt.pop %v1780
    %v1863 = vmul.f32 %v1862, %v1780
    %v1864 = vmul.f32 %v1863, %v1862
    %v1865 = vmul.f32 0.5, %v1864
    %v1866 = vsub.f32 1.5, %v1865
    %v1867 = vmul.f32 %v1862, %v1866
    %vm1868 = vweird.f32 %v1780
    %vm1869 = vweird.f32 %v1862
    %vm1870 = vmor %vm1868, %vm1869
    %v1871 = vsel %vm1870, %v1862, %v1867
    %v1872 = vrsqrt.pop %v1783
    %v1873 = vmul.f32 %v1872, %v1783
    %v1874 = vmul.f32 %v1873, %v1872
    %v1875 = vmul.f32 0.5, %v1874
    %v1876 = vsub.f32 1.5, %v1875
    %v1877 = vmul.f32 %v1872, %v1876
    %vm1878 = vweird.f32 %v1783
    %vm1879 = vweird.f32 %v1872
    %vm1880 = vmor %vm1878, %vm1879
    %v1881 = vsel %vm1880, %v1872, %v1877
    %v1882 = vrsqrt.pop %v1786
    %v1883 = vmul.f32 %v1882, %v1786
    %v1884 = vmul.f32 %v1883, %v1882
    %v1885 = vmul.f32 0.5, %v1884
    %v1886 = vsub.f32 1.5, %v1885
    %v1887 = vmul.f32 %v1882, %v1886
    %vm1888 = vweird.f32 %v1786
    %vm1889 = vweird.f32 %v1882
    %vm1890 = vmor %vm1888, %vm1889
    %v1891 = vsel %vm1890, %v1882, %v1887
    %v1892 = vrsqrt.pop %v1789
    %v1893 = vmul.f32 %v1892, %v1789
    %v1894 = vmul.f32 %v1893, %v1892
    %v1895 = vmul.f32 0.5, %v1894
    %v1896 = vsub.f32 1.5, %v1895
    %v1897 = vmul.f32 %v1892, %v1896
    %vm1898 = vweird.f32 %v1789
    %vm1899 = vweird.f32 %v1892
    %vm1900 = vmor %vm1898, %vm1899
    %v1901 = vsel %vm1900, %v1892, %v1897
    %v1902 = vrsqrt.pop %v1792
    %v1903 = vmul.f32 %v1902, %v1792
    %v1904 = vmul.f32 %v1903, %v1902
    %v1905 = vmul.f32 0.5, %v1904
    %v1906 = vsub.f32 1.5, %v1905
    %v1907 = vmul.f32 %v1902, %v1906
    %vm1908 = vweird.f32 %v1792
    %vm1909 = vweird.f32 %v1902
    %vm1910 = vmor %vm1908, %vm1909
    %v1911 = vsel %vm1910, %v1902, %v1907
    %v1912 = vrsqrt.pop %v1795
    %v1913 = vmul.f32 %v1912, %v1795
    %v1914 = vmul.f32 %v1913, %v1912
    %v1915 = vmul.f32 0.5, %v1914
    %v1916 = vsub.f32 1.5, %v1915
    %v1917 = vmul.f32 %v1912, %v1916
    %vm1918 = vweird.f32 %v1795
    %vm1919 = vweird.f32 %v1912
    %vm1920 = vmor %vm1918, %vm1919
    %v1921 = vsel %vm1920, %v1912, %v1917
    %v1922 = vrsqrt.pop %v1798
    %v1923 = vmul.f32 %v1922, %v1798
    %v1924 = vmul.f32 %v1923, %v1922
    %v1925 = vmul.f32 0.5, %v1924
    %v1926 = vsub.f32 1.5, %v1925
    %v1927 = vmul.f32 %v1922, %v1926
    %vm1928 = vweird.f32 %v1798
    %vm1929 = vweird.f32 %v1922
    %vm1930 = vmor %vm1928, %vm1929
    %v1931 = vsel %vm1930, %v1922, %v1927
    %v1932 = vrsqrt.pop %v1801
    %v1933 = vmul.f32 %v1932, %v1801
    %v1934 = vmul.f32 %v1933, %v1932
    %v1935 = vmul.f32 0.5, %v1934
    %v1936 = vsub.f32 1.5, %v1935
    %v1937 = vmul.f32 %v1932, %v1936
    %vm1938 = vweird.f32 %v1801
    %vm1939 = vweird.f32 %v1932
    %vm1940 = vmor %vm1938, %vm1939
    %v1941 = vsel %vm1940, %v1932, %v1937
    %v1942 = vrsqrt.pop %v1804
    %v1943 = vmul.f32 %v1942, %v1804
    %v1944 = vmul.f32 %v1943, %v1942
    %v1945 = vmul.f32 0.5, %v1944
    %v1946 = vsub.f32 1.5, %v1945
    %v1947 = vmul.f32 %v1942, %v1946
    %vm1948 = vweird.f32 %v1804
    %vm1949 = vweird.f32 %v1942
    %vm1950 = vmor %vm1948, %vm1949
    %v1951 = vsel %vm1950, %v1942, %v1947
    %v1952 = vrsqrt.pop %v1807
    %v1953 = vmul.f32 %v1952, %v1807
    %v1954 = vmul.f32 %v1953, %v1952
    %v1955 = vmul.f32 0.5, %v1954
    %v1956 = vsub.f32 1.5, %v1955
    %v1957 = vmul.f32 %v1952, %v1956
    %vm1958 = vweird.f32 %v1807
    %vm1959 = vweird.f32 %v1952
    %vm1960 = vmor %vm1958, %vm1959
    %v1961 = vsel %vm1960, %v1952, %v1957
    %v1962 = vrsqrt.pop %v1810
    %v1963 = vmul.f32 %v1962, %v1810
    %v1964 = vmul.f32 %v1963, %v1962
    %v1965 = vmul.f32 0.5, %v1964
    %v1966 = vsub.f32 1.5, %v1965
    %v1967 = vmul.f32 %v1962, %v1966
    %vm1968 = vweird.f32 %v1810
    %vm1969 = vweird.f32 %v1962
    %vm1970 = vmor %vm1968, %vm1969
    %v1971 = vsel %vm1970, %v1962, %v1967
    %v1972 = vmul.f32 %v1715, %v1821
    %v1973 = vmul.f32 %v1716, %v1831
    %v1974 = vmul.f32 %v1717, %v1841
    %v1975 = vmul.f32 %v1718, %v1851
    %v1976 = vmul.f32 %v1719, %v1861
    %v1977 = vmul.f32 %v1720, %v1871
    %v1978 = vmul.f32 %v1721, %v1881
    %v1979 = vmul.f32 %v1722, %v1891
    %v1980 = vmul.f32 %v1723, %v1901
    %v1981 = vmul.f32 %v1724, %v1911
    %v1982 = vmul.f32 %v1725, %v1921
    %v1983 = vmul.f32 %v1726, %v1931
    %v1984 = vmul.f32 %v1727, %v1941
    %v1985 = vmul.f32 %v1728, %v1951
    %v1986 = vmul.f32 %v1729, %v1961
    %v1987 = vmul.f32 %v1730, %v1971
    %1988 = vset.pattern.permute.xlu0 4
    %1989 = vperm.xlu0 %1988, %v534
    %v1990 = vpop.permute.xlu0 %1989
    %1992 = vset.pattern.permute.xlu0 4
    %1993 = vperm.xlu0 %1992, %v535
    %v1994 = vpop.permute.xlu0 %1993
    %1996 = vset.pattern.permute.xlu0 4
    %1997 = vperm.xlu0 %1996, %v536
    %v1998 = vpop.permute.xlu0 %1997
    %2000 = vset.pattern.permute.xlu0 4
    %2001 = vperm.xlu0 %2000, %v537
    %v2002 = vpop.permute.xlu0 %2001
    %2004 = vset.pattern.permute.xlu0 4
    %2005 = vperm.xlu0 %2004, %v538
    %v2006 = vpop.permute.xlu0 %2005
    %2008 = vset.pattern.permute.xlu0 4
    %2009 = vperm.xlu0 %2008, %v539
    %v2010 = vpop.permute.xlu0 %2009
    %2012 = vset.pattern.permute.xlu0 4
    %2013 = vperm.xlu0 %2012, %v540
    %v2014 = vpop.permute.xlu0 %2013
    %2016 = vset.pattern.permute.xlu0 4
    %2017 = vperm.xlu0 %2016, %v541
    %v2018 = vpop.permute.xlu0 %2017
    %2020 = vset.pattern.permute.xlu0 4
    %2021 = vperm.xlu0 %2020, %v542
    %v2022 = vpop.permute.xlu0 %2021
    %2024 = vset.pattern.permute.xlu0 4
    %2025 = vperm.xlu0 %2024, %v543
    %v2026 = vpop.permute.xlu0 %2025
    %2028 = vset.pattern.permute.xlu0 4
    %2029 = vperm.xlu0 %2028, %v544
    %v2030 = vpop.permute.xlu0 %2029
    %2032 = vset.pattern.permute.xlu0 4
    %2033 = vperm.xlu0 %2032, %v545
    %v2034 = vpop.permute.xlu0 %2033
    %2036 = vset.pattern.permute.xlu0 4
    %2037 = vperm.xlu0 %2036, %v546
    %v2038 = vpop.permute.xlu0 %2037
    %2040 = vset.pattern.permute.xlu0 4
    %2041 = vperm.xlu0 %2040, %v547
    %v2042 = vpop.permute.xlu0 %2041
    %2044 = vset.pattern.permute.xlu0 4
    %2045 = vperm.xlu0 %2044, %v548
    %v2046 = vpop.permute.xlu0 %2045
    %2048 = vset.pattern.permute.xlu0 4
    %2049 = vperm.xlu0 %2048, %v549
    %v2050 = vpop.permute.xlu0 %2049
    %v2052 = vmul.f32 %v1972, %v1990
    %v2053 = vmul.f32 %v1973, %v1994
    %v2054 = vmul.f32 %v1974, %v1998
    %v2055 = vmul.f32 %v1975, %v2002
    %v2056 = vmul.f32 %v1976, %v2006
    %v2057 = vmul.f32 %v1977, %v2010
    %v2058 = vmul.f32 %v1978, %v2014
    %v2059 = vmul.f32 %v1979, %v2018
    %v2060 = vmul.f32 %v1980, %v2022
    %v2061 = vmul.f32 %v1981, %v2026
    %v2062 = vmul.f32 %v1982, %v2030
    %v2063 = vmul.f32 %v1983, %v2034
    %v2064 = vmul.f32 %v1984, %v2038
    %v2065 = vmul.f32 %v1985, %v2042
    %v2066 = vmul.f32 %v1986, %v2046
    %v2067 = vmul.f32 %v1987, %v2050
    %2068 = vset.pattern.permute.xlu0 5
    %2069 = vperm.xlu0 %2068, %v534
    %v2070 = vpop.permute.xlu0 %2069
    %2072 = vset.pattern.permute.xlu0 5
    %2073 = vperm.xlu0 %2072, %v535
    %v2074 = vpop.permute.xlu0 %2073
    %2076 = vset.pattern.permute.xlu0 5
    %2077 = vperm.xlu0 %2076, %v536
    %v2078 = vpop.permute.xlu0 %2077
    %2080 = vset.pattern.permute.xlu0 5
    %2081 = vperm.xlu0 %2080, %v537
    %v2082 = vpop.permute.xlu0 %2081
    %2084 = vset.pattern.permute.xlu0 5
    %2085 = vperm.xlu0 %2084, %v538
    %v2086 = vpop.permute.xlu0 %2085
    %2088 = vset.pattern.permute.xlu0 5
    %2089 = vperm.xlu0 %2088, %v539
    %v2090 = vpop.permute.xlu0 %2089
    %2092 = vset.pattern.permute.xlu0 5
    %2093 = vperm.xlu0 %2092, %v540
    %v2094 = vpop.permute.xlu0 %2093
    %2096 = vset.pattern.permute.xlu0 5
    %2097 = vperm.xlu0 %2096, %v541
    %v2098 = vpop.permute.xlu0 %2097
    %2100 = vset.pattern.permute.xlu0 5
    %2101 = vperm.xlu0 %2100, %v542
    %v2102 = vpop.permute.xlu0 %2101
    %2104 = vset.pattern.permute.xlu0 5
    %2105 = vperm.xlu0 %2104, %v543
    %v2106 = vpop.permute.xlu0 %2105
    %2108 = vset.pattern.permute.xlu0 5
    %2109 = vperm.xlu0 %2108, %v544
    %v2110 = vpop.permute.xlu0 %2109
    %2112 = vset.pattern.permute.xlu0 5
    %2113 = vperm.xlu0 %2112, %v545
    %v2114 = vpop.permute.xlu0 %2113
    %2116 = vset.pattern.permute.xlu0 5
    %2117 = vperm.xlu0 %2116, %v546
    %v2118 = vpop.permute.xlu0 %2117
    %2120 = vset.pattern.permute.xlu0 5
    %2121 = vperm.xlu0 %2120, %v547
    %v2122 = vpop.permute.xlu0 %2121
    %2124 = vset.pattern.permute.xlu0 5
    %2125 = vperm.xlu0 %2124, %v548
    %v2126 = vpop.permute.xlu0 %2125
    %2128 = vset.pattern.permute.xlu0 5
    %2129 = vperm.xlu0 %2128, %v549
    %v2130 = vpop.permute.xlu0 %2129
    %v2132 = vadd.f32 %v2052, %v2070
    %v2133 = vadd.f32 %v2053, %v2074
    %v2134 = vadd.f32 %v2054, %v2078
    %v2135 = vadd.f32 %v2055, %v2082
    %v2136 = vadd.f32 %v2056, %v2086
    %v2137 = vadd.f32 %v2057, %v2090
    %v2138 = vadd.f32 %v2058, %v2094
    %v2139 = vadd.f32 %v2059, %v2098
    %v2140 = vadd.f32 %v2060, %v2102
    %v2141 = vadd.f32 %v2061, %v2106
    %v2142 = vadd.f32 %v2062, %v2110
    %v2143 = vadd.f32 %v2063, %v2114
    %v2144 = vadd.f32 %v2064, %v2118
    %v2145 = vadd.f32 %v2065, %v2122
    %v2146 = vadd.f32 %v2066, %v2126
    %v2147 = vadd.f32 %v2067, %v2130
    %v2148 = vld [vmem:[#allocation5 + $0x200] sm:$0xff]
    %v2149 = vld [vmem:[#allocation5 + $0x208] sm:$0xff]
    %v2150 = vld [vmem:[#allocation5 + $0x210] sm:$0xff]
    %v2151 = vld [vmem:[#allocation5 + $0x218] sm:$0xff]
    %v2152 = vld [vmem:[#allocation5 + $0x220] sm:$0xff]
    %v2153 = vld [vmem:[#allocation5 + $0x228] sm:$0xff]
    %v2154 = vld [vmem:[#allocation5 + $0x230] sm:$0xff]
    %v2155 = vld [vmem:[#allocation5 + $0x238] sm:$0xff]
    %v2156 = vld [vmem:[#allocation5 + $0x240] sm:$0xff]
    %v2157 = vld [vmem:[#allocation5 + $0x248] sm:$0xff]
    %v2158 = vld [vmem:[#allocation5 + $0x250] sm:$0xff]
    %v2159 = vld [vmem:[#allocation5 + $0x258] sm:$0xff]
    %v2160 = vld [vmem:[#allocation5 + $0x260] sm:$0xff]
    %v2161 = vld [vmem:[#allocation5 + $0x268] sm:$0xff]
    %v2162 = vld [vmem:[#allocation5 + $0x270] sm:$0xff]
    %v2163 = vld [vmem:[#allocation5 + $0x278] sm:$0xff]
    %2164 = vset.pattern.permute.xlu0 6
    %2165 = vperm.xlu0 %2164, %v534
    %v2166 = vpop.permute.xlu0 %2165
    %2168 = vset.pattern.permute.xlu0 6
    %2169 = vperm.xlu0 %2168, %v535
    %v2170 = vpop.permute.xlu0 %2169
    %2172 = vset.pattern.permute.xlu0 6
    %2173 = vperm.xlu0 %2172, %v536
    %v2174 = vpop.permute.xlu0 %2173
    %2176 = vset.pattern.permute.xlu0 6
    %2177 = vperm.xlu0 %2176, %v537
    %v2178 = vpop.permute.xlu0 %2177
    %2180 = vset.pattern.permute.xlu0 6
    %2181 = vperm.xlu0 %2180, %v538
    %v2182 = vpop.permute.xlu0 %2181
    %2184 = vset.pattern.permute.xlu0 6
    %2185 = vperm.xlu0 %2184, %v539
    %v2186 = vpop.permute.xlu0 %2185
    %2188 = vset.pattern.permute.xlu0 6
    %2189 = vperm.xlu0 %2188, %v540
    %v2190 = vpop.permute.xlu0 %2189
    %2192 = vset.pattern.permute.xlu0 6
    %2193 = vperm.xlu0 %2192, %v541
    %v2194 = vpop.permute.xlu0 %2193
    %2196 = vset.pattern.permute.xlu0 6
    %2197 = vperm.xlu0 %2196, %v542
    %v2198 = vpop.permute.xlu0 %2197
    %2200 = vset.pattern.permute.xlu0 6
    %2201 = vperm.xlu0 %2200, %v543
    %v2202 = vpop.permute.xlu0 %2201
    %2204 = vset.pattern.permute.xlu0 6
    %2205 = vperm.xlu0 %2204, %v544
    %v2206 = vpop.permute.xlu0 %2205
    %2208 = vset.pattern.permute.xlu0 6
    %2209 = vperm.xlu0 %2208, %v545
    %v2210 = vpop.permute.xlu0 %2209
    %2212 = vset.pattern.permute.xlu0 6
    %2213 = vperm.xlu0 %2212, %v546
    %v2214 = vpop.permute.xlu0 %2213
    %2216 = vset.pattern.permute.xlu0 6
    %2217 = vperm.xlu0 %2216, %v547
    %v2218 = vpop.permute.xlu0 %2217
    %2220 = vset.pattern.permute.xlu0 6
    %2221 = vperm.xlu0 %2220, %v548
    %v2222 = vpop.permute.xlu0 %2221
    %2224 = vset.pattern.permute.xlu0 6
    %2225 = vperm.xlu0 %2224, %v549
    %v2226 = vpop.permute.xlu0 %2225
    %2228 = vmatpush.msra.mxu0 %v2147
    %2229 = vmatpush.msra.mxu0 %v2146
    %2230 = vmatpush.msra.mxu0 %v2145
    %2231 = vmatpush.msra.mxu0 %v2144
    %2232 = vmatpush.msra.mxu0 %v2143
    %2233 = vmatpush.msra.mxu0 %v2142
    %2234 = vmatpush.msra.mxu0 %v2141
    %2235 = vmatpush.msra.mxu0 %v2140
    %2236 = vmatpush.msra.mxu0 %v2139
    %2237 = vmatpush.msra.mxu0 %v2138
    %2238 = vmatpush.msra.mxu0 %v2137
    %2239 = vmatpush.msra.mxu0 %v2136
    %2240 = vmatpush.msra.mxu0 %v2135
    %2241 = vmatpush.msra.mxu0 %v2134
    %2242 = vmatpush.msra.mxu0 %v2133
    %2243 = vmatpush.msra.mxu0 %v2132
    %2244 = vmatmul.f32.gmra.mxu0 %v2148
    %v2245 = vpop.f32.mrf.mxu0
    %v2246 = vadd.f32 %v2166, %v2245
    %2247 = vmatmul.f32.gmra.mxu0 %v2149
    %v2248 = vpop.f32.mrf.mxu0
    %v2249 = vadd.f32 %v2170, %v2248
    %2250 = vmatmul.f32.gmra.mxu0 %v2150
    %v2251 = vpop.f32.mrf.mxu0
    %v2252 = vadd.f32 %v2174, %v2251
    %2253 = vmatmul.f32.gmra.mxu0 %v2151
    %v2254 = vpop.f32.mrf.mxu0
    %v2255 = vadd.f32 %v2178, %v2254
    %2256 = vmatmul.f32.gmra.mxu0 %v2152
    %v2257 = vpop.f32.mrf.mxu0
    %v2258 = vadd.f32 %v2182, %v2257
    %2259 = vmatmul.f32.gmra.mxu0 %v2153
    %v2260 = vpop.f32.mrf.mxu0
    %v2261 = vadd.f32 %v2186, %v2260
    %2262 = vmatmul.f32.gmra.mxu0 %v2154
    %v2263 = vpop.f32.mrf.mxu0
    %v2264 = vadd.f32 %v2190, %v2263
    %2265 = vmatmul.f32.gmra.mxu0 %v2155
    %v2266 = vpop.f32.mrf.mxu0
    %v2267 = vadd.f32 %v2194, %v2266
    %2268 = vmatmul.f32.gmra.mxu0 %v2156
    %v2269 = vpop.f32.mrf.mxu0
    %v2270 = vadd.f32 %v2198, %v2269
    %2271 = vmatmul.f32.gmra.mxu0 %v2157
    %v2272 = vpop.f32.mrf.mxu0
    %v2273 = vadd.f32 %v2202, %v2272
    %2274 = vmatmul.f32.gmra.mxu0 %v2158
    %v2275 = vpop.f32.mrf.mxu0
    %v2276 = vadd.f32 %v2206, %v2275
    %2277 = vmatmul.f32.gmra.mxu0 %v2159
    %v2278 = vpop.f32.mrf.mxu0
    %v2279 = vadd.f32 %v2210, %v2278
    %2280 = vmatmul.f32.gmra.mxu0 %v2160
    %v2281 = vpop.f32.mrf.mxu0
    %v2282 = vadd.f32 %v2214, %v2281
    %2283 = vmatmul.f32.gmra.mxu0 %v2161
    %v2284 = vpop.f32.mrf.mxu0
    %v2285 = vadd.f32 %v2218, %v2284
    %2286 = vmatmul.f32.gmra.mxu0 %v2162
    %v2287 = vpop.f32.mrf.mxu0
    %v2288 = vadd.f32 %v2222, %v2287
    %2289 = vmatmul.f32.gmra.mxu0 %v2163
    %v2290 = vpop.f32.mrf.mxu0
    %v2291 = vadd.f32 %v2226, %v2290
    %2292 = vdwg.mxu0
    %v2293 = vmax.f32 %v2246, 0.0
    %v2294 = vmax.f32 %v2249, 0.0
    %v2295 = vmax.f32 %v2252, 0.0
    %v2296 = vmax.f32 %v2255, 0.0
    %v2297 = vmax.f32 %v2258, 0.0
    %v2298 = vmax.f32 %v2261, 0.0
    %v2299 = vmax.f32 %v2264, 0.0
    %v2300 = vmax.f32 %v2267, 0.0
    %v2301 = vmax.f32 %v2270, 0.0
    %v2302 = vmax.f32 %v2273, 0.0
    %v2303 = vmax.f32 %v2276, 0.0
    %v2304 = vmax.f32 %v2279, 0.0
    %v2305 = vmax.f32 %v2282, 0.0
    %v2306 = vmax.f32 %v2285, 0.0
    %v2307 = vmax.f32 %v2288, 0.0
    %v2308 = vmax.f32 %v2291, 0.0
    %v2309 = vld [vmem:[#allocation5 + $0x280] sm:$0xff]
    %v2310 = vld [vmem:[#allocation5 + $0x288] sm:$0xff]
    %v2311 = vld [vmem:[#allocation5 + $0x290] sm:$0xff]
    %v2312 = vld [vmem:[#allocation5 + $0x298] sm:$0xff]
    %v2313 = vld [vmem:[#allocation5 + $0x2a0] sm:$0xff]
    %v2314 = vld [vmem:[#allocation5 + $0x2a8] sm:$0xff]
    %v2315 = vld [vmem:[#allocation5 + $0x2b0] sm:$0xff]
    %v2316 = vld [vmem:[#allocation5 + $0x2b8] sm:$0xff]
    %v2317 = vld [vmem:[#allocation5 + $0x2c0] sm:$0xff]
    %v2318 = vld [vmem:[#allocation5 + $0x2c8] sm:$0xff]
    %v2319 = vld [vmem:[#allocation5 + $0x2d0] sm:$0xff]
    %v2320 = vld [vmem:[#allocation5 + $0x2d8] sm:$0xff]
    %v2321 = vld [vmem:[#allocation5 + $0x2e0] sm:$0xff]
    %v2322 = vld [vmem:[#allocation5 + $0x2e8] sm:$0xff]
    %v2323 = vld [vmem:[#allocation5 + $0x2f0] sm:$0xff]
    %v2324 = vld [vmem:[#allocation5 + $0x2f8] sm:$0xff]
    %2325 = vset.pattern.permute.xlu0 7
    %2326 = vperm.xlu0 %2325, %v534
    %v2327 = vpop.permute.xlu0 %2326
    %2329 = vset.pattern.permute.xlu0 7
    %2330 = vperm.xlu0 %2329, %v535
    %v2331 = vpop.permute.xlu0 %2330
    %2333 = vset.pattern.permute.xlu0 7
    %2334 = vperm.xlu0 %2333, %v536
    %v2335 = vpop.permute.xlu0 %2334
    %2337 = vset.pattern.permute.xlu0 7
    %2338 = vperm.xlu0 %2337, %v537
    %v2339 = vpop.permute.xlu0 %2338
    %2341 = vset.pattern.permute.xlu0 7
    %2342 = vperm.xlu0 %2341, %v538
    %v2343 = vpop.permute.xlu0 %2342
    %2345 = vset.pattern.permute.xlu0 7
    %2346 = vperm.xlu0 %2345, %v539
    %v2347 = vpop.permute.xlu0 %2346
    %2349 = vset.pattern.permute.xlu0 7
    %2350 = vperm.xlu0 %2349, %v540
    %v2351 = vpop.permute.xlu0 %2350
    %2353 = vset.pattern.permute.xlu0 7
    %2354 = vperm.xlu0 %2353, %v541
    %v2355 = vpop.permute.xlu0 %2354
    %2357 = vset.pattern.permute.xlu0 7
    %2358 = vperm.xlu0 %2357, %v542
    %v2359 = vpop.permute.xlu0 %2358
    %2361 = vset.pattern.permute.xlu0 7
    %2362 = vperm.xlu0 %2361, %v543
    %v2363 = vpop.permute.xlu0 %2362
    %2365 = vset.pattern.permute.xlu0 7
    %2366 = vperm.xlu0 %2365, %v544
    %v2367 = vpop.permute.xlu0 %2366
    %2369 = vset.pattern.permute.xlu0 7
    %2370 = vperm.xlu0 %2369, %v545
    %v2371 = vpop.permute.xlu0 %2370
    %2373 = vset.pattern.permute.xlu0 7
    %2374 = vperm.xlu0 %2373, %v546
    %v2375 = vpop.permute.xlu0 %2374
    %2377 = vset.pattern.permute.xlu0 7
    %2378 = vperm.xlu0 %2377, %v547
    %v2379 = vpop.permute.xlu0 %2378
    %2381 = vset.pattern.permute.xlu0 7
    %2382 = vperm.xlu0 %2381, %v548
    %v2383 = vpop.permute.xlu0 %2382
    %2385 = vset.pattern.permute.xlu0 7
    %2386 = vperm.xlu0 %2385, %v549
    %v2387 = vpop.permute.xlu0 %2386
    %2389 = vmatpush.msra.mxu0 %v2308
    %2390 = vmatpush.msra.mxu0 %v2307
    %2391 = vmatpush.msra.mxu0 %v2306
    %2392 = vmatpush.msra.mxu0 %v2305
    %2393 = vmatpush.msra.mxu0 %v2304
    %2394 = vmatpush.msra.mxu0 %v2303
    %2395 = vmatpush.msra.mxu0 %v2302
    %2396 = vmatpush.msra.mxu0 %v2301
    %2397 = vmatpush.msra.mxu0 %v2300
    %2398 = vmatpush.msra.mxu0 %v2299
    %2399 = vmatpush.msra.mxu0 %v2298
    %2400 = vmatpush.msra.mxu0 %v2297
    %2401 = vmatpush.msra.mxu0 %v2296
    %2402 = vmatpush.msra.mxu0 %v2295
    %2403 = vmatpush.msra.mxu0 %v2294
    %2404 = vmatpush.msra.mxu0 %v2293
    %2405 = vmatmul.f32.gmra.mxu0 %v2309
    %v2406 = vpop.f32.mrf.mxu0
    %v2407 = vadd.f32 %v2327, %v2406
    %2408 = vmatmul.f32.gmra.mxu0 %v2310
    %v2409 = vpop.f32.mrf.mxu0
    %v2410 = vadd.f32 %v2331, %v2409
    %2411 = vmatmul.f32.gmra.mxu0 %v2311
    %v2412 = vpop.f32.mrf.mxu0
    %v2413 = vadd.f32 %v2335, %v2412
    %2414 = vmatmul.f32.gmra.mxu0 %v2312
    %v2415 = vpop.f32.mrf.mxu0
    %v2416 = vadd.f32 %v2339, %v2415
    %2417 = vmatmul.f32.gmra.mxu0 %v2313
    %v2418 = vpop.f32.mrf.mxu0
    %v2419 = vadd.f32 %v2343, %v2418
    %2420 = vmatmul.f32.gmra.mxu0 %v2314
    %v2421 = vpop.f32.mrf.mxu0
    %v2422 = vadd.f32 %v2347, %v2421
    %2423 = vmatmul.f32.gmra.mxu0 %v2315
    %v2424 = vpop.f32.mrf.mxu0
    %v2425 = vadd.f32 %v2351, %v2424
    %2426 = vmatmul.f32.gmra.mxu0 %v2316
    %v2427 = vpop.f32.mrf.mxu0
    %v2428 = vadd.f32 %v2355, %v2427
    %2429 = vmatmul.f32.gmra.mxu0 %v2317
    %v2430 = vpop.f32.mrf.mxu0
    %v2431 = vadd.f32 %v2359, %v2430
    %2432 = vmatmul.f32.gmra.mxu0 %v2318
    %v2433 = vpop.f32.mrf.mxu0
    %v2434 = vadd.f32 %v2363, %v2433
    %2435 = vmatmul.f32.gmra.mxu0 %v2319
    %v2436 = vpop.f32.mrf.mxu0
    %v2437 = vadd.f32 %v2367, %v2436
    %2438 = vmatmul.f32.gmra.mxu0 %v2320
    %v2439 = vpop.f32.mrf.mxu0
    %v2440 = vadd.f32 %v2371, %v2439
    %2441 = vmatmul.f32.gmra.mxu0 %v2321
    %v2442 = vpop.f32.mrf.mxu0
    %v2443 = vadd.f32 %v2375, %v2442
    %2444 = vmatmul.f32.gmra.mxu0 %v2322
    %v2445 = vpop.f32.mrf.mxu0
    %v2446 = vadd.f32 %v2379, %v2445
    %2447 = vmatmul.f32.gmra.mxu0 %v2323
    %v2448 = vpop.f32.mrf.mxu0
    %v2449 = vadd.f32 %v2383, %v2448
    %2450 = vmatmul.f32.gmra.mxu0 %v2324
    %v2451 = vpop.f32.mrf.mxu0
    %v2452 = vadd.f32 %v2387, %v2451
    %2453 = vdwg.mxu0
    %v2454 = vadd.f32 %v2132, %v2407
    %v2455 = vadd.f32 %v2133, %v2410
    %v2456 = vadd.f32 %v2134, %v2413
    %v2457 = vadd.f32 %v2135, %v2416
    %v2458 = vadd.f32 %v2136, %v2419
    %v2459 = vadd.f32 %v2137, %v2422
    %v2460 = vadd.f32 %v2138, %v2425
    %v2461 = vadd.f32 %v2139, %v2428
    %v2462 = vadd.f32 %v2140, %v2431
    %v2463 = vadd.f32 %v2141, %v2434
    %v2464 = vadd.f32 %v2142, %v2437
    %v2465 = vadd.f32 %v2143, %v2440
    %v2466 = vadd.f32 %v2144, %v2443
    %v2467 = vadd.f32 %v2145, %v2446
    %v2468 = vadd.f32 %v2146, %v2449
    %v2469 = vadd.f32 %v2147, %v2452
    %2470 = vmatpush.msra.mxu0 %v2469
    %2471 = vmatpush.msra.mxu0 %v2468
    %2472 = vmatpush.msra.mxu0 %v2467
    %2473 = vmatpush.msra.mxu0 %v2466
    %2474 = vmatpush.msra.mxu0 %v2465
    %2475 = vmatpush.msra.mxu0 %v2464
    %2476 = vmatpush.msra.mxu0 %v2463
    %2477 = vmatpush.msra.mxu0 %v2462
    %2478 = vmatpush.msra.mxu0 %v2461
    %2479 = vmatpush.msra.mxu0 %v2460
    %2480 = vmatpush.msra.mxu0 %v2459
    %2481 = vmatpush.msra.mxu0 %v2458
    %2482 = vmatpush.msra.mxu0 %v2457
    %2483 = vmatpush.msra.mxu0 %v2456
    %2484 = vmatpush.msra.mxu0 %v2455
    %2485 = vmatpush.msra.mxu0 %v2454
    %2486 = vmatmul.f32.gmra.mxu0 %v1618
    %v2487 = vpop.f32.mrf.mxu0
    %v2488 = vadd.f32 0.0, %v2487
    %2489 = vmatmul.f32.gmra.mxu0 %v1619
    %v2490 = vpop.f32.mrf.mxu0
    %v2491 = vadd.f32 0.0, %v2490
    %2492 = vmatmul.f32.gmra.mxu0 %v1620
    %v2493 = vpop.f32.mrf.mxu0
    %v2494 = vadd.f32 0.0, %v2493
    %2495 = vmatmul.f32.gmra.mxu0 %v1621
    %v2496 = vpop.f32.mrf.mxu0
    %v2497 = vadd.f32 0.0, %v2496
    %2498 = vmatmul.f32.gmra.mxu0 %v1622
    %v2499 = vpop.f32.mrf.mxu0
    %v2500 = vadd.f32 0.0, %v2499
    %2501 = vmatmul.f32.gmra.mxu0 %v1623
    %v2502 = vpop.f32.mrf.mxu0
    %v2503 = vadd.f32 0.0, %v2502
    %2504 = vmatmul.f32.gmra.mxu0 %v1624
    %v2505 = vpop.f32.mrf.mxu0
    %v2506 = vadd.f32 0.0, %v2505
    %2507 = vmatmul.f32.gmra.mxu0 %v1625
    %v2508 = vpop.f32.mrf.mxu0
    %v2509 = vadd.f32 0.0, %v2508
    %2510 = vmatmul.f32.gmra.mxu0 %v1626
    %v2511 = vpop.f32.mrf.mxu0
    %v2512 = vadd.f32 0.0, %v2511
    %2513 = vmatmul.f32.gmra.mxu0 %v1627
    %v2514 = vpop.f32.mrf.mxu0
    %v2515 = vadd.f32 0.0, %v2514
    %2516 = vmatmul.f32.gmra.mxu0 %v1628
    %v2517 = vpop.f32.mrf.mxu0
    %v2518 = vadd.f32 0.0, %v2517
    %2519 = vmatmul.f32.gmra.mxu0 %v1629
    %v2520 = vpop.f32.mrf.mxu0
    %v2521 = vadd.f32 0.0, %v2520
    %2522 = vmatmul.f32.gmra.mxu0 %v1630
    %v2523 = vpop.f32.mrf.mxu0
    %v2524 = vadd.f32 0.0, %v2523
    %2525 = vmatmul.f32.gmra.mxu0 %v1631
    %v2526 = vpop.f32.mrf.mxu0
    %v2527 = vadd.f32 0.0, %v2526
    %2528 = vmatmul.f32.gmra.mxu0 %v1632
    %v2529 = vpop.f32.mrf.mxu0
    %v2530 = vadd.f32 0.0, %v2529
    %2531 = vmatmul.f32.gmra.mxu0 %v1633
    %v2532 = vpop.f32.mrf.mxu0
    %v2533 = vadd.f32 0.0, %v2532
    %2534 = vdwg.mxu0
    %v2535 = vsub.f32 %v2454, %v2488
    %v2536 = vsub.f32 %v2455, %v2491
    %v2537 = vsub.f32 %v2456, %v2494
    %v2538 = vsub.f32 %v2457, %v2497
    %v2539 = vsub.f32 %v2458, %v2500
    %v2540 = vsub.f32 %v2459, %v2503
    %v2541 = vsub.f32 %v2460, %v2506
    %v2542 = vsub.f32 %v2461, %v2509
    %v2543 = vsub.f32 %v2462, %v2512
    %v2544 = vsub.f32 %v2463, %v2515
    %v2545 = vsub.f32 %v2464, %v2518
    %v2546 = vsub.f32 %v2465, %v2521
    %v2547 = vsub.f32 %v2466, %v2524
    %v2548 = vsub.f32 %v2467, %v2527
    %v2549 = vsub.f32 %v2468, %v2530
    %v2550 = vsub.f32 %v2469, %v2533
    %v2551 = vmul.f32 %v2535, %v2535
    %v2552 = vmul.f32 %v2536, %v2536
    %v2553 = vmul.f32 %v2537, %v2537
    %v2554 = vmul.f32 %v2538, %v2538
    %v2555 = vmul.f32 %v2539, %v2539
    %v2556 = vmul.f32 %v2540, %v2540
    %v2557 = vmul.f32 %v2541, %v2541
    %v2558 = vmul.f32 %v2542, %v2542
    %v2559 = vmul.f32 %v2543, %v2543
    %v2560 = vmul.f32 %v2544, %v2544
    %v2561 = vmul.f32 %v2545, %v2545
    %v2562 = vmul.f32 %v2546, %v2546
    %v2563 = vmul.f32 %v2547, %v2547
    %v2564 = vmul.f32 %v2548, %v2548
    %v2565 = vmul.f32 %v2549, %v2549
    %v2566 = vmul.f32 %v2550, %v2550
    %2567 = vmatpush.msra.mxu0 %v2566
    %2568 = vmatpush.msra.mxu0 %v2565
    %2569 = vmatpush.msra.mxu0 %v2564
    %2570 = vmatpush.msra.mxu0 %v2563
    %2571 = vmatpush.msra.mxu0 %v2562
    %2572 = vmatpush.msra.mxu0 %v2561
    %2573 = vmatpush.msra.mxu0 %v2560
    %2574 = vmatpush.msra.mxu0 %v2559
    %2575 = vmatpush.msra.mxu0 %v2558
    %2576 = vmatpush.msra.mxu0 %v2557
    %2577 = vmatpush.msra.mxu0 %v2556
    %2578 = vmatpush.msra.mxu0 %v2555
    %2579 = vmatpush.msra.mxu0 %v2554
    %2580 = vmatpush.msra.mxu0 %v2553
    %2581 = vmatpush.msra.mxu0 %v2552
    %2582 = vmatpush.msra.mxu0 %v2551
    %2583 = vmatmul.f32.gmra.mxu0 %v1618
    %v2584 = vpop.f32.mrf.mxu0
    %v2585 = vadd.f32 1e-05, %v2584
    %2586 = vmatmul.f32.gmra.mxu0 %v1619
    %v2587 = vpop.f32.mrf.mxu0
    %v2588 = vadd.f32 1e-05, %v2587
    %2589 = vmatmul.f32.gmra.mxu0 %v1620
    %v2590 = vpop.f32.mrf.mxu0
    %v2591 = vadd.f32 1e-05, %v2590
    %2592 = vmatmul.f32.gmra.mxu0 %v1621
    %v2593 = vpop.f32.mrf.mxu0
    %v2594 = vadd.f32 1e-05, %v2593
    %2595 = vmatmul.f32.gmra.mxu0 %v1622
    %v2596 = vpop.f32.mrf.mxu0
    %v2597 = vadd.f32 1e-05, %v2596
    %2598 = vmatmul.f32.gmra.mxu0 %v1623
    %v2599 = vpop.f32.mrf.mxu0
    %v2600 = vadd.f32 1e-05, %v2599
    %2601 = vmatmul.f32.gmra.mxu0 %v1624
    %v2602 = vpop.f32.mrf.mxu0
    %v2603 = vadd.f32 1e-05, %v2602
    %2604 = vmatmul.f32.gmra.mxu0 %v1625
    %v2605 = vpop.f32.mrf.mxu0
    %v2606 = vadd.f32 1e-05, %v2605
    %2607 = vmatmul.f32.gmra.mxu0 %v1626
    %v2608 = vpop.f32.mrf.mxu0
    %v2609 = vadd.f32 1e-05, %v2608
    %2610 = vmatmul.f32.gmra.mxu0 %v1627
    %v2611 = vpop.f32.mrf.mxu0
    %v2612 = vadd.f32 1e-05, %v2611
    %2613 = vmatmul.f32.gmra.mxu0 %v1628
    %v2614 = vpop.f32.mrf.mxu0
    %v2615 = vadd.f32 1e-05, %v2614
    %2616 = vmatmul.f32.gmra.mxu0 %v1629
    %v2617 = vpop.f32.mrf.mxu0
    %v2618 = vadd.f32 1e-05, %v2617
    %2619 = vmatmul.f32.gmra.mxu0 %v1630
    %v2620 = vpop.f32.mrf.mxu0
    %v2621 = vadd.f32 1e-05, %v2620
    %2622 = vmatmul.f32.gmra.mxu0 %v1631
    %v2623 = vpop.f32.mrf.mxu0
    %v2624 = vadd.f32 1e-05, %v2623
    %2625 = vmatmul.f32.gmra.mxu0 %v1632
    %v2626 = vpop.f32.mrf.mxu0
    %v2627 = vadd.f32 1e-05, %v2626
    %2628 = vmatmul.f32.gmra.mxu0 %v1633
    %v2629 = vpop.f32.mrf.mxu0
    %v2630 = vadd.f32 1e-05, %v2629
    %2631 = vdwg.mxu0
    %v2632 = vrsqrt.pop %v2585
    %v2633 = vmul.f32 %v2632, %v2585
    %v2634 = vmul.f32 %v2633, %v2632
    %v2635 = vmul.f32 0.5, %v2634
    %v2636 = vsub.f32 1.5, %v2635
    %v2637 = vmul.f32 %v2632, %v2636
    %vm2638 = vweird.f32 %v2585
    %vm2639 = vweird.f32 %v2632
    %vm2640 = vmor %vm2638, %vm2639
    %v2641 = vsel %vm2640, %v2632, %v2637
    %v2642 = vrsqrt.pop %v2588
    %v2643 = vmul.f32 %v2642, %v2588
    %v2644 = vmul.f32 %v2643, %v2642
    %v2645 = vmul.f32 0.5, %v2644
    %v2646 = vsub.f32 1.5, %v2645
    %v2647 = vmul.f32 %v2642, %v2646
    %vm2648 = vweird.f32 %v2588
    %vm2649 = vweird.f32 %v2642
    %vm2650 = vmor %vm2648, %vm2649
    %v2651 = vsel %vm2650, %v2642, %v2647
    %v2652 = vrsqrt.pop %v2591
    %v2653 = vmul.f32 %v2652, %v2591
    %v2654 = vmul.f32 %v2653, %v2652
    %v2655 = vmul.f32 0.5, %v2654
    %v2656 = vsub.f32 1.5, %v2655
    %v2657 = vmul.f32 %v2652, %v2656
    %vm2658 = vweird.f32 %v2591
    %vm2659 = vweird.f32 %v2652
    %vm2660 = vmor %vm2658, %vm2659
    %v2661 = vsel %vm2660, %v2652, %v2657
    %v2662 = vrsqrt.pop %v2594
    %v2663 = vmul.f32 %v2662, %v2594
    %v2664 = vmul.f32 %v2663, %v2662
    %v2665 = vmul.f32 0.5, %v2664
    %v2666 = vsub.f32 1.5, %v2665
    %v2667 = vmul.f32 %v2662, %v2666
    %vm2668 = vweird.f32 %v2594
    %vm2669 = vweird.f32 %v2662
    %vm2670 = vmor %vm2668, %vm2669
    %v2671 = vsel %vm2670, %v2662, %v2667
    %v2672 = vrsqrt.pop %v2597
    %v2673 = vmul.f32 %v2672, %v2597
    %v2674 = vmul.f32 %v2673, %v2672
    %v2675 = vmul.f32 0.5, %v2674
    %v2676 = vsub.f32 1.5, %v2675
    %v2677 = vmul.f32 %v2672, %v2676
    %vm2678 = vweird.f32 %v2597
    %vm2679 = vweird.f32 %v2672
    %vm2680 = vmor %vm2678, %vm2679
    %v2681 = vsel %vm2680, %v2672, %v2677
    %v2682 = vrsqrt.pop %v2600
    %v2683 = vmul.f32 %v2682, %v2600
    %v2684 = vmul.f32 %v2683, %v2682
    %v2685 = vmul.f32 0.5, %v2684
    %v2686 = vsub.f32 1.5, %v2685
    %v2687 = vmul.f32 %v2682, %v2686
    %vm2688 = vweird.f32 %v2600
    %vm2689 = vweird.f32 %v2682
    %vm2690 = vmor %vm2688, %vm2689
    %v2691 = vsel %vm2690, %v2682, %v2687
    %v2692 = vrsqrt.pop %v2603
    %v2693 = vmul.f32 %v2692, %v2603
    %v2694 = vmul.f32 %v2693, %v2692
    %v2695 = vmul.f32 0.5, %v2694
    %v2696 = vsub.f32 1.5, %v2695
    %v2697 = vmul.f32 %v2692, %v2696
    %vm2698 = vweird.f32 %v2603
    %vm2699 = vweird.f32 %v2692
    %vm2700 = vmor %vm2698, %vm2699
    %v2701 = vsel %vm2700, %v2692, %v2697
    %v2702 = vrsqrt.pop %v2606
    %v2703 = vmul.f32 %v2702, %v2606
    %v2704 = vmul.f32 %v2703, %v2702
    %v2705 = vmul.f32 0.5, %v2704
    %v2706 = vsub.f32 1.5, %v2705
    %v2707 = vmul.f32 %v2702, %v2706
    %vm2708 = vweird.f32 %v2606
    %vm2709 = vweird.f32 %v2702
    %vm2710 = vmor %vm2708, %vm2709
    %v2711 = vsel %vm2710, %v2702, %v2707
    %v2712 = vrsqrt.pop %v2609
    %v2713 = vmul.f32 %v2712, %v2609
    %v2714 = vmul.f32 %v2713, %v2712
    %v2715 = vmul.f32 0.5, %v2714
    %v2716 = vsub.f32 1.5, %v2715
    %v2717 = vmul.f32 %v2712, %v2716
    %vm2718 = vweird.f32 %v2609
    %vm2719 = vweird.f32 %v2712
    %vm2720 = vmor %vm2718, %vm2719
    %v2721 = vsel %vm2720, %v2712, %v2717
    %v2722 = vrsqrt.pop %v2612
    %v2723 = vmul.f32 %v2722, %v2612
    %v2724 = vmul.f32 %v2723, %v2722
    %v2725 = vmul.f32 0.5, %v2724
    %v2726 = vsub.f32 1.5, %v2725
    %v2727 = vmul.f32 %v2722, %v2726
    %vm2728 = vweird.f32 %v2612
    %vm2729 = vweird.f32 %v2722
    %vm2730 = vmor %vm2728, %vm2729
    %v2731 = vsel %vm2730, %v2722, %v2727
    %v2732 = vrsqrt.pop %v2615
    %v2733 = vmul.f32 %v2732, %v2615
    %v2734 = vmul.f32 %v2733, %v2732
    %v2735 = vmul.f32 0.5, %v2734
    %v2736 = vsub.f32 1.5, %v2735
    %v2737 = vmul.f32 %v2732, %v2736
    %vm2738 = vweird.f32 %v2615
    %vm2739 = vweird.f32 %v2732
    %vm2740 = vmor %vm2738, %vm2739
    %v2741 = vsel %vm2740, %v2732, %v2737
    %v2742 = vrsqrt.pop %v2618
    %v2743 = vmul.f32 %v2742, %v2618
    %v2744 = vmul.f32 %v2743, %v2742
    %v2745 = vmul.f32 0.5, %v2744
    %v2746 = vsub.f32 1.5, %v2745
    %v2747 = vmul.f32 %v2742, %v2746
    %vm2748 = vweird.f32 %v2618
    %vm2749 = vweird.f32 %v2742
    %vm2750 = vmor %vm2748, %vm2749
    %v2751 = vsel %vm2750, %v2742, %v2747
    %v2752 = vrsqrt.pop %v2621
    %v2753 = vmul.f32 %v2752, %v2621
    %v2754 = vmul.f32 %v2753, %v2752
    %v2755 = vmul.f32 0.5, %v2754
    %v2756 = vsub.f32 1.5, %v2755
    %v2757 = vmul.f32 %v2752, %v2756
    %vm2758 = vweird.f32 %v2621
    %vm2759 = vweird.f32 %v2752
    %vm2760 = vmor %vm2758, %vm2759
    %v2761 = vsel %vm2760, %v2752, %v2757
    %v2762 = vrsqrt.pop %v2624
    %v2763 = vmul.f32 %v2762, %v2624
    %v2764 = vmul.f32 %v2763, %v2762
    %v2765 = vmul.f32 0.5, %v2764
    %v2766 = vsub.f32 1.5, %v2765
    %v2767 = vmul.f32 %v2762, %v2766
    %vm2768 = vweird.f32 %v2624
    %vm2769 = vweird.f32 %v2762
    %vm2770 = vmor %vm2768, %vm2769
    %v2771 = vsel %vm2770, %v2762, %v2767
    %v2772 = vrsqrt.pop %v2627
    %v2773 = vmul.f32 %v2772, %v2627
    %v2774 = vmul.f32 %v2773, %v2772
    %v2775 = vmul.f32 0.5, %v2774
    %v2776 = vsub.f32 1.5, %v2775
    %v2777 = vmul.f32 %v2772, %v2776
    %vm2778 = vweird.f32 %v2627
    %vm2779 = vweird.f32 %v2772
    %vm2780 = vmor %vm2778, %vm2779
    %v2781 = vsel %vm2780, %v2772, %v2777
    %v2782 = vrsqrt.pop %v2630
    %v2783 = vmul.f32 %v2782, %v2630
    %v2784 = vmul.f32 %v2783, %v2782
    %v2785 = vmul.f32 0.5, %v2784
    %v2786 = vsub.f32 1.5, %v2785
    %v2787 = vmul.f32 %v2782, %v2786
    %vm2788 = vweird.f32 %v2630
    %vm2789 = vweird.f32 %v2782
    %vm2790 = vmor %vm2788, %vm2789
    %v2791 = vsel %vm2790, %v2782, %v2787
    %v2792 = vmul.f32 %v2535, %v2641
    %v2793 = vmul.f32 %v2536, %v2651
    %v2794 = vmul.f32 %v2537, %v2661
    %v2795 = vmul.f32 %v2538, %v2671
    %v2796 = vmul.f32 %v2539, %v2681
    %v2797 = vmul.f32 %v2540, %v2691
    %v2798 = vmul.f32 %v2541, %v2701
    %v2799 = vmul.f32 %v2542, %v2711
    %v2800 = vmul.f32 %v2543, %v2721
    %v2801 = vmul.f32 %v2544, %v2731
    %v2802 = vmul.f32 %v2545, %v2741
    %v2803 = vmul.f32 %v2546, %v2751
    %v2804 = vmul.f32 %v2547, %v2761
    %v2805 = vmul.f32 %v2548, %v2771
    %v2806 = vmul.f32 %v2549, %v2781
    %v2807 = vmul.f32 %v2550, %v2791
    %2808 = vset.pattern.permute.xlu0 8
    %2809 = vperm.xlu0 %2808, %v534
    %v2810 = vpop.permute.xlu0 %2809
    %2812 = vset.pattern.permute.xlu0 8
    %2813 = vperm.xlu0 %2812, %v535
    %v2814 = vpop.permute.xlu0 %2813
    %2816 = vset.pattern.permute.xlu0 8
    %2817 = vperm.xlu0 %2816, %v536
    %v2818 = vpop.permute.xlu0 %2817
    %2820 = vset.pattern.permute.xlu0 8
    %2821 = vperm.xlu0 %2820, %v537
    %v2822 = vpop.permute.xlu0 %2821
    %2824 = vset.pattern.permute.xlu0 8
    %2825 = vperm.xlu0 %2824, %v538
    %v2826 = vpop.permute.xlu0 %2825
    %2828 = vset.pattern.permute.xlu0 8
    %2829 = vperm.xlu0 %2828, %v539
    %v2830 = vpop.permute.xlu0 %2829
    %2832 = vset.pattern.permute.xlu0 8
    %2833 = vperm.xlu0 %2832, %v540
    %v2834 = vpop.permute.xlu0 %2833
    %2836 = vset.pattern.permute.xlu0 8
    %2837 = vperm.xlu0 %2836, %v541
    %v2838 = vpop.permute.xlu0 %2837
    %2840 = vset.pattern.permute.xlu0 8
    %2841 = vperm.xlu0 %2840, %v542
    %v2842 = vpop.permute.xlu0 %2841
    %2844 = vset.pattern.permute.xlu0 8
    %2845 = vperm.xlu0 %2844, %v543
    %v2846 = vpop.permute.xlu0 %2845
    %2848 = vset.pattern.permute.xlu0 8
    %2849 = vperm.xlu0 %2848, %v544
    %v2850 = vpop.permute.xlu0 %2849
    %2852 = vset.pattern.permute.xlu0 8
    %2853 = vperm.xlu0 %2852, %v545
    %v2854 = vpop.permute.xlu0 %2853
    %2856 = vset.pattern.permute.xlu0 8
    %2857 = vperm.xlu0 %2856, %v546
    %v2858 = vpop.permute.xlu0 %2857
    %2860 = vset.pattern.permute.xlu0 8
    %2861 = vperm.xlu0 %2860, %v547
    %v2862 = vpop.permute.xlu0 %2861
    %2864 = vset.pattern.permute.xlu0 8
    %2865 = vperm.xlu0 %2864, %v548
    %v2866 = vpop.permute.xlu0 %2865
    %2868 = vset.pattern.permute.xlu0 8
    %2869 = vperm.xlu0 %2868, %v549
    %v2870 = vpop.permute.xlu0 %2869
    %v2872 = vmul.f32 %v2792, %v2810
    %v2873 = vmul.f32 %v2793, %v2814
    %v2874 = vmul.f32 %v2794, %v2818
    %v2875 = vmul.f32 %v2795, %v2822
    %v2876 = vmul.f32 %v2796, %v2826
    %v2877 = vmul.f32 %v2797, %v2830
    %v2878 = vmul.f32 %v2798, %v2834
    %v2879 = vmul.f32 %v2799, %v2838
    %v2880 = vmul.f32 %v2800, %v2842
    %v2881 = vmul.f32 %v2801, %v2846
    %v2882 = vmul.f32 %v2802, %v2850
    %v2883 = vmul.f32 %v2803, %v2854
    %v2884 = vmul.f32 %v2804, %v2858
    %v2885 = vmul.f32 %v2805, %v2862
    %v2886 = vmul.f32 %v2806, %v2866
    %v2887 = vmul.f32 %v2807, %v2870
    %2888 = vset.pattern.permute.xlu0 9
    %2889 = vperm.xlu0 %2888, %v534
    %v2890 = vpop.permute.xlu0 %2889
    %2892 = vset.pattern.permute.xlu0 9
    %2893 = vperm.xlu0 %2892, %v535
    %v2894 = vpop.permute.xlu0 %2893
    %2896 = vset.pattern.permute.xlu0 9
    %2897 = vperm.xlu0 %2896, %v536
    %v2898 = vpop.permute.xlu0 %2897
    %2900 = vset.pattern.permute.xlu0 9
    %2901 = vperm.xlu0 %2900, %v537
    %v2902 = vpop.permute.xlu0 %2901
    %2904 = vset.pattern.permute.xlu0 9
    %2905 = vperm.xlu0 %2904, %v538
    %v2906 = vpop.permute.xlu0 %2905
    %2908 = vset.pattern.permute.xlu0 9
    %2909 = vperm.xlu0 %2908, %v539
    %v2910 = vpop.permute.xlu0 %2909
    %2912 = vset.pattern.permute.xlu0 9
    %2913 = vperm.xlu0 %2912, %v540
    %v2914 = vpop.permute.xlu0 %2913
    %2916 = vset.pattern.permute.xlu0 9
    %2917 = vperm.xlu0 %2916, %v541
    %v2918 = vpop.permute.xlu0 %2917
    %2920 = vset.pattern.permute.xlu0 9
    %2921 = vperm.xlu0 %2920, %v542
    %v2922 = vpop.permute.xlu0 %2921
    %2924 = vset.pattern.permute.xlu0 9
    %2925 = vperm.xlu0 %2924, %v543
    %v2926 = vpop.permute.xlu0 %2925
    %2928 = vset.pattern.permute.xlu0 9
    %2929 = vperm.xlu0 %2928, %v544
    %v2930 = vpop.permute.xlu0 %2929
    %2932 = vset.pattern.permute.xlu0 9
    %2933 = vperm.xlu0 %2932, %v545
    %v2934 = vpop.permute.xlu0 %2933
    %2936 = vset.pattern.permute.xlu0 9
    %2937 = vperm.xlu0 %2936, %v546
    %v2938 = vpop.permute.xlu0 %2937
    %2940 = vset.pattern.permute.xlu0 9
    %2941 = vperm.xlu0 %2940, %v547
    %v2942 = vpop.permute.xlu0 %2941
    %2944 = vset.pattern.permute.xlu0 9
    %2945 = vperm.xlu0 %2944, %v548
    %v2946 = vpop.permute.xlu0 %2945
    %2948 = vset.pattern.permute.xlu0 9
    %2949 = vperm.xlu0 %2948, %v549
    %v2950 = vpop.permute.xlu0 %2949
    %v2952 = vadd.f32 %v2872, %v2890
    %v2953 = vadd.f32 %v2873, %v2894
    %v2954 = vadd.f32 %v2874, %v2898
    %v2955 = vadd.f32 %v2875, %v2902
    %v2956 = vadd.f32 %v2876, %v2906
    %v2957 = vadd.f32 %v2877, %v2910
    %v2958 = vadd.f32 %v2878, %v2914
    %v2959 = vadd.f32 %v2879, %v2918
    %v2960 = vadd.f32 %v2880, %v2922
    %v2961 = vadd.f32 %v2881, %v2926
    %v2962 = vadd.f32 %v2882, %v2930
    %v2963 = vadd.f32 %v2883, %v2934
    %v2964 = vadd.f32 %v2884, %v2938
    %v2965 = vadd.f32 %v2885, %v2942
    %v2966 = vadd.f32 %v2886, %v2946
    %v2967 = vadd.f32 %v2887, %v2950
    %v2968 = vld [vmem:[#allocation5 + $0x410] sm:$0xff]
    %v2969 = vld [vmem:[#allocation5 + $0x418] sm:$0xff]
    %v2970 = vld [vmem:[#allocation5 + $0x420] sm:$0xff]
    %v2971 = vld [vmem:[#allocation5 + $0x428] sm:$0xff]
    %v2972 = vld [vmem:[%s3] sm:$0xff]
    %v2973 = vld [vmem:[%s3 + $0x8] sm:$0xff]
    %v2974 = vld [vmem:[%s3 + $0x10] sm:$0xff]
    %v2975 = vld [vmem:[%s3 + $0x18] sm:$0xff]
    %2977 = vset.pattern.permute.xlu0 10
    %2978 = vperm.xlu0 %2977, %v2972
    %v2979 = vpop.permute.xlu0 %2978
    %2982 = vset.pattern.permute.xlu0 10
    %2983 = vperm.xlu0 %2982, %v2973
    %v2984 = vpop.permute.xlu0 %2983
    %2987 = vset.pattern.permute.xlu0 10
    %2988 = vperm.xlu0 %2987, %v2974
    %v2989 = vpop.permute.xlu0 %2988
    %2992 = vset.pattern.permute.xlu0 10
    %2993 = vperm.xlu0 %2992, %v2975
    %v2994 = vpop.permute.xlu0 %2993
    %2996 = vmatpush.msra.mxu0 %v2967
    %2997 = vmatpush.msra.mxu0 %v2966
    %2998 = vmatpush.msra.mxu0 %v2965
    %2999 = vmatpush.msra.mxu0 %v2964
    %3000 = vmatpush.msra.mxu0 %v2963
    %3001 = vmatpush.msra.mxu0 %v2962
    %3002 = vmatpush.msra.mxu0 %v2961
    %3003 = vmatpush.msra.mxu0 %v2960
    %3004 = vmatpush.msra.mxu0 %v2959
    %3005 = vmatpush.msra.mxu0 %v2958
    %3006 = vmatpush.msra.mxu0 %v2957
    %3007 = vmatpush.msra.mxu0 %v2956
    %3008 = vmatpush.msra.mxu0 %v2955
    %3009 = vmatpush.msra.mxu0 %v2954
    %3010 = vmatpush.msra.mxu0 %v2953
    %3011 = vmatpush.msra.mxu0 %v2952
    %3012 = vmatmul.f32.gmra.mxu0 %v2968
    %v3013 = vpop.f32.mrf.mxu0
    %v3014 = vadd.f32 %v2979, %v3013
    %3015 = vmatmul.f32.gmra.mxu0 %v2969
    %v3016 = vpop.f32.mrf.mxu0
    %v3017 = vadd.f32 %v2984, %v3016
    %3018 = vmatmul.f32.gmra.mxu0 %v2970
    %v3019 = vpop.f32.mrf.mxu0
    %v3020 = vadd.f32 %v2989, %v3019
    %3021 = vmatmul.f32.gmra.mxu0 %v2971
    %v3022 = vpop.f32.mrf.mxu0
    %v3023 = vadd.f32 %v2994, %v3022
    %3024 = vdwg.mxu0
    %v3025 = vmax.f32 %v3014, 0.0
    %v3026 = vmax.f32 %v3017, 0.0
    %v3027 = vmax.f32 %v3020, 0.0
    %v3028 = vmax.f32 %v3023, 0.0
    %v3029 = vld [vmem:[#allocation5 + $0x430] sm:$0xff]
    %vm3030 = vcmask 261120
    %v3032 = vsel %vm3030, %v3029, 0
    %3034 = vmatpush.msra.mxu0 0.0
    %3035 = vmatpush.msra.mxu0 0.0
    %3036 = vmatpush.msra.mxu0 0.0
    %3037 = vmatpush.msra.mxu0 0.0
    %3038 = vmatpush.msra.mxu0 0.0
    %3039 = vmatpush.msra.mxu0 0.0
    %3040 = vmatpush.msra.mxu0 0.0
    %3041 = vmatpush.msra.mxu0 0.0
    %3042 = vmatpush.msra.mxu0 0.0
    %3043 = vmatpush.msra.mxu0 0.0
    %3044 = vmatpush.msra.mxu0 0.0
    %3045 = vmatpush.msra.mxu0 0.0
    %3046 = vmatpush.msra.mxu0 %v3028
    %3047 = vmatpush.msra.mxu0 %v3027
    %3048 = vmatpush.msra.mxu0 %v3026
    %3049 = vmatpush.msra.mxu0 %v3025
    %3050 = vmatmul.f32.gmra.mxu0 %v3032
    %v3051 = vpop.f32.mrf.mxu0
    %v3052 = vadd.f32 0.0, %v3051
    %3053 = vdwg.mxu0
    %v3054 = vld [vmem:[%s3] sm:$0x1]
    %3056 = vset.pattern.permute.xlu0 11
    %3057 = vperm.xlu0 %3056, %v3054
    %v3058 = vpop.permute.xlu0 %3057
    %v3060 = vadd.f32 %v3052, %v3058
    %3061 = vst [vmem:[#allocation7] sm:$0x1] %v3060
    // Predicated region
    $region26: #{tpu_custom_call.1} parent=1 // pred_check
      _
    $region27: #{tpu_custom_call.1} parent=1 // pred_check_branch
      %3063 = sbr.rel (0) target = $region29
    $region28: #{tpu_custom_call.1} parent=1 // pred_region
      %3065 = vsyncadd [#allocation4], 0
      %s3067 = sshll.u32 [#allocation7], 4
      %s3068 = int_to_ptr.vmem [resolvable:$true] %s3067
      %s3069 = sshll.u32 %s4, 4
      %s3070 = int_to_ptr.hbm [resolvable:$true] %s3069
      %3072 = dma.vmem_to_hbm [thread:$0]  %s3068, 16, %s3070, [#allocation4]
    $region29: #{tpu_custom_call.1} parent=1 // pred_fallthru
      _
    // Predicated region
    $region30: #{tpu_custom_call.1} parent=1 // pred_check
      _
    $region31: #{tpu_custom_call.1} parent=1 // pred_check_branch
      %3074 = sbr.rel (0) target = $region33
    $region32: #{tpu_custom_call.1} parent=1 // pred_region
      %3076 = dma.done [#allocation4], 16
    $region33: #{tpu_custom_call.1} parent=1 // pred_fallthru
      _
    %3077 = vsyncpa [#allocation3], 1
    %3078 = vsyncpa [#allocation6], 1
    %3079 = vsyncpa [#allocation4], 1

</llo_original>
